<compile_context>
chip_gen: v7x
topology: tpu7x:2x2x1
jax: 0.10.0
libtpu: 0.0.40
codegen_flags: <defaults>
</compile_context>

<pallas_src>
import functools

import jax
import jax.numpy as jnp
from jax.experimental import pallas as pl
from jax.experimental.pallas import tpu as pltpu


def _round_up(x, m):
    return (x + m - 1) // m * m


def _pick_row_tile(ho, n_batch, min_steps=8, min_rows=4, max_rows=64):
    """Largest divisor of ho (capped at max_rows) that still gives the grid at
    least min_steps steps; falls back to the largest usable divisor / whole
    image otherwise."""
    divs = [d for d in range(min(ho, max_rows), 0, -1) if ho % d == 0]
    for d in divs:
        if d < min_rows:
            break
        if n_batch * (ho // d) >= min_steps:
            return d
    big = [d for d in divs if d >= min_rows]
    return big[0] if big else ho


def _vmem_limit_bytes(block_bytes):
    """Scoped-VMEM request sized from the actual per-step blocks + headroom,
    clamped to 3/4 of this generation's physical VMEM (64 MiB v7x, 128 MiB
    v5e/v6e)."""
    try:
        cap = int(pltpu.get_tpu_info().vmem_capacity_bytes)
    except Exception:   # conservative fallback if the query is unavailable
        cap = 64 << 20
    want = block_bytes + (8 << 20)
    return int(min(max(want, 32 << 20), (cap * 3) // 4))


# ------------------------------ fused kernel --------------------------------

def _resblock_kernel(x_ref, wa_ref, w1_ref, wb_ref, ba_ref, b1_ref, bb_ref,
                     o_ref, hpad_ref, acc_a_ref, acc_b_ref, *, th, wo, stride):
    """One (image, row-tile) grid step of the fused ResBlock_d2 forward.

    x_ref      (Hxp, Wxp, Cin) bf16  padded input image (constant per image)
    wa_ref     (9, Cin, Cp)    bf16  conv A weights, BN scale folded
    w1_ref     (Cin, Cp)       bf16  shortcut 1x1 weights, BN scale folded
    wb_ref     (9, Cp, Cp)     bf16  conv B weights, BN scale folded
    ba/b1/bb   (1, Cp)         f32   folded BN biases
    o_ref      (TH, Wo, Cp)    f32   output tile
    hpad_ref   (TH+2, Wo+2, Cp) f32  VMEM: conv-A output tile incl. 1px halo
    acc_a_ref  ((TH+2)*Wo, Cp) f32   VMEM: conv A accumulator
    acc_b_ref  (TH*Wo, Cp)     f32   VMEM: conv B accumulator
    """
    t = pl.program_id(1)
    nt = pl.num_programs(1)
    cin = x_ref.shape[-1]
    cp = o_ref.shape[-1]
    ma = (th + 2) * wo
    mb = th * wo

    row0 = pl.multiple_of(t * (th * stride), th * stride)

    # ---- conv A (+ folded BN): 9 tap-shifted matmuls, scratch accumulation --
    for i in range(9):
        dh, dw = divmod(i, 3)
        if stride == 1:
            xt = x_ref[pl.ds(row0 + dh, th + 2), pl.ds(dw, wo), :]
        else:
            xt = x_ref[pl.ds(row0 + dh, th + 2, stride),
                       pl.ds(dw, wo, stride), :]
        tap = jnp.dot(xt.reshape(ma, cin), wa_ref[i],
                      preferred_element_type=jnp.float32)
        if i == 0:
            acc_a_ref[...] = tap
        else:
            acc_a_ref[...] += tap

    # Bias + ReLU into the padded VMEM scratch.  Border columns stay zero from
    # the fill; halo rows that fall outside the image are re-zeroed below
    # (this is conv B's zero padding).
    hpad_ref[...] = jnp.zeros_like(hpad_ref)
    hpad_ref[:, pl.ds(1, wo), :] = jnp.maximum(
        acc_a_ref[...] + ba_ref[...], 0.0).reshape(th + 2, wo, cp)

    @pl.when(t == 0)
    def _():
        hpad_ref[0, :, :] = jnp.zeros((wo + 2, cp), jnp.float32)

    @pl.when(t == nt - 1)
    def _():
        hpad_ref[th + 1, :, :] = jnp.zeros((wo + 2, cp), jnp.float32)

    # ---- conv B (+ folded BN), stride 1, hmid read straight from VMEM -------
    for i in range(9):
        dh, dw = divmod(i, 3)
        ht = hpad_ref[pl.ds(dh, th), pl.ds(dw, wo), :].astype(jnp.bfloat16)
        tap = jnp.dot(ht.reshape(mb, cp), wb_ref[i],
                      preferred_element_type=jnp.float32)
        if i == 0:
            acc_b_ref[...] = tap
        else:
            acc_b_ref[...] += tap

    # ---- shortcut 1x1 conv (+ folded BN) on the centre-tap rows -------------
    if stride == 1:
        xc = x_ref[pl.ds(row0 + 2, th), pl.ds(1, wo), :]
    else:
        xc = x_ref[pl.ds(row0 + stride + 1, th, stride),
                   pl.ds(1, wo, stride), :]
    val1 = jnp.dot(xc.reshape(mb, cin), w1_ref[...],
                   preferred_element_type=jnp.float32) + b1_ref[...]

    # conv B + BN + ReLU (+ Dropout eval = id), residual add, final ReLU.
    y = jnp.maximum(acc_b_ref[...] + bb_ref[...], 0.0)
    o_ref[...] = jnp.maximum(y + val1, 0.0).reshape(th, wo, cp).astype(
        o_ref.dtype)


# ------------------------------- JAX wrapper ---------------------------------

def _fold_bn(gamma, beta, run_mean, run_var, conv_bias, eps=1e-5):
    """Fold eval-mode BatchNorm (+ conv bias) into per-out-channel scale/bias."""
    scale = gamma / jnp.sqrt(run_var + eps)
    bias = beta + (conv_bias - run_mean) * scale
    return scale, bias


def resblock_d2_forward(x_nchw, p, stride=1):
    x = jnp.transpose(x_nchw, (0, 2, 3, 1))               # NCHW -> NHWC
    n, h, w, cin = x.shape
    cout = p["w1"].shape[0]
    # Lane-dense output channels; 256-wide N when Cout is large enough for the
    # 256-deep MXU on v6e/v7x, 128 otherwise (also optimal on v5e).
    cp = _round_up(cout, 256) if cout >= 192 else _round_up(cout, 128)
    pad_n = cp - cout
    ho = (h + 2 - 3) // stride + 1
    wo = (w + 2 - 3) // stride + 1
    th = _pick_row_tile(ho, n)
    nt = ho // th

    s1, b1 = _fold_bn(p["g1"], p["be1"], p["rm1"], p["rv1"], p["b1"])
    sa, ba = _fold_bn(p["ga"], p["bea"], p["rma"], p["rva"], p["ba"])
    sb, bb = _fold_bn(p["gb"], p["beb"], p["rmb"], p["rvb"], p["bb"])

    # conv A weights: (Cout, Cin, 3, 3) -> (9, Cin, Cp), BN scale folded, bf16.
    wa9 = (jnp.transpose(p["wa"], (2, 3, 1, 0)).reshape(9, cin, cout)
           * sa[None, None, :])
    wa9 = jnp.pad(wa9, ((0, 0), (0, 0), (0, pad_n))).astype(jnp.bfloat16)
    ba2 = jnp.pad(ba[None, :], ((0, 0), (0, pad_n)))

    # shortcut 1x1 conv weights: (Cout, Cin, 1, 1) -> (Cin, Cp), scale folded.
    w1p = jnp.pad(p["w1"].reshape(cout, cin).T * s1[None, :],
                  ((0, 0), (0, pad_n))).astype(jnp.bfloat16)
    b12 = jnp.pad(b1[None, :], ((0, 0), (0, pad_n)))

    # conv B weights: (Cout, Cout, 3, 3) -> (9, Cp, Cp), scale folded.
    wb9 = (jnp.transpose(p["wb"], (2, 3, 1, 0)).reshape(9, cout, cout)
           * sb[None, None, :])
    wb9 = jnp.pad(wb9, ((0, 0), (0, pad_n), (0, pad_n))).astype(jnp.bfloat16)
    bb2 = jnp.pad(bb[None, :], ((0, 0), (0, pad_n)))

    # Pad x once: 1 px for conv A plus `stride` extra top rows (and the matching
    # bottom rows) so every row-tile can (re)compute its 1-row conv-B halo from
    # in-bounds slices.
    pt = stride + 1
    pb = max(0, ho * stride + 2 - h)
    pr = max(0, (wo - 1) * stride + 2 - w)
    xpad = jnp.pad(x, ((0, 0), (pt, pb), (1, pr), (0, 0))).astype(jnp.bfloat16)
    hxp, wxp = h + pt + pb, w + 1 + pr

    # Rough per-step VMEM need (double-buffered blocks + persistent scratch).
    block_bytes = (
        2 * (hxp * wxp * cin * 2)                            # x block (bf16)
        + 2 * (9 * cin * cp + cin * cp + 9 * cp * cp) * 2    # weights (bf16)
        + 2 * 3 * cp * 4                                      # biases (f32)
        + 2 * (th * wo * cp * 4)                              # output block
        + (th + 2) * (wo + 2) * cp * 4                        # hmid scratch
        + ((th + 2) * wo + th * wo) * cp * 4)                 # accumulators

    kernel = functools.partial(_resblock_kernel, th=th, wo=wo, stride=stride)
    out = pl.pallas_call(
        kernel,
        out_shape=jax.ShapeDtypeStruct((n, ho, wo, cp), jnp.float32),
        grid=(n, nt),
        in_specs=[
            pl.BlockSpec((None, hxp, wxp, cin), lambda b, t: (b, 0, 0, 0)),
            pl.BlockSpec((9, cin, cp), lambda b, t: (0, 0, 0)),
            pl.BlockSpec((cin, cp), lambda b, t: (0, 0)),
            pl.BlockSpec((9, cp, cp), lambda b, t: (0, 0, 0)),
            pl.BlockSpec((1, cp), lambda b, t: (0, 0)),
            pl.BlockSpec((1, cp), lambda b, t: (0, 0)),
            pl.BlockSpec((1, cp), lambda b, t: (0, 0)),
        ],
        out_specs=pl.BlockSpec((None, th, wo, cp), lambda b, t: (b, t, 0, 0)),
        scratch_shapes=[
            pltpu.VMEM((th + 2, wo + 2, cp), jnp.float32),   # padded hmid tile
            pltpu.VMEM(((th + 2) * wo, cp), jnp.float32),    # conv A acc
            pltpu.VMEM((th * wo, cp), jnp.float32),          # conv B acc
        ],
        compiler_params=pltpu.CompilerParams(
            dimension_semantics=("parallel", "parallel"),
            vmem_limit_bytes=_vmem_limit_bytes(block_bytes)),
    )(xpad, wa9, w1p, wb9, ba2, b12, bb2)

    out = out[..., :cout]                                   # drop channel pad
    return jnp.transpose(out, (0, 3, 1, 2))                 # NHWC -> NCHW


# --------------------------- pure-JAX reference ------------------------------

def _reference(x_nchw, p, stride=1, eps=1e-5):
    def conv(x, w, b, s, pad):
        y = jax.lax.conv_general_dilated(
            x, w, (s, s), [(pad, pad), (pad, pad)],
            dimension_numbers=("NCHW", "OIHW", "NCHW"))
        return y + b[None, :, None, None]

    def bn(x, g, be, rm, rv):
        return ((x - rm[None, :, None, None])
                / jnp.sqrt(rv[None, :, None, None] + eps)
                * g[None, :, None, None] + be[None, :, None, None])

    val1 = bn(conv(x_nchw, p["w1"], p["b1"], stride, 0),
              p["g1"], p["be1"], p["rm1"], p["rv1"])
    h = jnp.maximum(bn(conv(x_nchw, p["wa"], p["ba"], stride, 1),
                       p["ga"], p["bea"], p["rma"], p["rva"]), 0.0)
    v2 = jnp.maximum(bn(conv(h, p["wb"], p["bb"], 1, 1),
                        p["gb"], p["beb"], p["rmb"], p["rvb"]), 0.0)
    return jnp.maximum(v2 + val1, 0.0)


# --------------------------------- main --------------------------------------

def _init_params(key, cin, cout):
    ks = jax.random.split(key, 16)
    u = lambda k, shape, s=0.1: s * jax.random.normal(k, shape, jnp.float32)
    pos = lambda k, shape: 0.5 + jax.random.uniform(k, shape, jnp.float32)
    return {
        # shortcut 1x1 conv + BN
        "w1": u(ks[0], (cout, cin, 1, 1)), "b1": u(ks[1], (cout,)),
        "g1": pos(ks[2], (cout,)), "be1": u(ks[3], (cout,)),
        "rm1": u(ks[4], (cout,)), "rv1": pos(ks[5], (cout,)),
        # res conv A (3x3, stride) + BN
        "wa": u(ks[6], (cout, cin, 3, 3)), "ba": u(ks[7], (cout,)),
        "ga": pos(ks[8], (cout,)), "bea": u(ks[9], (cout,)),
        "rma": u(ks[10], (cout,)), "rva": pos(ks[11], (cout,)),
        # res conv B (3x3, stride 1) + BN
        "wb": u(ks[12], (cout, cout, 3, 3)), "bb": u(ks[13], (cout,)),
        "gb": pos(ks[14], (cout,)), "beb": u(ks[15], (cout,)),
        "rmb": u(ks[4], (cout,)) * 0.5, "rvb": pos(ks[5], (cout,)) + 0.25,
    }


if __name__ == "__main__":
    key = jax.random.PRNGKey(0)
    k_x, k_p = jax.random.split(key)

    batch, in_channels, out_channels, hw, stride = 2, 4, 8, 16, 1
    x = jax.random.normal(k_x, (batch, in_channels, hw, hw), jnp.float32)
    params = _init_params(k_p, in_channels, out_channels)

    out = resblock_d2_forward(x, params, stride=stride)
    out = jax.block_until_ready(out)

    ref = _reference(x, params, stride=stride)
    assert out.shape == ref.shape, (out.shape, ref.shape)
    # bf16 matmul operands (f32 accumulation) -> loosened tolerance vs f32 ref.
    assert jnp.allclose(out, ref, atol=5e-2, rtol=5e-2), float(
        jnp.max(jnp.abs(out - ref)))

    print("KERNEL_OK")
</pallas_src>

<mosaic_0001>
module attributes {stable_mosaic.version = 11 : i64} {
  func.func @_resblock_kernel(%arg0: i32, %arg1: i32, %arg2: memref<1x20x18x4xbf16, #tpu.memory_space<vmem>>, %arg3: memref<9x4x128xbf16, #tpu.memory_space<vmem>>, %arg4: memref<4x128xbf16, #tpu.memory_space<vmem>>, %arg5: memref<9x128x128xbf16, #tpu.memory_space<vmem>>, %arg6: memref<1x128xf32, #tpu.memory_space<vmem>>, %arg7: memref<1x128xf32, #tpu.memory_space<vmem>>, %arg8: memref<1x128xf32, #tpu.memory_space<vmem>>, %arg9: memref<1x4x16x128xf32, #tpu.memory_space<vmem>>, %arg10: memref<6x18x128xf32, #tpu.memory_space<vmem>>, %arg11: memref<96x128xf32, #tpu.memory_space<vmem>>, %arg12: memref<64x128xf32, #tpu.memory_space<vmem>>) attributes {dimension_semantics = [#tpu.dimension_semantics<parallel>, #tpu.dimension_semantics<parallel>], iteration_bounds = array<i64: 2, 4>, scalar_prefetch = 0 : i64, scratch_operands = 3 : i64, tpu.core_type = #tpu.core_type<tc>, window_params = [{transform_indices = @transform_0, window_bounds = array<i64: 1, 20, 18, 4>}, {pipeline_mode = #tpu.pipeline_mode<synchronous>, transform_indices = @transform_1, window_bounds = array<i64: 9, 4, 128>}, {pipeline_mode = #tpu.pipeline_mode<synchronous>, transform_indices = @transform_2, window_bounds = array<i64: 4, 128>}, {pipeline_mode = #tpu.pipeline_mode<synchronous>, transform_indices = @transform_3, window_bounds = array<i64: 9, 128, 128>}, {pipeline_mode = #tpu.pipeline_mode<synchronous>, transform_indices = @transform_4, window_bounds = array<i64: 1, 128>}, {pipeline_mode = #tpu.pipeline_mode<synchronous>, transform_indices = @transform_5, window_bounds = array<i64: 1, 128>}, {pipeline_mode = #tpu.pipeline_mode<synchronous>, transform_indices = @transform_6, window_bounds = array<i64: 1, 128>}, {transform_indices = @transform_7, window_bounds = array<i64: 1, 4, 16, 128>}]} {
    %c4_i32 = arith.constant 4 : i32
    %0 = arith.muli %arg1, %c4_i32 : i32
    %1 = tpu.assume_multiple %0, 4 : i32
    %c0_i32 = arith.constant 0 : i32
    %2 = arith.addi %1, %c0_i32 : i32
    %c0 = arith.constant 0 : index
    %3 = arith.index_cast %2 : i32 to index
    %c0_0 = arith.constant 0 : index
    %c0_1 = arith.constant 0 : index
    %4 = vector.load %arg2[%c0, %3, %c0_0, %c0_1] : memref<1x20x18x4xbf16, #tpu.memory_space<vmem>>, vector<1x6x16x4xbf16>
    %5 = vector.shape_cast %4 : vector<1x6x16x4xbf16> to vector<6x16x4xbf16>
    %6 = vector.shape_cast %5 : vector<6x16x4xbf16> to vector<96x4xbf16>
    %c0_2 = arith.constant 0 : index
    %c0_3 = arith.constant 0 : index
    %c0_4 = arith.constant 0 : index
    %7 = vector.load %arg3[%c0_2, %c0_3, %c0_4] : memref<9x4x128xbf16, #tpu.memory_space<vmem>>, vector<1x4x128xbf16>
    %8 = vector.shape_cast %7 : vector<1x4x128xbf16> to vector<4x128xbf16>
    %cst = arith.constant dense<0.000000e+00> : vector<96x128xf32>
    %9 = tpu.matmul %6, %8, %cst {dimension_numbers = #tpu.dot_dimension_numbers<[1], [0], [0], [1], [0, 0, 1, 1], [], []>} : vector<96x4xbf16>, vector<4x128xbf16>, vector<96x128xf32> -> vector<96x128xf32>
    %c0_5 = arith.constant 0 : index
    %c0_6 = arith.constant 0 : index
    %10 = vector.load %arg11[%c0_5, %c0_6] : memref<96x128xf32, #tpu.memory_space<vmem>>, vector<96x128xf32>
    tpu.vector_store %arg11[%c0_5, %c0_6], %9 {strides = array<i32>} : memref<96x128xf32, #tpu.memory_space<vmem>>, vector<96x128xf32>,
    %c0_i32_7 = arith.constant 0 : i32
    %11 = arith.addi %1, %c0_i32_7 : i32
    %c0_8 = arith.constant 0 : index
    %12 = arith.index_cast %11 : i32 to index
    %c1 = arith.constant 1 : index
    %c0_9 = arith.constant 0 : index
    %13 = vector.load %arg2[%c0_8, %12, %c1, %c0_9] : memref<1x20x18x4xbf16, #tpu.memory_space<vmem>>, vector<1x6x16x4xbf16>
    %14 = vector.shape_cast %13 : vector<1x6x16x4xbf16> to vector<6x16x4xbf16>
    %15 = vector.shape_cast %14 : vector<6x16x4xbf16> to vector<96x4xbf16>
    %c1_10 = arith.constant 1 : index
    %c0_11 = arith.constant 0 : index
    %c0_12 = arith.constant 0 : index
    %16 = vector.load %arg3[%c1_10, %c0_11, %c0_12] : memref<9x4x128xbf16, #tpu.memory_space<vmem>>, vector<1x4x128xbf16>
    %17 = vector.shape_cast %16 : vector<1x4x128xbf16> to vector<4x128xbf16>
    %cst_13 = arith.constant dense<0.000000e+00> : vector<96x128xf32>
    %18 = tpu.matmul %15, %17, %cst_13 {dimension_numbers = #tpu.dot_dimension_numbers<[1], [0], [0], [1], [0, 0, 1, 1], [], []>} : vector<96x4xbf16>, vector<4x128xbf16>, vector<96x128xf32> -> vector<96x128xf32>
    %c0_14 = arith.constant 0 : index
    %c0_15 = arith.constant 0 : index
    %19 = vector.load %arg11[%c0_14, %c0_15] : memref<96x128xf32, #tpu.memory_space<vmem>>, vector<96x128xf32>
    %20 = arith.addf %19, %18 : vector<96x128xf32>
    %c0_16 = arith.constant 0 : index
    %c0_17 = arith.constant 0 : index
    %21 = vector.load %arg11[%c0_16, %c0_17] : memref<96x128xf32, #tpu.memory_space<vmem>>, vector<96x128xf32>
    tpu.vector_store %arg11[%c0_16, %c0_17], %20 {strides = array<i32>} : memref<96x128xf32, #tpu.memory_space<vmem>>, vector<96x128xf32>,
    %c0_i32_18 = arith.constant 0 : i32
    %22 = arith.addi %1, %c0_i32_18 : i32
    %c0_19 = arith.constant 0 : index
    %23 = arith.index_cast %22 : i32 to index
    %c2 = arith.constant 2 : index
    %c0_20 = arith.constant 0 : index
    %24 = vector.load %arg2[%c0_19, %23, %c2, %c0_20] : memref<1x20x18x4xbf16, #tpu.memory_space<vmem>>, vector<1x6x16x4xbf16>
    %25 = vector.shape_cast %24 : vector<1x6x16x4xbf16> to vector<6x16x4xbf16>
    %26 = vector.shape_cast %25 : vector<6x16x4xbf16> to vector<96x4xbf16>
    %c2_21 = arith.constant 2 : index
    %c0_22 = arith.constant 0 : index
    %c0_23 = arith.constant 0 : index
    %27 = vector.load %arg3[%c2_21, %c0_22, %c0_23] : memref<9x4x128xbf16, #tpu.memory_space<vmem>>, vector<1x4x128xbf16>
    %28 = vector.shape_cast %27 : vector<1x4x128xbf16> to vector<4x128xbf16>
    %cst_24 = arith.constant dense<0.000000e+00> : vector<96x128xf32>
    %29 = tpu.matmul %26, %28, %cst_24 {dimension_numbers = #tpu.dot_dimension_numbers<[1], [0], [0], [1], [0, 0, 1, 1], [], []>} : vector<96x4xbf16>, vector<4x128xbf16>, vector<96x128xf32> -> vector<96x128xf32>
    %c0_25 = arith.constant 0 : index
    %c0_26 = arith.constant 0 : index
    %30 = vector.load %arg11[%c0_25, %c0_26] : memref<96x128xf32, #tpu.memory_space<vmem>>, vector<96x128xf32>
    %31 = arith.addf %30, %29 : vector<96x128xf32>
    %c0_27 = arith.constant 0 : index
    %c0_28 = arith.constant 0 : index
    %32 = vector.load %arg11[%c0_27, %c0_28] : memref<96x128xf32, #tpu.memory_space<vmem>>, vector<96x128xf32>
    tpu.vector_store %arg11[%c0_27, %c0_28], %31 {strides = array<i32>} : memref<96x128xf32, #tpu.memory_space<vmem>>, vector<96x128xf32>,
    %c1_i32 = arith.constant 1 : i32
    %33 = arith.addi %1, %c1_i32 : i32
    %c0_29 = arith.constant 0 : index
    %34 = arith.index_cast %33 : i32 to index
    %c0_30 = arith.constant 0 : index
    %c0_31 = arith.constant 0 : index
    %35 = vector.load %arg2[%c0_29, %34, %c0_30, %c0_31] : memref<1x20x18x4xbf16, #tpu.memory_space<vmem>>, vector<1x6x16x4xbf16>
    %36 = vector.shape_cast %35 : vector<1x6x16x4xbf16> to vector<6x16x4xbf16>
    %37 = vector.shape_cast %36 : vector<6x16x4xbf16> to vector<96x4xbf16>
    %c3 = arith.constant 3 : index
    %c0_32 = arith.constant 0 : index
    %c0_33 = arith.constant 0 : index
    %38 = vector.load %arg3[%c3, %c0_32, %c0_33] : memref<9x4x128xbf16, #tpu.memory_space<vmem>>, vector<1x4x128xbf16>
    %39 = vector.shape_cast %38 : vector<1x4x128xbf16> to vector<4x128xbf16>
    %cst_34 = arith.constant dense<0.000000e+00> : vector<96x128xf32>
    %40 = tpu.matmul %37, %39, %cst_34 {dimension_numbers = #tpu.dot_dimension_numbers<[1], [0], [0], [1], [0, 0, 1, 1], [], []>} : vector<96x4xbf16>, vector<4x128xbf16>, vector<96x128xf32> -> vector<96x128xf32>
    %c0_35 = arith.constant 0 : index
    %c0_36 = arith.constant 0 : index
    %41 = vector.load %arg11[%c0_35, %c0_36] : memref<96x128xf32, #tpu.memory_space<vmem>>, vector<96x128xf32>
    %42 = arith.addf %41, %40 : vector<96x128xf32>
    %c0_37 = arith.constant 0 : index
    %c0_38 = arith.constant 0 : index
    %43 = vector.load %arg11[%c0_37, %c0_38] : memref<96x128xf32, #tpu.memory_space<vmem>>, vector<96x128xf32>
    tpu.vector_store %arg11[%c0_37, %c0_38], %42 {strides = array<i32>} : memref<96x128xf32, #tpu.memory_space<vmem>>, vector<96x128xf32>,
    %c1_i32_39 = arith.constant 1 : i32
    %44 = arith.addi %1, %c1_i32_39 : i32
    %c0_40 = arith.constant 0 : index
    %45 = arith.index_cast %44 : i32 to index
    %c1_41 = arith.constant 1 : index
    %c0_42 = arith.constant 0 : index
    %46 = vector.load %arg2[%c0_40, %45, %c1_41, %c0_42] : memref<1x20x18x4xbf16, #tpu.memory_space<vmem>>, vector<1x6x16x4xbf16>
    %47 = vector.shape_cast %46 : vector<1x6x16x4xbf16> to vector<6x16x4xbf16>
    %48 = vector.shape_cast %47 : vector<6x16x4xbf16> to vector<96x4xbf16>
    %c4 = arith.constant 4 : index
    %c0_43 = arith.constant 0 : index
    %c0_44 = arith.constant 0 : index
    %49 = vector.load %arg3[%c4, %c0_43, %c0_44] : memref<9x4x128xbf16, #tpu.memory_space<vmem>>, vector<1x4x128xbf16>
    %50 = vector.shape_cast %49 : vector<1x4x128xbf16> to vector<4x128xbf16>
    %cst_45 = arith.constant dense<0.000000e+00> : vector<96x128xf32>
    %51 = tpu.matmul %48, %50, %cst_45 {dimension_numbers = #tpu.dot_dimension_numbers<[1], [0], [0], [1], [0, 0, 1, 1], [], []>} : vector<96x4xbf16>, vector<4x128xbf16>, vector<96x128xf32> -> vector<96x128xf32>
    %c0_46 = arith.constant 0 : index
    %c0_47 = arith.constant 0 : index
    %52 = vector.load %arg11[%c0_46, %c0_47] : memref<96x128xf32, #tpu.memory_space<vmem>>, vector<96x128xf32>
    %53 = arith.addf %52, %51 : vector<96x128xf32>
    %c0_48 = arith.constant 0 : index
    %c0_49 = arith.constant 0 : index
    %54 = vector.load %arg11[%c0_48, %c0_49] : memref<96x128xf32, #tpu.memory_space<vmem>>, vector<96x128xf32>
    tpu.vector_store %arg11[%c0_48, %c0_49], %53 {strides = array<i32>} : memref<96x128xf32, #tpu.memory_space<vmem>>, vector<96x128xf32>,
    %c1_i32_50 = arith.constant 1 : i32
    %55 = arith.addi %1, %c1_i32_50 : i32
    %c0_51 = arith.constant 0 : index
    %56 = arith.index_cast %55 : i32 to index
    %c2_52 = arith.constant 2 : index
    %c0_53 = arith.constant 0 : index
    %57 = vector.load %arg2[%c0_51, %56, %c2_52, %c0_53] : memref<1x20x18x4xbf16, #tpu.memory_space<vmem>>, vector<1x6x16x4xbf16>
    %58 = vector.shape_cast %57 : vector<1x6x16x4xbf16> to vector<6x16x4xbf16>
    %59 = vector.shape_cast %58 : vector<6x16x4xbf16> to vector<96x4xbf16>
    %c5 = arith.constant 5 : index
    %c0_54 = arith.constant 0 : index
    %c0_55 = arith.constant 0 : index
    %60 = vector.load %arg3[%c5, %c0_54, %c0_55] : memref<9x4x128xbf16, #tpu.memory_space<vmem>>, vector<1x4x128xbf16>
    %61 = vector.shape_cast %60 : vector<1x4x128xbf16> to vector<4x128xbf16>
    %cst_56 = arith.constant dense<0.000000e+00> : vector<96x128xf32>
    %62 = tpu.matmul %59, %61, %cst_56 {dimension_numbers = #tpu.dot_dimension_numbers<[1], [0], [0], [1], [0, 0, 1, 1], [], []>} : vector<96x4xbf16>, vector<4x128xbf16>, vector<96x128xf32> -> vector<96x128xf32>
    %c0_57 = arith.constant 0 : index
    %c0_58 = arith.constant 0 : index
    %63 = vector.load %arg11[%c0_57, %c0_58] : memref<96x128xf32, #tpu.memory_space<vmem>>, vector<96x128xf32>
    %64 = arith.addf %63, %62 : vector<96x128xf32>
    %c0_59 = arith.constant 0 : index
    %c0_60 = arith.constant 0 : index
    %65 = vector.load %arg11[%c0_59, %c0_60] : memref<96x128xf32, #tpu.memory_space<vmem>>, vector<96x128xf32>
    tpu.vector_store %arg11[%c0_59, %c0_60], %64 {strides = array<i32>} : memref<96x128xf32, #tpu.memory_space<vmem>>, vector<96x128xf32>,
    %c2_i32 = arith.constant 2 : i32
    %66 = arith.addi %1, %c2_i32 : i32
    %c0_61 = arith.constant 0 : index
    %67 = arith.index_cast %66 : i32 to index
    %c0_62 = arith.constant 0 : index
    %c0_63 = arith.constant 0 : index
    %68 = vector.load %arg2[%c0_61, %67, %c0_62, %c0_63] : memref<1x20x18x4xbf16, #tpu.memory_space<vmem>>, vector<1x6x16x4xbf16>
    %69 = vector.shape_cast %68 : vector<1x6x16x4xbf16> to vector<6x16x4xbf16>
    %70 = vector.shape_cast %69 : vector<6x16x4xbf16> to vector<96x4xbf16>
    %c6 = arith.constant 6 : index
    %c0_64 = arith.constant 0 : index
    %c0_65 = arith.constant 0 : index
    %71 = vector.load %arg3[%c6, %c0_64, %c0_65] : memref<9x4x128xbf16, #tpu.memory_space<vmem>>, vector<1x4x128xbf16>
    %72 = vector.shape_cast %71 : vector<1x4x128xbf16> to vector<4x128xbf16>
    %cst_66 = arith.constant dense<0.000000e+00> : vector<96x128xf32>
    %73 = tpu.matmul %70, %72, %cst_66 {dimension_numbers = #tpu.dot_dimension_numbers<[1], [0], [0], [1], [0, 0, 1, 1], [], []>} : vector<96x4xbf16>, vector<4x128xbf16>, vector<96x128xf32> -> vector<96x128xf32>
    %c0_67 = arith.constant 0 : index
    %c0_68 = arith.constant 0 : index
    %74 = vector.load %arg11[%c0_67, %c0_68] : memref<96x128xf32, #tpu.memory_space<vmem>>, vector<96x128xf32>
    %75 = arith.addf %74, %73 : vector<96x128xf32>
    %c0_69 = arith.constant 0 : index
    %c0_70 = arith.constant 0 : index
    %76 = vector.load %arg11[%c0_69, %c0_70] : memref<96x128xf32, #tpu.memory_space<vmem>>, vector<96x128xf32>
    tpu.vector_store %arg11[%c0_69, %c0_70], %75 {strides = array<i32>} : memref<96x128xf32, #tpu.memory_space<vmem>>, vector<96x128xf32>,
    %c2_i32_71 = arith.constant 2 : i32
    %77 = arith.addi %1, %c2_i32_71 : i32
    %c0_72 = arith.constant 0 : index
    %78 = arith.index_cast %77 : i32 to index
    %c1_73 = arith.constant 1 : index
    %c0_74 = arith.constant 0 : index
    %79 = vector.load %arg2[%c0_72, %78, %c1_73, %c0_74] : memref<1x20x18x4xbf16, #tpu.memory_space<vmem>>, vector<1x6x16x4xbf16>
    %80 = vector.shape_cast %79 : vector<1x6x16x4xbf16> to vector<6x16x4xbf16>
    %81 = vector.shape_cast %80 : vector<6x16x4xbf16> to vector<96x4xbf16>
    %c7 = arith.constant 7 : index
    %c0_75 = arith.constant 0 : index
    %c0_76 = arith.constant 0 : index
    %82 = vector.load %arg3[%c7, %c0_75, %c0_76] : memref<9x4x128xbf16, #tpu.memory_space<vmem>>, vector<1x4x128xbf16>
    %83 = vector.shape_cast %82 : vector<1x4x128xbf16> to vector<4x128xbf16>
    %cst_77 = arith.constant dense<0.000000e+00> : vector<96x128xf32>
    %84 = tpu.matmul %81, %83, %cst_77 {dimension_numbers = #tpu.dot_dimension_numbers<[1], [0], [0], [1], [0, 0, 1, 1], [], []>} : vector<96x4xbf16>, vector<4x128xbf16>, vector<96x128xf32> -> vector<96x128xf32>
    %c0_78 = arith.constant 0 : index
    %c0_79 = arith.constant 0 : index
    %85 = vector.load %arg11[%c0_78, %c0_79] : memref<96x128xf32, #tpu.memory_space<vmem>>, vector<96x128xf32>
    %86 = arith.addf %85, %84 : vector<96x128xf32>
    %c0_80 = arith.constant 0 : index
    %c0_81 = arith.constant 0 : index
    %87 = vector.load %arg11[%c0_80, %c0_81] : memref<96x128xf32, #tpu.memory_space<vmem>>, vector<96x128xf32>
    tpu.vector_store %arg11[%c0_80, %c0_81], %86 {strides = array<i32>} : memref<96x128xf32, #tpu.memory_space<vmem>>, vector<96x128xf32>,
    %c2_i32_82 = arith.constant 2 : i32
    %88 = arith.addi %1, %c2_i32_82 : i32
    %c0_83 = arith.constant 0 : index
    %89 = arith.index_cast %88 : i32 to index
    %c2_84 = arith.constant 2 : index
    %c0_85 = arith.constant 0 : index
    %90 = vector.load %arg2[%c0_83, %89, %c2_84, %c0_85] : memref<1x20x18x4xbf16, #tpu.memory_space<vmem>>, vector<1x6x16x4xbf16>
    %91 = vector.shape_cast %90 : vector<1x6x16x4xbf16> to vector<6x16x4xbf16>
    %92 = vector.shape_cast %91 : vector<6x16x4xbf16> to vector<96x4xbf16>
    %c8 = arith.constant 8 : index
    %c0_86 = arith.constant 0 : index
    %c0_87 = arith.constant 0 : index
    %93 = vector.load %arg3[%c8, %c0_86, %c0_87] : memref<9x4x128xbf16, #tpu.memory_space<vmem>>, vector<1x4x128xbf16>
    %94 = vector.shape_cast %93 : vector<1x4x128xbf16> to vector<4x128xbf16>
    %cst_88 = arith.constant dense<0.000000e+00> : vector<96x128xf32>
    %95 = tpu.matmul %92, %94, %cst_88 {dimension_numbers = #tpu.dot_dimension_numbers<[1], [0], [0], [1], [0, 0, 1, 1], [], []>} : vector<96x4xbf16>, vector<4x128xbf16>, vector<96x128xf32> -> vector<96x128xf32>
    %c0_89 = arith.constant 0 : index
    %c0_90 = arith.constant 0 : index
    %96 = vector.load %arg11[%c0_89, %c0_90] : memref<96x128xf32, #tpu.memory_space<vmem>>, vector<96x128xf32>
    %97 = arith.addf %96, %95 : vector<96x128xf32>
    %c0_91 = arith.constant 0 : index
    %c0_92 = arith.constant 0 : index
    %98 = vector.load %arg11[%c0_91, %c0_92] : memref<96x128xf32, #tpu.memory_space<vmem>>, vector<96x128xf32>
    tpu.vector_store %arg11[%c0_91, %c0_92], %97 {strides = array<i32>} : memref<96x128xf32, #tpu.memory_space<vmem>>, vector<96x128xf32>,
    %cst_93 = arith.constant 0.000000e+00 : f32
    %99 = vector.broadcast %cst_93 : f32 to vector<6x18x128xf32>
    %c0_94 = arith.constant 0 : index
    %c0_95 = arith.constant 0 : index
    %c0_96 = arith.constant 0 : index
    %100 = vector.load %arg10[%c0_94, %c0_95, %c0_96] : memref<6x18x128xf32, #tpu.memory_space<vmem>>, vector<6x18x128xf32>
    tpu.vector_store %arg10[%c0_94, %c0_95, %c0_96], %99 {strides = array<i32>} : memref<6x18x128xf32, #tpu.memory_space<vmem>>, vector<6x18x128xf32>,
    %c0_97 = arith.constant 0 : index
    %c0_98 = arith.constant 0 : index
    %101 = vector.load %arg11[%c0_97, %c0_98] : memref<96x128xf32, #tpu.memory_space<vmem>>, vector<96x128xf32>
    %c0_99 = arith.constant 0 : index
    %c0_100 = arith.constant 0 : index
    %102 = vector.load %arg6[%c0_99, %c0_100] : memref<1x128xf32, #tpu.memory_space<vmem>>, vector<1x128xf32>
    %103 = vector.broadcast %102 : vector<1x128xf32> to vector<96x128xf32>
    %104 = arith.addf %101, %103 : vector<96x128xf32>
    %cst_101 = arith.constant 0.000000e+00 : f32
    %105 = vector.broadcast %cst_101 : f32 to vector<96x128xf32>
    %106 = arith.maximumf %104, %105 : vector<96x128xf32>
    %107 = vector.shape_cast %106 : vector<96x128xf32> to vector<6x16x128xf32>
    %c0_102 = arith.constant 0 : index
    %c1_103 = arith.constant 1 : index
    %c0_104 = arith.constant 0 : index
    %108 = vector.load %arg10[%c0_102, %c1_103, %c0_104] : memref<6x18x128xf32, #tpu.memory_space<vmem>>, vector<6x16x128xf32>
    tpu.vector_store %arg10[%c0_102, %c1_103, %c0_104], %107 {strides = array<i32>} : memref<6x18x128xf32, #tpu.memory_space<vmem>>, vector<6x16x128xf32>,
    %c0_i32_105 = arith.constant 0 : i32
    %109 = arith.cmpi eq, %arg1, %c0_i32_105 : i32
    %110 = arith.extui %109 : i1 to i32
    %c0_i32_106 = arith.constant 0 : i32
    %111 = arith.cmpi ne, %110, %c0_i32_106 : i32
    scf.if %111 {
      %cst_224 = arith.constant 0.000000e+00 : f32
      %217 = vector.broadcast %cst_224 : f32 to vector<18x128xf32>
      %c0_225 = arith.constant 0 : index
      %c0_226 = arith.constant 0 : index
      %c0_227 = arith.constant 0 : index
      %218 = vector.load %arg10[%c0_225, %c0_226, %c0_227] : memref<6x18x128xf32, #tpu.memory_space<vmem>>, vector<1x18x128xf32>
      %219 = vector.shape_cast %218 : vector<1x18x128xf32> to vector<18x128xf32>
      %220 = vector.shape_cast %217 : vector<18x128xf32> to vector<1x18x128xf32>
      tpu.vector_store %arg10[%c0_225, %c0_226, %c0_227], %220 {strides = array<i32>} : memref<6x18x128xf32, #tpu.memory_space<vmem>>, vector<1x18x128xf32>,
    } else {
    }
    %c3_i32 = arith.constant 3 : i32
    %112 = arith.cmpi eq, %arg1, %c3_i32 : i32
    %113 = arith.extui %112 : i1 to i32
    %c0_i32_107 = arith.constant 0 : i32
    %114 = arith.cmpi ne, %113, %c0_i32_107 : i32
    scf.if %114 {
      %cst_224 = arith.constant 0.000000e+00 : f32
      %217 = vector.broadcast %cst_224 : f32 to vector<18x128xf32>
      %c5_225 = arith.constant 5 : index
      %c0_226 = arith.constant 0 : index
      %c0_227 = arith.constant 0 : index
      %218 = vector.load %arg10[%c5_225, %c0_226, %c0_227] : memref<6x18x128xf32, #tpu.memory_space<vmem>>, vector<1x18x128xf32>
      %219 = vector.shape_cast %218 : vector<1x18x128xf32> to vector<18x128xf32>
      %220 = vector.shape_cast %217 : vector<18x128xf32> to vector<1x18x128xf32>
      tpu.vector_store %arg10[%c5_225, %c0_226, %c0_227], %220 {strides = array<i32>} : memref<6x18x128xf32, #tpu.memory_space<vmem>>, vector<1x18x128xf32>,
    } else {
    }
    %c0_108 = arith.constant 0 : index
    %c0_109 = arith.constant 0 : index
    %c0_110 = arith.constant 0 : index
    %115 = vector.load %arg10[%c0_108, %c0_109, %c0_110] : memref<6x18x128xf32, #tpu.memory_space<vmem>>, vector<4x16x128xf32>
    %116 = arith.truncf %115 : vector<4x16x128xf32> to vector<4x16x128xbf16>
    %117 = vector.shape_cast %116 : vector<4x16x128xbf16> to vector<64x128xbf16>
    %c0_111 = arith.constant 0 : index
    %c0_112 = arith.constant 0 : index
    %c0_113 = arith.constant 0 : index
    %118 = vector.load %arg5[%c0_111, %c0_112, %c0_113] : memref<9x128x128xbf16, #tpu.memory_space<vmem>>, vector<1x128x128xbf16>
    %119 = vector.shape_cast %118 : vector<1x128x128xbf16> to vector<128x128xbf16>
    %cst_114 = arith.constant dense<0.000000e+00> : vector<64x128xf32>
    %120 = tpu.matmul %117, %119, %cst_114 {dimension_numbers = #tpu.dot_dimension_numbers<[1], [0], [0], [1], [0, 0, 1, 1], [], []>} : vector<64x128xbf16>, vector<128x128xbf16>, vector<64x128xf32> -> vector<64x128xf32>
    %c0_115 = arith.constant 0 : index
    %c0_116 = arith.constant 0 : index
    %121 = vector.load %arg12[%c0_115, %c0_116] : memref<64x128xf32, #tpu.memory_space<vmem>>, vector<64x128xf32>
    tpu.vector_store %arg12[%c0_115, %c0_116], %120 {strides = array<i32>} : memref<64x128xf32, #tpu.memory_space<vmem>>, vector<64x128xf32>,
    %c0_117 = arith.constant 0 : index
    %c1_118 = arith.constant 1 : index
    %c0_119 = arith.constant 0 : index
    %122 = vector.load %arg10[%c0_117, %c1_118, %c0_119] : memref<6x18x128xf32, #tpu.memory_space<vmem>>, vector<4x16x128xf32>
    %123 = arith.truncf %122 : vector<4x16x128xf32> to vector<4x16x128xbf16>
    %124 = vector.shape_cast %123 : vector<4x16x128xbf16> to vector<64x128xbf16>
    %c1_120 = arith.constant 1 : index
    %c0_121 = arith.constant 0 : index
    %c0_122 = arith.constant 0 : index
    %125 = vector.load %arg5[%c1_120, %c0_121, %c0_122] : memref<9x128x128xbf16, #tpu.memory_space<vmem>>, vector<1x128x128xbf16>
    %126 = vector.shape_cast %125 : vector<1x128x128xbf16> to vector<128x128xbf16>
    %cst_123 = arith.constant dense<0.000000e+00> : vector<64x128xf32>
    %127 = tpu.matmul %124, %126, %cst_123 {dimension_numbers = #tpu.dot_dimension_numbers<[1], [0], [0], [1], [0, 0, 1, 1], [], []>} : vector<64x128xbf16>, vector<128x128xbf16>, vector<64x128xf32> -> vector<64x128xf32>
    %c0_124 = arith.constant 0 : index
    %c0_125 = arith.constant 0 : index
    %128 = vector.load %arg12[%c0_124, %c0_125] : memref<64x128xf32, #tpu.memory_space<vmem>>, vector<64x128xf32>
    %129 = arith.addf %128, %127 : vector<64x128xf32>
    %c0_126 = arith.constant 0 : index
    %c0_127 = arith.constant 0 : index
    %130 = vector.load %arg12[%c0_126, %c0_127] : memref<64x128xf32, #tpu.memory_space<vmem>>, vector<64x128xf32>
    tpu.vector_store %arg12[%c0_126, %c0_127], %129 {strides = array<i32>} : memref<64x128xf32, #tpu.memory_space<vmem>>, vector<64x128xf32>,
    %c0_128 = arith.constant 0 : index
    %c2_129 = arith.constant 2 : index
    %c0_130 = arith.constant 0 : index
    %131 = vector.load %arg10[%c0_128, %c2_129, %c0_130] : memref<6x18x128xf32, #tpu.memory_space<vmem>>, vector<4x16x128xf32>
    %132 = arith.truncf %131 : vector<4x16x128xf32> to vector<4x16x128xbf16>
    %133 = vector.shape_cast %132 : vector<4x16x128xbf16> to vector<64x128xbf16>
    %c2_131 = arith.constant 2 : index
    %c0_132 = arith.constant 0 : index
    %c0_133 = arith.constant 0 : index
    %134 = vector.load %arg5[%c2_131, %c0_132, %c0_133] : memref<9x128x128xbf16, #tpu.memory_space<vmem>>, vector<1x128x128xbf16>
    %135 = vector.shape_cast %134 : vector<1x128x128xbf16> to vector<128x128xbf16>
    %cst_134 = arith.constant dense<0.000000e+00> : vector<64x128xf32>
    %136 = tpu.matmul %133, %135, %cst_134 {dimension_numbers = #tpu.dot_dimension_numbers<[1], [0], [0], [1], [0, 0, 1, 1], [], []>} : vector<64x128xbf16>, vector<128x128xbf16>, vector<64x128xf32> -> vector<64x128xf32>
    %c0_135 = arith.constant 0 : index
    %c0_136 = arith.constant 0 : index
    %137 = vector.load %arg12[%c0_135, %c0_136] : memref<64x128xf32, #tpu.memory_space<vmem>>, vector<64x128xf32>
    %138 = arith.addf %137, %136 : vector<64x128xf32>
    %c0_137 = arith.constant 0 : index
    %c0_138 = arith.constant 0 : index
    %139 = vector.load %arg12[%c0_137, %c0_138] : memref<64x128xf32, #tpu.memory_space<vmem>>, vector<64x128xf32>
    tpu.vector_store %arg12[%c0_137, %c0_138], %138 {strides = array<i32>} : memref<64x128xf32, #tpu.memory_space<vmem>>, vector<64x128xf32>,
    %c1_139 = arith.constant 1 : index
    %c0_140 = arith.constant 0 : index
    %c0_141 = arith.constant 0 : index
    %140 = vector.load %arg10[%c1_139, %c0_140, %c0_141] : memref<6x18x128xf32, #tpu.memory_space<vmem>>, vector<4x16x128xf32>
    %141 = arith.truncf %140 : vector<4x16x128xf32> to vector<4x16x128xbf16>
    %142 = vector.shape_cast %141 : vector<4x16x128xbf16> to vector<64x128xbf16>
    %c3_142 = arith.constant 3 : index
    %c0_143 = arith.constant 0 : index
    %c0_144 = arith.constant 0 : index
    %143 = vector.load %arg5[%c3_142, %c0_143, %c0_144] : memref<9x128x128xbf16, #tpu.memory_space<vmem>>, vector<1x128x128xbf16>
    %144 = vector.shape_cast %143 : vector<1x128x128xbf16> to vector<128x128xbf16>
    %cst_145 = arith.constant dense<0.000000e+00> : vector<64x128xf32>
    %145 = tpu.matmul %142, %144, %cst_145 {dimension_numbers = #tpu.dot_dimension_numbers<[1], [0], [0], [1], [0, 0, 1, 1], [], []>} : vector<64x128xbf16>, vector<128x128xbf16>, vector<64x128xf32> -> vector<64x128xf32>
    %c0_146 = arith.constant 0 : index
    %c0_147 = arith.constant 0 : index
    %146 = vector.load %arg12[%c0_146, %c0_147] : memref<64x128xf32, #tpu.memory_space<vmem>>, vector<64x128xf32>
    %147 = arith.addf %146, %145 : vector<64x128xf32>
    %c0_148 = arith.constant 0 : index
    %c0_149 = arith.constant 0 : index
    %148 = vector.load %arg12[%c0_148, %c0_149] : memref<64x128xf32, #tpu.memory_space<vmem>>, vector<64x128xf32>
    tpu.vector_store %arg12[%c0_148, %c0_149], %147 {strides = array<i32>} : memref<64x128xf32, #tpu.memory_space<vmem>>, vector<64x128xf32>,
    %c1_150 = arith.constant 1 : index
    %c1_151 = arith.constant 1 : index
    %c0_152 = arith.constant 0 : index
    %149 = vector.load %arg10[%c1_150, %c1_151, %c0_152] : memref<6x18x128xf32, #tpu.memory_space<vmem>>, vector<4x16x128xf32>
    %150 = arith.truncf %149 : vector<4x16x128xf32> to vector<4x16x128xbf16>
    %151 = vector.shape_cast %150 : vector<4x16x128xbf16> to vector<64x128xbf16>
    %c4_153 = arith.constant 4 : index
    %c0_154 = arith.constant 0 : index
    %c0_155 = arith.constant 0 : index
    %152 = vector.load %arg5[%c4_153, %c0_154, %c0_155] : memref<9x128x128xbf16, #tpu.memory_space<vmem>>, vector<1x128x128xbf16>
    %153 = vector.shape_cast %152 : vector<1x128x128xbf16> to vector<128x128xbf16>
    %cst_156 = arith.constant dense<0.000000e+00> : vector<64x128xf32>
    %154 = tpu.matmul %151, %153, %cst_156 {dimension_numbers = #tpu.dot_dimension_numbers<[1], [0], [0], [1], [0, 0, 1, 1], [], []>} : vector<64x128xbf16>, vector<128x128xbf16>, vector<64x128xf32> -> vector<64x128xf32>
    %c0_157 = arith.constant 0 : index
    %c0_158 = arith.constant 0 : index
    %155 = vector.load %arg12[%c0_157, %c0_158] : memref<64x128xf32, #tpu.memory_space<vmem>>, vector<64x128xf32>
    %156 = arith.addf %155, %154 : vector<64x128xf32>
    %c0_159 = arith.constant 0 : index
    %c0_160 = arith.constant 0 : index
    %157 = vector.load %arg12[%c0_159, %c0_160] : memref<64x128xf32, #tpu.memory_space<vmem>>, vector<64x128xf32>
    tpu.vector_store %arg12[%c0_159, %c0_160], %156 {strides = array<i32>} : memref<64x128xf32, #tpu.memory_space<vmem>>, vector<64x128xf32>,
    %c1_161 = arith.constant 1 : index
    %c2_162 = arith.constant 2 : index
    %c0_163 = arith.constant 0 : index
    %158 = vector.load %arg10[%c1_161, %c2_162, %c0_163] : memref<6x18x128xf32, #tpu.memory_space<vmem>>, vector<4x16x128xf32>
    %159 = arith.truncf %158 : vector<4x16x128xf32> to vector<4x16x128xbf16>
    %160 = vector.shape_cast %159 : vector<4x16x128xbf16> to vector<64x128xbf16>
    %c5_164 = arith.constant 5 : index
    %c0_165 = arith.constant 0 : index
    %c0_166 = arith.constant 0 : index
    %161 = vector.load %arg5[%c5_164, %c0_165, %c0_166] : memref<9x128x128xbf16, #tpu.memory_space<vmem>>, vector<1x128x128xbf16>
    %162 = vector.shape_cast %161 : vector<1x128x128xbf16> to vector<128x128xbf16>
    %cst_167 = arith.constant dense<0.000000e+00> : vector<64x128xf32>
    %163 = tpu.matmul %160, %162, %cst_167 {dimension_numbers = #tpu.dot_dimension_numbers<[1], [0], [0], [1], [0, 0, 1, 1], [], []>} : vector<64x128xbf16>, vector<128x128xbf16>, vector<64x128xf32> -> vector<64x128xf32>
    %c0_168 = arith.constant 0 : index
    %c0_169 = arith.constant 0 : index
    %164 = vector.load %arg12[%c0_168, %c0_169] : memref<64x128xf32, #tpu.memory_space<vmem>>, vector<64x128xf32>
    %165 = arith.addf %164, %163 : vector<64x128xf32>
    %c0_170 = arith.constant 0 : index
    %c0_171 = arith.constant 0 : index
    %166 = vector.load %arg12[%c0_170, %c0_171] : memref<64x128xf32, #tpu.memory_space<vmem>>, vector<64x128xf32>
    tpu.vector_store %arg12[%c0_170, %c0_171], %165 {strides = array<i32>} : memref<64x128xf32, #tpu.memory_space<vmem>>, vector<64x128xf32>,
    %c2_172 = arith.constant 2 : index
    %c0_173 = arith.constant 0 : index
    %c0_174 = arith.constant 0 : index
    %167 = vector.load %arg10[%c2_172, %c0_173, %c0_174] : memref<6x18x128xf32, #tpu.memory_space<vmem>>, vector<4x16x128xf32>
    %168 = arith.truncf %167 : vector<4x16x128xf32> to vector<4x16x128xbf16>
    %169 = vector.shape_cast %168 : vector<4x16x128xbf16> to vector<64x128xbf16>
    %c6_175 = arith.constant 6 : index
    %c0_176 = arith.constant 0 : index
    %c0_177 = arith.constant 0 : index
    %170 = vector.load %arg5[%c6_175, %c0_176, %c0_177] : memref<9x128x128xbf16, #tpu.memory_space<vmem>>, vector<1x128x128xbf16>
    %171 = vector.shape_cast %170 : vector<1x128x128xbf16> to vector<128x128xbf16>
    %cst_178 = arith.constant dense<0.000000e+00> : vector<64x128xf32>
    %172 = tpu.matmul %169, %171, %cst_178 {dimension_numbers = #tpu.dot_dimension_numbers<[1], [0], [0], [1], [0, 0, 1, 1], [], []>} : vector<64x128xbf16>, vector<128x128xbf16>, vector<64x128xf32> -> vector<64x128xf32>
    %c0_179 = arith.constant 0 : index
    %c0_180 = arith.constant 0 : index
    %173 = vector.load %arg12[%c0_179, %c0_180] : memref<64x128xf32, #tpu.memory_space<vmem>>, vector<64x128xf32>
    %174 = arith.addf %173, %172 : vector<64x128xf32>
    %c0_181 = arith.constant 0 : index
    %c0_182 = arith.constant 0 : index
    %175 = vector.load %arg12[%c0_181, %c0_182] : memref<64x128xf32, #tpu.memory_space<vmem>>, vector<64x128xf32>
    tpu.vector_store %arg12[%c0_181, %c0_182], %174 {strides = array<i32>} : memref<64x128xf32, #tpu.memory_space<vmem>>, vector<64x128xf32>,
    %c2_183 = arith.constant 2 : index
    %c1_184 = arith.constant 1 : index
    %c0_185 = arith.constant 0 : index
    %176 = vector.load %arg10[%c2_183, %c1_184, %c0_185] : memref<6x18x128xf32, #tpu.memory_space<vmem>>, vector<4x16x128xf32>
    %177 = arith.truncf %176 : vector<4x16x128xf32> to vector<4x16x128xbf16>
    %178 = vector.shape_cast %177 : vector<4x16x128xbf16> to vector<64x128xbf16>
    %c7_186 = arith.constant 7 : index
    %c0_187 = arith.constant 0 : index
    %c0_188 = arith.constant 0 : index
    %179 = vector.load %arg5[%c7_186, %c0_187, %c0_188] : memref<9x128x128xbf16, #tpu.memory_space<vmem>>, vector<1x128x128xbf16>
    %180 = vector.shape_cast %179 : vector<1x128x128xbf16> to vector<128x128xbf16>
    %cst_189 = arith.constant dense<0.000000e+00> : vector<64x128xf32>
    %181 = tpu.matmul %178, %180, %cst_189 {dimension_numbers = #tpu.dot_dimension_numbers<[1], [0], [0], [1], [0, 0, 1, 1], [], []>} : vector<64x128xbf16>, vector<128x128xbf16>, vector<64x128xf32> -> vector<64x128xf32>
    %c0_190 = arith.constant 0 : index
    %c0_191 = arith.constant 0 : index
    %182 = vector.load %arg12[%c0_190, %c0_191] : memref<64x128xf32, #tpu.memory_space<vmem>>, vector<64x128xf32>
    %183 = arith.addf %182, %181 : vector<64x128xf32>
    %c0_192 = arith.constant 0 : index
    %c0_193 = arith.constant 0 : index
    %184 = vector.load %arg12[%c0_192, %c0_193] : memref<64x128xf32, #tpu.memory_space<vmem>>, vector<64x128xf32>
    tpu.vector_store %arg12[%c0_192, %c0_193], %183 {strides = array<i32>} : memref<64x128xf32, #tpu.memory_space<vmem>>, vector<64x128xf32>,
    %c2_194 = arith.constant 2 : index
    %c2_195 = arith.constant 2 : index
    %c0_196 = arith.constant 0 : index
    %185 = vector.load %arg10[%c2_194, %c2_195, %c0_196] : memref<6x18x128xf32, #tpu.memory_space<vmem>>, vector<4x16x128xf32>
    %186 = arith.truncf %185 : vector<4x16x128xf32> to vector<4x16x128xbf16>
    %187 = vector.shape_cast %186 : vector<4x16x128xbf16> to vector<64x128xbf16>
    %c8_197 = arith.constant 8 : index
    %c0_198 = arith.constant 0 : index
    %c0_199 = arith.constant 0 : index
    %188 = vector.load %arg5[%c8_197, %c0_198, %c0_199] : memref<9x128x128xbf16, #tpu.memory_space<vmem>>, vector<1x128x128xbf16>
    %189 = vector.shape_cast %188 : vector<1x128x128xbf16> to vector<128x128xbf16>
    %cst_200 = arith.constant dense<0.000000e+00> : vector<64x128xf32>
    %190 = tpu.matmul %187, %189, %cst_200 {dimension_numbers = #tpu.dot_dimension_numbers<[1], [0], [0], [1], [0, 0, 1, 1], [], []>} : vector<64x128xbf16>, vector<128x128xbf16>, vector<64x128xf32> -> vector<64x128xf32>
    %c0_201 = arith.constant 0 : index
    %c0_202 = arith.constant 0 : index
    %191 = vector.load %arg12[%c0_201, %c0_202] : memref<64x128xf32, #tpu.memory_space<vmem>>, vector<64x128xf32>
    %192 = arith.addf %191, %190 : vector<64x128xf32>
    %c0_203 = arith.constant 0 : index
    %c0_204 = arith.constant 0 : index
    %193 = vector.load %arg12[%c0_203, %c0_204] : memref<64x128xf32, #tpu.memory_space<vmem>>, vector<64x128xf32>
    tpu.vector_store %arg12[%c0_203, %c0_204], %192 {strides = array<i32>} : memref<64x128xf32, #tpu.memory_space<vmem>>, vector<64x128xf32>,
    %c2_i32_205 = arith.constant 2 : i32
    %194 = arith.addi %1, %c2_i32_205 : i32
    %c0_206 = arith.constant 0 : index
    %195 = arith.index_cast %194 : i32 to index
    %c1_207 = arith.constant 1 : index
    %c0_208 = arith.constant 0 : index
    %196 = vector.load %arg2[%c0_206, %195, %c1_207, %c0_208] : memref<1x20x18x4xbf16, #tpu.memory_space<vmem>>, vector<1x4x16x4xbf16>
    %197 = vector.shape_cast %196 : vector<1x4x16x4xbf16> to vector<4x16x4xbf16>
    %198 = vector.shape_cast %197 : vector<4x16x4xbf16> to vector<64x4xbf16>
    %c0_209 = arith.constant 0 : index
    %c0_210 = arith.constant 0 : index
    %199 = vector.load %arg4[%c0_209, %c0_210] : memref<4x128xbf16, #tpu.memory_space<vmem>>, vector<4x128xbf16>
    %cst_211 = arith.constant dense<0.000000e+00> : vector<64x128xf32>
    %200 = tpu.matmul %198, %199, %cst_211 {dimension_numbers = #tpu.dot_dimension_numbers<[1], [0], [0], [1], [0, 0, 1, 1], [], []>} : vector<64x4xbf16>, vector<4x128xbf16>, vector<64x128xf32> -> vector<64x128xf32>
    %c0_212 = arith.constant 0 : index
    %c0_213 = arith.constant 0 : index
    %201 = vector.load %arg7[%c0_212, %c0_213] : memref<1x128xf32, #tpu.memory_space<vmem>>, vector<1x128xf32>
    %202 = vector.broadcast %201 : vector<1x128xf32> to vector<64x128xf32>
    %203 = arith.addf %200, %202 : vector<64x128xf32>
    %c0_214 = arith.constant 0 : index
    %c0_215 = arith.constant 0 : index
    %204 = vector.load %arg12[%c0_214, %c0_215] : memref<64x128xf32, #tpu.memory_space<vmem>>, vector<64x128xf32>
    %c0_216 = arith.constant 0 : index
    %c0_217 = arith.constant 0 : index
    %205 = vector.load %arg8[%c0_216, %c0_217] : memref<1x128xf32, #tpu.memory_space<vmem>>, vector<1x128xf32>
    %206 = vector.broadcast %205 : vector<1x128xf32> to vector<64x128xf32>
    %207 = arith.addf %204, %206 : vector<64x128xf32>
    %cst_218 = arith.constant 0.000000e+00 : f32
    %208 = vector.broadcast %cst_218 : f32 to vector<64x128xf32>
    %209 = arith.maximumf %207, %208 : vector<64x128xf32>
    %210 = arith.addf %209, %203 : vector<64x128xf32>
    %cst_219 = arith.constant 0.000000e+00 : f32
    %211 = vector.broadcast %cst_219 : f32 to vector<64x128xf32>
    %212 = arith.maximumf %210, %211 : vector<64x128xf32>
    %213 = vector.shape_cast %212 : vector<64x128xf32> to vector<4x16x128xf32>
    %c0_220 = arith.constant 0 : index
    %c0_221 = arith.constant 0 : index
    %c0_222 = arith.constant 0 : index
    %c0_223 = arith.constant 0 : index
    %214 = vector.load %arg9[%c0_220, %c0_221, %c0_222, %c0_223] : memref<1x4x16x128xf32, #tpu.memory_space<vmem>>, vector<1x4x16x128xf32>
    %215 = vector.shape_cast %214 : vector<1x4x16x128xf32> to vector<4x16x128xf32>
    %216 = vector.shape_cast %213 : vector<4x16x128xf32> to vector<1x4x16x128xf32>
    tpu.vector_store %arg9[%c0_220, %c0_221, %c0_222, %c0_223], %216 {strides = array<i32>} : memref<1x4x16x128xf32, #tpu.memory_space<vmem>>, vector<1x4x16x128xf32>,
    return
  }
  func.func @transform_0(%arg0: i32, %arg1: i32) -> (i32, i32, i32, i32) {
    %c0_i32 = arith.constant 0 : i32
    %c0_i32_0 = arith.constant 0 : i32
    %c0_i32_1 = arith.constant 0 : i32
    %c0_i32_2 = arith.constant 0 : i32
    return %arg0, %c0_i32, %c0_i32_0, %c0_i32_1 : i32, i32, i32, i32
  }
  func.func @transform_1(%arg0: i32, %arg1: i32) -> (i32, i32, i32) {
    %c0_i32 = arith.constant 0 : i32
    %c0_i32_0 = arith.constant 0 : i32
    %c0_i32_1 = arith.constant 0 : i32
    %c0_i32_2 = arith.constant 0 : i32
    return %c0_i32, %c0_i32_0, %c0_i32_1 : i32, i32, i32
  }
  func.func @transform_2(%arg0: i32, %arg1: i32) -> (i32, i32) {
    %c0_i32 = arith.constant 0 : i32
    %c0_i32_0 = arith.constant 0 : i32
    %c0_i32_1 = arith.constant 0 : i32
    return %c0_i32, %c0_i32_0 : i32, i32
  }
  func.func @transform_3(%arg0: i32, %arg1: i32) -> (i32, i32, i32) {
    %c0_i32 = arith.constant 0 : i32
    %c0_i32_0 = arith.constant 0 : i32
    %c0_i32_1 = arith.constant 0 : i32
    %c0_i32_2 = arith.constant 0 : i32
    return %c0_i32, %c0_i32_0, %c0_i32_1 : i32, i32, i32
  }
  func.func @transform_4(%arg0: i32, %arg1: i32) -> (i32, i32) {
    %c0_i32 = arith.constant 0 : i32
    %c0_i32_0 = arith.constant 0 : i32
    %c0_i32_1 = arith.constant 0 : i32
    return %c0_i32, %c0_i32_0 : i32, i32
  }
  func.func @transform_5(%arg0: i32, %arg1: i32) -> (i32, i32) {
    %c0_i32 = arith.constant 0 : i32
    %c0_i32_0 = arith.constant 0 : i32
    %c0_i32_1 = arith.constant 0 : i32
    return %c0_i32, %c0_i32_0 : i32, i32
  }
  func.func @transform_6(%arg0: i32, %arg1: i32) -> (i32, i32) {
    %c0_i32 = arith.constant 0 : i32
    %c0_i32_0 = arith.constant 0 : i32
    %c0_i32_1 = arith.constant 0 : i32
    return %c0_i32, %c0_i32_0 : i32, i32
  }
  func.func @transform_7(%arg0: i32, %arg1: i32) -> (i32, i32, i32, i32) {
    %c0_i32 = arith.constant 0 : i32
    %c0_i32_0 = arith.constant 0 : i32
    %c0_i32_1 = arith.constant 0 : i32
    return %arg0, %arg1, %c0_i32, %c0_i32_0 : i32, i32, i32, i32
  }
}

</mosaic_0001>

<llo_original>
// kernel: tpu_custom_call.1
$region0: #{tpu_custom_call.1}
  #allocation0 [shape = 'u32[]', space=smem, size = 0x4, offset = 0x4, fixed_abs, tag = 'smem constant byte address 0x4 - core index']
  #allocation1 [shape = 'u32[144,128]{1,0:T(1,128)}', space=vmem, size = 0x12000, scoped, tag = 'internal scratch']
  #allocation2 [shape = 'f32[6,18,128]{2,1,0:T(8,128)}', space=vmem, size = 0x12000, scoped, tag = 'scratch operand']
  #allocation3 [shape = 'f32[96,128]{1,0:T(8,128)}', space=vmem, size = 0xc000, scoped, tag = 'scratch operand']
  #allocation4 [shape = 'f32[64,128]{1,0:T(8,128)}', space=vmem, size = 0x8000, scoped, tag = 'scratch operand']
  %s0 = inlined_call_operand.vmem [shape: bf16[2,20,18,4], index: 0, kind: input, shape index: {}]
  %s1 = inlined_call_operand.vmem [shape: bf16[9,4,128], index: 1, kind: input, shape index: {}]
  %s2 = inlined_call_operand.vmem [shape: bf16[4,128], index: 2, kind: input, shape index: {}]
  %s3 = inlined_call_operand.hbm [shape: bf16[9,128,128], index: 3, kind: input, shape index: {}]
  %s4 = inlined_call_operand.vmem [shape: f32[1,128], index: 4, kind: input, shape index: {}]
  %s5 = inlined_call_operand.vmem [shape: f32[1,128], index: 5, kind: input, shape index: {}]
  %s6 = inlined_call_operand.vmem [shape: f32[1,128], index: 6, kind: input, shape index: {}]
  %s7 = inlined_call_operand.hbm [shape: f32[2,16,16,128], index: 7, kind: output, shape index: {}]
  %s8 = sld [smem:[#allocation0]]
  $region73: #{tpu_custom_call.1} parent=0
    _
  %s10 = ssub.s32 1, %s8
  %s11 = scalar_select 0, %s10, %s8
  $region1: #{tpu_custom_call.1} parent=0
    #allocation5 [shape = 'u8[294912]{0}', space=vmem, size = 0x48000, scoped, tag = 'input window, operand 3, single buffered']
    #allocation6 [shape = 's32[2]{0}', space=sflag, size = 0x8, scoped, tag = 'scoped memory for tpu_custom_call.1']
    #allocation7 [shape = 's32[2]{0}', space=sflag, size = 0x8, scoped, tag = 'scoped memory for tpu_custom_call.1']
    #allocation8 [shape = 'u8[65536]{0}', space=vmem, size = 0x10000, scoped, tag = 'output window, operand 0']
    %12 = vsyncpa [#allocation6], 0
    %13 = vsyncpa [#allocation7], 0
    %s14 = scalar_lea.sflag [#allocation7], 1
    %15 = vsyncpa %s14, 0
    loop: start=0, step=1, limit=10
    $region2: #{tpu_custom_call.1} parent=1 // loop_pre_header
      _
    $region3: #{tpu_custom_call.1} parent=1 // loop_header
      %s17 = sphi 0, %s21
      %p18 = scmp.ge.s32.totalorder %s17, 10
      %s24 = sphi 0, %s36
      %s25 = sphi 0, %s32
      %s26 = sphi 0, %s24
      %s27 = sphi 0, %s25
      %s28 = sphi 0, %s26
      %s29 = sphi 0, %s27
      %s39 = sphi 0, %s41
      %s42 = sphi 0, %s39
      %s43 = sphi 0, %s42
      %s59 = sphi 0, %s43
      %s63 = sphi 0, %s63
      %s65 = sphi 0, %s63
      %s66 = sphi 0, %s65
      %s80 = sphi 0, %s66
      %s84 = sphi 0, %s84
      %s86 = sphi 0, %s84
      %s87 = sphi 0, %s86
      %s101 = sphi 0, %s87
      %s105 = sphi 0, %s105
      %s107 = sphi 0, %s105
      %s108 = sphi 0, %s107
      %s122 = sphi 0, %s108
      %s126 = sphi 0, %s126
      %s128 = sphi 0, %s126
      %s129 = sphi 0, %s128
      %s143 = sphi 0, %s129
      %s147 = sphi 0, %s147
      %s149 = sphi 0, %s147
      %s150 = sphi 0, %s149
      %s164 = sphi 0, %s150
      %s168 = sphi 0, %s168
      %s170 = sphi 0, %s168
      %s171 = sphi 0, %s170
      %s185 = sphi 0, %s171
      %s193 = sphi 0, %s195
      %s196 = sphi 0, %s193
      %s197 = sphi 0, %s196
      %s213 = sphi 0, %s197
    $region4: #{tpu_custom_call.1} parent=1 // loop_header_branch
      %20 = sbr.rel (%p18) target = $region8
    $region5: #{tpu_custom_call.1} parent=1 // loop_body
      %s22 = ssub.s32 %s17, 1
      %s23 = ssub.s32 %s17, 2
      %s30 = sadd.s32 1, %s25
      %p31 = scmp.ge.s32.totalorder %s30, 4
      %s32 = scalar_select %p31, 0, %s30
      %s33 = sadd.s32 1, %s24
      %s34 = scalar_select %p31, %s33, %s24
      %p35 = scmp.ge.s32.totalorder %s34, 2
      %s36 = scalar_select %p35, 0, %s34
      %s37 = ssub.s32 %s24, %s36
      %p38 = scmp.eq.s32.totalorder %s37, 0
      %s40 = sadd.s32 %s39, 1
      %s41 = scalar_select %p38, %s39, %s40
      %p44 = pneg %p38
      %p45 = scmp.eq.s32.totalorder %s17, 7
      %p46 = por %p44, %p45
      %p47 = scmp.ne.s32.totalorder %s39, %s42
      %p48 = scmp.eq.s32.totalorder %s17, 0
      %p49 = por %p47, %p48
      %p50 = scmp.ne.s32.totalorder %s39, %s42
      %p51 = scmp.eq.s32.totalorder %s22, 7
      %p52 = por %p50, %p51
      %p53 = scmp.ne.s32.totalorder %s42, %s43
      %p54 = scmp.eq.s32.totalorder %s22, 0
      %p55 = por %p53, %p54
      %p56 = scmp.ne.s32.totalorder %s42, %s43
      %p57 = scmp.eq.s32.totalorder %s23, 7
      %p58 = por %p56, %p57
      %p60 = scmp.ne.s32.totalorder %s43, %s59
      %p61 = scmp.eq.s32.totalorder %s23, 0
      %p62 = por %p60, %p61
      %s64 = sadd.s32 %s63, 1
      %p67 = scmp.eq.s32.totalorder %s17, 7
      %p68 = scmp.ne.s32.totalorder %s63, %s65
      %p69 = scmp.eq.s32.totalorder %s17, 0
      %p70 = por %p68, %p69
      %p71 = scmp.ne.s32.totalorder %s63, %s65
      %p72 = scmp.eq.s32.totalorder %s22, 7
      %p73 = por %p71, %p72
      %p74 = scmp.ne.s32.totalorder %s65, %s66
      %p75 = scmp.eq.s32.totalorder %s22, 0
      %p76 = por %p74, %p75
      %p77 = scmp.ne.s32.totalorder %s65, %s66
      %p78 = scmp.eq.s32.totalorder %s23, 7
      %p79 = por %p77, %p78
      %p81 = scmp.ne.s32.totalorder %s66, %s80
      %p82 = scmp.eq.s32.totalorder %s23, 0
      %p83 = por %p81, %p82
      %s85 = sadd.s32 %s84, 1
      %p88 = scmp.eq.s32.totalorder %s17, 7
      %p89 = scmp.ne.s32.totalorder %s84, %s86
      %p90 = scmp.eq.s32.totalorder %s17, 0
      %p91 = por %p89, %p90
      %p92 = scmp.ne.s32.totalorder %s84, %s86
      %p93 = scmp.eq.s32.totalorder %s22, 7
      %p94 = por %p92, %p93
      %p95 = scmp.ne.s32.totalorder %s86, %s87
      %p96 = scmp.eq.s32.totalorder %s22, 0
      %p97 = por %p95, %p96
      %p98 = scmp.ne.s32.totalorder %s86, %s87
      %p99 = scmp.eq.s32.totalorder %s23, 7
      %p100 = por %p98, %p99
      %p102 = scmp.ne.s32.totalorder %s87, %s101
      %p103 = scmp.eq.s32.totalorder %s23, 0
      %p104 = por %p102, %p103
      %s106 = sadd.s32 %s105, 1
      %p109 = scmp.eq.s32.totalorder %s17, 7
      %p110 = scmp.ne.s32.totalorder %s105, %s107
      %p111 = scmp.eq.s32.totalorder %s17, 0
      %p112 = por %p110, %p111
      %p113 = scmp.ne.s32.totalorder %s105, %s107
      %p114 = scmp.eq.s32.totalorder %s22, 7
      %p115 = por %p113, %p114
      %p116 = scmp.ne.s32.totalorder %s107, %s108
      %p117 = scmp.eq.s32.totalorder %s22, 0
      %p118 = por %p116, %p117
      %p119 = scmp.ne.s32.totalorder %s107, %s108
      %p120 = scmp.eq.s32.totalorder %s23, 7
      %p121 = por %p119, %p120
      %p123 = scmp.ne.s32.totalorder %s108, %s122
      %p124 = scmp.eq.s32.totalorder %s23, 0
      %p125 = por %p123, %p124
      %s127 = sadd.s32 %s126, 1
      %p130 = scmp.eq.s32.totalorder %s17, 7
      %p131 = scmp.ne.s32.totalorder %s126, %s128
      %p132 = scmp.eq.s32.totalorder %s17, 0
      %p133 = por %p131, %p132
      %p134 = scmp.ne.s32.totalorder %s126, %s128
      %p135 = scmp.eq.s32.totalorder %s22, 7
      %p136 = por %p134, %p135
      %p137 = scmp.ne.s32.totalorder %s128, %s129
      %p138 = scmp.eq.s32.totalorder %s22, 0
      %p139 = por %p137, %p138
      %p140 = scmp.ne.s32.totalorder %s128, %s129
      %p141 = scmp.eq.s32.totalorder %s23, 7
      %p142 = por %p140, %p141
      %p144 = scmp.ne.s32.totalorder %s129, %s143
      %p145 = scmp.eq.s32.totalorder %s23, 0
      %p146 = por %p144, %p145
      %s148 = sadd.s32 %s147, 1
      %p151 = scmp.eq.s32.totalorder %s17, 7
      %p152 = scmp.ne.s32.totalorder %s147, %s149
      %p153 = scmp.eq.s32.totalorder %s17, 0
      %p154 = por %p152, %p153
      %p155 = scmp.ne.s32.totalorder %s147, %s149
      %p156 = scmp.eq.s32.totalorder %s22, 7
      %p157 = por %p155, %p156
      %p158 = scmp.ne.s32.totalorder %s149, %s150
      %p159 = scmp.eq.s32.totalorder %s22, 0
      %p160 = por %p158, %p159
      %p161 = scmp.ne.s32.totalorder %s149, %s150
      %p162 = scmp.eq.s32.totalorder %s23, 7
      %p163 = por %p161, %p162
      %p165 = scmp.ne.s32.totalorder %s150, %s164
      %p166 = scmp.eq.s32.totalorder %s23, 0
      %p167 = por %p165, %p166
      %s169 = sadd.s32 %s168, 1
      %p172 = scmp.eq.s32.totalorder %s17, 7
      %p173 = scmp.ne.s32.totalorder %s168, %s170
      %p174 = scmp.eq.s32.totalorder %s17, 0
      %p175 = por %p173, %p174
      %p176 = scmp.ne.s32.totalorder %s168, %s170
      %p177 = scmp.eq.s32.totalorder %s22, 7
      %p178 = por %p176, %p177
      %p179 = scmp.ne.s32.totalorder %s170, %s171
      %p180 = scmp.eq.s32.totalorder %s22, 0
      %p181 = por %p179, %p180
      %p182 = scmp.ne.s32.totalorder %s170, %s171
      %p183 = scmp.eq.s32.totalorder %s23, 7
      %p184 = por %p182, %p183
      %p186 = scmp.ne.s32.totalorder %s171, %s185
      %p187 = scmp.eq.s32.totalorder %s23, 0
      %p188 = por %p186, %p187
      %s189 = ssub.s32 %s24, %s36
      %s190 = ssub.s32 %s25, %s32
      %s191 = sor.u32 %s189, %s190
      %p192 = scmp.eq.s32.totalorder %s191, 0
      %s194 = sadd.s32 %s193, 1
      %s195 = scalar_select %p192, %s193, %s194
      %p198 = pneg %p192
      %p199 = scmp.eq.s32.totalorder %s17, 7
      %p200 = por %p198, %p199
      %p201 = scmp.ne.s32.totalorder %s193, %s196
      %p202 = scmp.eq.s32.totalorder %s17, 0
      %p203 = por %p201, %p202
      %p204 = scmp.ne.s32.totalorder %s193, %s196
      %p205 = scmp.eq.s32.totalorder %s22, 7
      %p206 = por %p204, %p205
      %p207 = scmp.ne.s32.totalorder %s196, %s197
      %p208 = scmp.eq.s32.totalorder %s22, 0
      %p209 = por %p207, %p208
      %p210 = scmp.ne.s32.totalorder %s196, %s197
      %p211 = scmp.eq.s32.totalorder %s23, 7
      %p212 = por %p210, %p211
      %p214 = scmp.ne.s32.totalorder %s197, %s213
      %p215 = scmp.eq.s32.totalorder %s23, 0
      %p216 = por %p214, %p215
      %p217 = scmp.le.s32.totalorder 1, %s17
      %p218 = scmp.lt.s32.totalorder %s17, 9
      %p219 = pnand %p217, %p218
      %p220 = pneg %p219
      // Predicated region
      $region9: #{tpu_custom_call.1} parent=5 // pred_check
        _
      $region10: #{tpu_custom_call.1} parent=5 // pred_check_branch
        %222 = sbr.rel (%p219) target = $region12
      $region11: #{tpu_custom_call.1} parent=5 // pred_region
        %s223 = ssub.s32 %s17, 1
        // Predicated region
        $region13: #{tpu_custom_call.1} parent=11 // pred_check
          %p224 = pneg %p76
        $region14: #{tpu_custom_call.1} parent=11 // pred_check_branch
          %226 = sbr.rel (%p224) target = $region16
        $region15: #{tpu_custom_call.1} parent=11 // pred_region
          _
        $region16: #{tpu_custom_call.1} parent=11 // pred_fallthru
          _
        // Predicated region
        $region17: #{tpu_custom_call.1} parent=11 // pred_check
          %p227 = pneg %p97
        $region18: #{tpu_custom_call.1} parent=11 // pred_check_branch
          %229 = sbr.rel (%p227) target = $region20
        $region19: #{tpu_custom_call.1} parent=11 // pred_region
          _
        $region20: #{tpu_custom_call.1} parent=11 // pred_fallthru
          _
        // Predicated region
        $region21: #{tpu_custom_call.1} parent=11 // pred_check
          %p230 = pneg %p118
        $region22: #{tpu_custom_call.1} parent=11 // pred_check_branch
          %232 = sbr.rel (%p230) target = $region24
        $region23: #{tpu_custom_call.1} parent=11 // pred_region
          %s234 = ssub.s32 9216, 9216
          %235 = vsyncadd [#allocation6], %s234
          %s236 = sshll.u32 [#allocation5], 4
          %s237 = int_to_ptr.vmem [resolvable:$true] %s236
          %242 = dma.hbm_to_vmem [thread:$0]  %s3, 9216, %s237, [#allocation6], 64, 64, 4
        $region24: #{tpu_custom_call.1} parent=11 // pred_fallthru
          _
        // Predicated region
        $region25: #{tpu_custom_call.1} parent=11 // pred_check
          %p243 = pneg %p139
        $region26: #{tpu_custom_call.1} parent=11 // pred_check_branch
          %245 = sbr.rel (%p243) target = $region28
        $region27: #{tpu_custom_call.1} parent=11 // pred_region
          _
        $region28: #{tpu_custom_call.1} parent=11 // pred_fallthru
          _
        // Predicated region
        $region29: #{tpu_custom_call.1} parent=11 // pred_check
          %p246 = pneg %p160
        $region30: #{tpu_custom_call.1} parent=11 // pred_check_branch
          %248 = sbr.rel (%p246) target = $region32
        $region31: #{tpu_custom_call.1} parent=11 // pred_region
          _
        $region32: #{tpu_custom_call.1} parent=11 // pred_fallthru
          _
        // Predicated region
        $region33: #{tpu_custom_call.1} parent=11 // pred_check
          %p249 = pneg %p181
        $region34: #{tpu_custom_call.1} parent=11 // pred_check_branch
          %251 = sbr.rel (%p249) target = $region36
        $region35: #{tpu_custom_call.1} parent=11 // pred_region
          _
        $region36: #{tpu_custom_call.1} parent=11 // pred_fallthru
          _
      $region12: #{tpu_custom_call.1} parent=5 // pred_fallthru
        _
      %p252 = scmp.lt.s32.totalorder %s17, 8
      // Predicated region
      $region37: #{tpu_custom_call.1} parent=5 // pred_check
        %p253 = pneg %p252
      $region38: #{tpu_custom_call.1} parent=5 // pred_check_branch
        %255 = sbr.rel (%p253) target = $region40
      $region39: #{tpu_custom_call.1} parent=5 // pred_region
        // Predicated region
        $region41: #{tpu_custom_call.1} parent=39 // pred_check
          %p256 = pneg %p49
        $region42: #{tpu_custom_call.1} parent=39 // pred_check_branch
          %258 = sbr.rel (%p256) target = $region44
        $region43: #{tpu_custom_call.1} parent=39 // pred_region
          %p259 = scmp.lt.s32.totalorder %s24, 1
          %s260 = scalar_select %p259, %s24, 1
          %s261 = smul.addr %s260, 60
          %s262 = smul.addr %s261, 4
          %s263 = scalar_lea.vmem %s0, %s262
        $region44: #{tpu_custom_call.1} parent=39 // pred_fallthru
          _
      $region40: #{tpu_custom_call.1} parent=5 // pred_fallthru
        _
      %p264 = scmp.le.s32.totalorder 1, %s17
      %p265 = scmp.lt.s32.totalorder %s17, 9
      %p266 = pnand %p264, %p265
      %p267 = pneg %p266
      // Predicated region
      $region45: #{tpu_custom_call.1} parent=5 // pred_check
        _
      $region46: #{tpu_custom_call.1} parent=5 // pred_check_branch
        %269 = sbr.rel (%p266) target = $region48
      $region47: #{tpu_custom_call.1} parent=5 // pred_region
        %s270 = ssub.s32 %s17, 1
        // Predicated region
        $region49: #{tpu_custom_call.1} parent=47 // pred_check
          %p271 = pneg %p118
        $region50: #{tpu_custom_call.1} parent=47 // pred_check_branch
          %273 = sbr.rel (%p271) target = $region52
        $region51: #{tpu_custom_call.1} parent=47 // pred_region
          %274 = dma.done [#allocation6], 9216
        $region52: #{tpu_custom_call.1} parent=47 // pred_fallthru
          _
        %p275 = scmp.lt.s32.totalorder %s26, 1
        %s276 = scalar_select %p275, %s26, 1
        %s277 = smul.addr %s276, 60
        %s278 = smul.addr %s277, 4
        %s279 = scalar_lea.vmem %s0, %s278
        %p280 = pneg %p55
        %p281 = pneg %p52
        %p282 = pneg %p76
        %p283 = pneg %p73
        %p284 = pneg %p97
        %p285 = pneg %p94
        %p286 = pneg %p118
        %p287 = pneg %p115
        %p288 = pneg %p139
        %p289 = pneg %p136
        %p290 = pneg %p160
        %p291 = pneg %p157
        %p292 = pneg %p181
        %p293 = pneg %p178
        %p294 = pneg %p209
        %p295 = pneg %p206
        %s296 = sand.u32 %s196, 1
        %s297 = scalar_lea.sflag [#allocation7], %s296
        %s298 = sand.u32 %s196, 1
        %s299 = smul.addr %s298, 64
        %s300 = scalar_lea.vmem [#allocation8], %s299
        %p301 = scmp.lt.s32.totalorder %s26, 1
        %s302 = scalar_select %p301, %s26, 1
        %s303 = smul.addr %s302, 60
        %s304 = smul.addr %s303, 4
        %s305 = scalar_lea.vmem %s0, %s304
        %s306 = smul.u32 4, %s27
        %s308 = smul.u32 %s27, 4
        %s309 = smul.u32 %s308, 3
        %s310 = smul.addr %s309, 4
        %s311 = scalar_lea.vmem %s305, %s310
        %v312 = vld [vmem:[%s311] sm:$0xf]
        %v313 = vld [vmem:[%s311 + $0x4] sm:$0xf]
        %v314 = vld [vmem:[%s311 + $0xc] sm:$0xf]
        %v315 = vld [vmem:[%s311 + $0x10] sm:$0xf]
        %v316 = vld [vmem:[%s311 + $0x18] sm:$0xf]
        %v317 = vld [vmem:[%s311 + $0x1c] sm:$0xf]
        %v318 = vld [vmem:[%s311 + $0x24] sm:$0xf]
        %v319 = vld [vmem:[%s311 + $0x28] sm:$0xf]
        %v320 = vld [vmem:[%s311 + $0x30] sm:$0xf]
        %v321 = vld [vmem:[%s311 + $0x34] sm:$0xf]
        %v322 = vld [vmem:[%s311 + $0x3c] sm:$0xf]
        %v323 = vld [vmem:[%s311 + $0x40] sm:$0xf]
        %v324 = vld [vmem:[%s1] sm:$0x3]
        %v337 = vunpack.c.l.b16 %v312
        %v338 = vunpack.c.l.b16 %v313
        %v339 = vunpack.c.l.b16 %v314
        %v340 = vunpack.c.l.b16 %v315
        %v341 = vunpack.c.l.b16 %v316
        %v342 = vunpack.c.l.b16 %v317
        %v343 = vunpack.c.l.b16 %v318
        %v344 = vunpack.c.l.b16 %v319
        %v345 = vunpack.c.l.b16 %v320
        %v346 = vunpack.c.l.b16 %v321
        %v347 = vunpack.c.l.b16 %v322
        %v348 = vunpack.c.l.b16 %v323
        %v349 = vpack.c.b16 %v338, %v337
        %v350 = vpack.c.b16 %v340, %v339
        %v351 = vpack.c.b16 %v342, %v341
        %v352 = vpack.c.b16 %v344, %v343
        %v353 = vpack.c.b16 %v346, %v345
        %v354 = vpack.c.b16 %v348, %v347
        %vm355 = vcmask 31744
        %v357 = vsel %vm355, %v349, 0
        %v360 = vsel %vm355, %v350, 0
        %v363 = vsel %vm355, %v351, 0
        %v366 = vsel %vm355, %v352, 0
        %v369 = vsel %vm355, %v353, 0
        %v372 = vsel %vm355, %v354, 0
        %vm374 = vcmask 1041408
        %v376 = vsel %vm374, %v324, 0
        %378 = vmatprep.subr.bf16.mxu0 0
        %379 = vmatpush1.bf16.msra.mxu0 %v376
        %380 = vmatprep.subr.bf16.mxu0 0
        %381 = vmatpush1.bf16.msra.mxu0 0
        %382 = vmatprep.subr.bf16.mxu0 0
        %383 = vmatpush1.bf16.msra.mxu0 0
        %384 = vmatprep.subr.bf16.mxu0 0
        %385 = vmatpush1.bf16.msra.mxu0 0
        %386 = vmatprep.subr.bf16.mxu0 0
        %387 = vmatpush1.bf16.msra.mxu0 0
        %388 = vmatprep.subr.bf16.mxu0 0
        %389 = vmatpush1.bf16.msra.mxu0 0
        %390 = vmatprep.subr.bf16.mxu0 0
        %391 = vmatpush1.bf16.msra.mxu0 0
        %392 = vmatprep.subr.bf16.mxu0 0
        %393 = vmatpush1.bf16.msra.mxu0 0
        %394 = vmatprep.subr.bf16.mxu0 0
        %395 = vmatpush1.bf16.msra.mxu0 0
        %396 = vmatprep.subr.bf16.mxu0 0
        %397 = vmatpush1.bf16.msra.mxu0 0
        %398 = vmatprep.subr.bf16.mxu0 0
        %399 = vmatpush1.bf16.msra.mxu0 0
        %400 = vmatprep.subr.bf16.mxu0 0
        %401 = vmatpush1.bf16.msra.mxu0 0
        %402 = vmatprep.subr.bf16.mxu0 0
        %403 = vmatpush1.bf16.msra.mxu0 0
        %404 = vmatprep.subr.bf16.mxu0 0
        %405 = vmatpush1.bf16.msra.mxu0 0
        %406 = vmatprep.subr.bf16.mxu0 0
        %407 = vmatpush1.bf16.msra.mxu0 0
        %408 = vmatprep.subr.bf16.mxu0 0
        %409 = vmatpush1.bf16.msra.mxu0 0
        %410 = vmatprep.mubr.bf16.mxu0 0
        %411 = vmatmul.mubr.bf16.gmra.mrb[0].mxu0 %v357
        %v412 = vpop.f32.mrb[0].mxu0
        %v413 = vadd.f32 0.0, %v412
        %v414 = vpop.f32.mrb[0].mxu0
        %v415 = vpop.f32.mrb[0].mxu0
        %v416 = vadd.f32 0.0, %v415
        %v417 = vpop.f32.mrb[0].mxu0
        %418 = vmatprep.mubr.bf16.mxu0 0
        %419 = vmatmul.mubr.bf16.gmra.mrb[0].mxu0 %v360
        %v420 = vpop.f32.mrb[0].mxu0
        %v421 = vadd.f32 0.0, %v420
        %v422 = vpop.f32.mrb[0].mxu0
        %v423 = vpop.f32.mrb[0].mxu0
        %v424 = vadd.f32 0.0, %v423
        %v425 = vpop.f32.mrb[0].mxu0
        %426 = vmatprep.mubr.bf16.mxu0 0
        %427 = vmatmul.mubr.bf16.gmra.mrb[0].mxu0 %v363
        %v428 = vpop.f32.mrb[0].mxu0
        %v429 = vadd.f32 0.0, %v428
        %v430 = vpop.f32.mrb[0].mxu0
        %v431 = vpop.f32.mrb[0].mxu0
        %v432 = vadd.f32 0.0, %v431
        %v433 = vpop.f32.mrb[0].mxu0
        %434 = vmatprep.mubr.bf16.mxu0 0
        %435 = vmatmul.mubr.bf16.gmra.mrb[0].mxu0 %v366
        %v436 = vpop.f32.mrb[0].mxu0
        %v437 = vadd.f32 0.0, %v436
        %v438 = vpop.f32.mrb[0].mxu0
        %v439 = vpop.f32.mrb[0].mxu0
        %v440 = vadd.f32 0.0, %v439
        %v441 = vpop.f32.mrb[0].mxu0
        %442 = vmatprep.mubr.bf16.mxu0 0
        %443 = vmatmul.mubr.bf16.gmra.mrb[0].mxu0 %v369
        %v444 = vpop.f32.mrb[0].mxu0
        %v445 = vadd.f32 0.0, %v444
        %v446 = vpop.f32.mrb[0].mxu0
        %v447 = vpop.f32.mrb[0].mxu0
        %v448 = vadd.f32 0.0, %v447
        %v449 = vpop.f32.mrb[0].mxu0
        %450 = vmatprep.mubr.bf16.mxu0 0
        %451 = vmatmul.mubr.bf16.gmra.mrb[0].mxu0 %v372
        %v452 = vpop.f32.mrb[0].mxu0
        %v453 = vadd.f32 0.0, %v452
        %v454 = vpop.f32.mrb[0].mxu0
        %v455 = vpop.f32.mrb[0].mxu0
        %v456 = vadd.f32 0.0, %v455
        %v457 = vpop.f32.mrb[0].mxu0
        %458 = vdwg.mxu0
        %459 = vst [vmem:[#allocation3] sm:$0xff] %v413
        %460 = vst [vmem:[#allocation3 + $0x8] sm:$0xff] %v416
        %461 = vst [vmem:[#allocation3 + $0x10] sm:$0xff] %v421
        %462 = vst [vmem:[#allocation3 + $0x18] sm:$0xff] %v424
        %463 = vst [vmem:[#allocation3 + $0x20] sm:$0xff] %v429
        %464 = vst [vmem:[#allocation3 + $0x28] sm:$0xff] %v432
        %465 = vst [vmem:[#allocation3 + $0x30] sm:$0xff] %v437
        %466 = vst [vmem:[#allocation3 + $0x38] sm:$0xff] %v440
        %467 = vst [vmem:[#allocation3 + $0x40] sm:$0xff] %v445
        %468 = vst [vmem:[#allocation3 + $0x48] sm:$0xff] %v448
        %469 = vst [vmem:[#allocation3 + $0x50] sm:$0xff] %v453
        %470 = vst [vmem:[#allocation3 + $0x58] sm:$0xff] %v456
        %v471 = vld [vmem:[%s311] sm:$0xf]
        %v472 = vld [vmem:[%s311 + $0x4] sm:$0xf]
        %v473 = vld [vmem:[%s311 + $0x8] sm:$0x1]
        %v474 = vld [vmem:[%s311 + $0xc] sm:$0xf]
        %v475 = vld [vmem:[%s311 + $0x10] sm:$0xf]
        %v476 = vld [vmem:[%s311 + $0x14] sm:$0x1]
        %v477 = vld [vmem:[%s311 + $0x18] sm:$0xf]
        %v478 = vld [vmem:[%s311 + $0x1c] sm:$0xf]
        %v479 = vld [vmem:[%s311 + $0x20] sm:$0x1]
        %v480 = vld [vmem:[%s311 + $0x24] sm:$0xf]
        %v481 = vld [vmem:[%s311 + $0x28] sm:$0xf]
        %v482 = vld [vmem:[%s311 + $0x2c] sm:$0x1]
        %v483 = vld [vmem:[%s311 + $0x30] sm:$0xf]
        %v484 = vld [vmem:[%s311 + $0x34] sm:$0xf]
        %v485 = vld [vmem:[%s311 + $0x38] sm:$0x1]
        %v486 = vld [vmem:[%s311 + $0x3c] sm:$0xf]
        %v487 = vld [vmem:[%s311 + $0x40] sm:$0xf]
        %v488 = vld [vmem:[%s311 + $0x44] sm:$0x1]
        %vm489 = vsmask.f32 3328
        %vm490 = vsmask.f32 7440
        %vm491 = vmor %vm489, %vm490
        %v493 = vshrl.u32 %v471, 16
        %v495 = vrot.slane %v493, 4
        %v496 = vshll.u32 %v471, 16
        %v498 = vrot.slane %v496, 5
        %v499 = vor.u32 %v495, %v498
        %v500 = vrot.slane %v499, 4
        %v502 = vshll.u32 %v472, 16
        %v504 = vrot.slane %v502, 5
        %v505 = vsel %vm491, %v500, %v504
        %v506 = vshrl.u32 %v472, 16
        %v508 = vrot.slane %v506, 4
        %v509 = vor.u32 %v508, %v504
        %v510 = vrot.slane %v509, 4
        %v512 = vshll.u32 %v473, 16
        %v514 = vrot.slane %v512, 5
        %v515 = vsel %vm491, %v510, %v514
        %v517 = vshrl.u32 %v474, 16
        %v519 = vrot.slane %v517, 4
        %v520 = vshll.u32 %v474, 16
        %v522 = vrot.slane %v520, 5
        %v523 = vor.u32 %v519, %v522
        %v524 = vrot.slane %v523, 4
        %v526 = vshll.u32 %v475, 16
        %v528 = vrot.slane %v526, 5
        %v529 = vsel %vm491, %v524, %v528
        %v530 = vshrl.u32 %v475, 16
        %v532 = vrot.slane %v530, 4
        %v533 = vor.u32 %v532, %v528
        %v534 = vrot.slane %v533, 4
        %v536 = vshll.u32 %v476, 16
        %v538 = vrot.slane %v536, 5
        %v539 = vsel %vm491, %v534, %v538
        %v541 = vshrl.u32 %v477, 16
        %v543 = vrot.slane %v541, 4
        %v544 = vshll.u32 %v477, 16
        %v546 = vrot.slane %v544, 5
        %v547 = vor.u32 %v543, %v546
        %v548 = vrot.slane %v547, 4
        %v550 = vshll.u32 %v478, 16
        %v552 = vrot.slane %v550, 5
        %v553 = vsel %vm491, %v548, %v552
        %v554 = vshrl.u32 %v478, 16
        %v556 = vrot.slane %v554, 4
        %v557 = vor.u32 %v556, %v552
        %v558 = vrot.slane %v557, 4
        %v560 = vshll.u32 %v479, 16
        %v562 = vrot.slane %v560, 5
        %v563 = vsel %vm491, %v558, %v562
        %v565 = vshrl.u32 %v480, 16
        %v567 = vrot.slane %v565, 4
        %v568 = vshll.u32 %v480, 16
        %v570 = vrot.slane %v568, 5
        %v571 = vor.u32 %v567, %v570
        %v572 = vrot.slane %v571, 4
        %v574 = vshll.u32 %v481, 16
        %v576 = vrot.slane %v574, 5
        %v577 = vsel %vm491, %v572, %v576
        %v578 = vshrl.u32 %v481, 16
        %v580 = vrot.slane %v578, 4
        %v581 = vor.u32 %v580, %v576
        %v582 = vrot.slane %v581, 4
        %v584 = vshll.u32 %v482, 16
        %v586 = vrot.slane %v584, 5
        %v587 = vsel %vm491, %v582, %v586
        %v589 = vshrl.u32 %v483, 16
        %v591 = vrot.slane %v589, 4
        %v592 = vshll.u32 %v483, 16
        %v594 = vrot.slane %v592, 5
        %v595 = vor.u32 %v591, %v594
        %v596 = vrot.slane %v595, 4
        %v598 = vshll.u32 %v484, 16
        %v600 = vrot.slane %v598, 5
        %v601 = vsel %vm491, %v596, %v600
        %v602 = vshrl.u32 %v484, 16
        %v604 = vrot.slane %v602, 4
        %v605 = vor.u32 %v604, %v600
        %v606 = vrot.slane %v605, 4
        %v608 = vshll.u32 %v485, 16
        %v610 = vrot.slane %v608, 5
        %v611 = vsel %vm491, %v606, %v610
        %v613 = vshrl.u32 %v486, 16
        %v615 = vrot.slane %v613, 4
        %v616 = vshll.u32 %v486, 16
        %v618 = vrot.slane %v616, 5
        %v619 = vor.u32 %v615, %v618
        %v620 = vrot.slane %v619, 4
        %v622 = vshll.u32 %v487, 16
        %v624 = vrot.slane %v622, 5
        %v625 = vsel %vm491, %v620, %v624
        %v626 = vshrl.u32 %v487, 16
        %v628 = vrot.slane %v626, 4
        %v629 = vor.u32 %v628, %v624
        %v630 = vrot.slane %v629, 4
        %v632 = vshll.u32 %v488, 16
        %v634 = vrot.slane %v632, 5
        %v635 = vsel %vm491, %v630, %v634
        %s636 = scalar_lea.vmem %s1, 2
        %v637 = vld [vmem:[%s636] sm:$0x3]
        %v638 = vunpack.c.l.b16 %v505
        %v639 = vunpack.c.l.b16 %v515
        %v640 = vunpack.c.l.b16 %v529
        %v641 = vunpack.c.l.b16 %v539
        %v642 = vunpack.c.l.b16 %v553
        %v643 = vunpack.c.l.b16 %v563
        %v644 = vunpack.c.l.b16 %v577
        %v645 = vunpack.c.l.b16 %v587
        %v646 = vunpack.c.l.b16 %v601
        %v647 = vunpack.c.l.b16 %v611
        %v648 = vunpack.c.l.b16 %v625
        %v649 = vunpack.c.l.b16 %v635
        %v650 = vpack.c.b16 %v639, %v638
        %v651 = vpack.c.b16 %v641, %v640
        %v652 = vpack.c.b16 %v643, %v642
        %v653 = vpack.c.b16 %v645, %v644
        %v654 = vpack.c.b16 %v647, %v646
        %v655 = vpack.c.b16 %v649, %v648
        %v657 = vsel %vm355, %v650, 0
        %v660 = vsel %vm355, %v651, 0
        %v663 = vsel %vm355, %v652, 0
        %v666 = vsel %vm355, %v653, 0
        %v669 = vsel %vm355, %v654, 0
        %v672 = vsel %vm355, %v655, 0
        %v675 = vsel %vm374, %v637, 0
        %677 = vmatprep.subr.bf16.mxu0 0
        %678 = vmatpush1.bf16.msra.mxu0 %v675
        %679 = vmatprep.subr.bf16.mxu0 0
        %680 = vmatpush1.bf16.msra.mxu0 0
        %681 = vmatprep.subr.bf16.mxu0 0
        %682 = vmatpush1.bf16.msra.mxu0 0
        %683 = vmatprep.subr.bf16.mxu0 0
        %684 = vmatpush1.bf16.msra.mxu0 0
        %685 = vmatprep.subr.bf16.mxu0 0
        %686 = vmatpush1.bf16.msra.mxu0 0
        %687 = vmatprep.subr.bf16.mxu0 0
        %688 = vmatpush1.bf16.msra.mxu0 0
        %689 = vmatprep.subr.bf16.mxu0 0
        %690 = vmatpush1.bf16.msra.mxu0 0
        %691 = vmatprep.subr.bf16.mxu0 0
        %692 = vmatpush1.bf16.msra.mxu0 0
        %693 = vmatprep.subr.bf16.mxu0 0
        %694 = vmatpush1.bf16.msra.mxu0 0
        %695 = vmatprep.subr.bf16.mxu0 0
        %696 = vmatpush1.bf16.msra.mxu0 0
        %697 = vmatprep.subr.bf16.mxu0 0
        %698 = vmatpush1.bf16.msra.mxu0 0
        %699 = vmatprep.subr.bf16.mxu0 0
        %700 = vmatpush1.bf16.msra.mxu0 0
        %701 = vmatprep.subr.bf16.mxu0 0
        %702 = vmatpush1.bf16.msra.mxu0 0
        %703 = vmatprep.subr.bf16.mxu0 0
        %704 = vmatpush1.bf16.msra.mxu0 0
        %705 = vmatprep.subr.bf16.mxu0 0
        %706 = vmatpush1.bf16.msra.mxu0 0
        %707 = vmatprep.subr.bf16.mxu0 0
        %708 = vmatpush1.bf16.msra.mxu0 0
        %709 = vmatprep.mubr.bf16.mxu0 0
        %710 = vmatmul.mubr.bf16.gmra.mrb[0].mxu0 %v657
        %v711 = vpop.f32.mrb[0].mxu0
        %v712 = vadd.f32 0.0, %v711
        %v713 = vpop.f32.mrb[0].mxu0
        %v714 = vpop.f32.mrb[0].mxu0
        %v715 = vadd.f32 0.0, %v714
        %v716 = vpop.f32.mrb[0].mxu0
        %717 = vmatprep.mubr.bf16.mxu0 0
        %718 = vmatmul.mubr.bf16.gmra.mrb[0].mxu0 %v660
        %v719 = vpop.f32.mrb[0].mxu0
        %v720 = vadd.f32 0.0, %v719
        %v721 = vpop.f32.mrb[0].mxu0
        %v722 = vpop.f32.mrb[0].mxu0
        %v723 = vadd.f32 0.0, %v722
        %v724 = vpop.f32.mrb[0].mxu0
        %725 = vmatprep.mubr.bf16.mxu0 0
        %726 = vmatmul.mubr.bf16.gmra.mrb[0].mxu0 %v663
        %v727 = vpop.f32.mrb[0].mxu0
        %v728 = vadd.f32 0.0, %v727
        %v729 = vpop.f32.mrb[0].mxu0
        %v730 = vpop.f32.mrb[0].mxu0
        %v731 = vadd.f32 0.0, %v730
        %v732 = vpop.f32.mrb[0].mxu0
        %733 = vmatprep.mubr.bf16.mxu0 0
        %734 = vmatmul.mubr.bf16.gmra.mrb[0].mxu0 %v666
        %v735 = vpop.f32.mrb[0].mxu0
        %v736 = vadd.f32 0.0, %v735
        %v737 = vpop.f32.mrb[0].mxu0
        %v738 = vpop.f32.mrb[0].mxu0
        %v739 = vadd.f32 0.0, %v738
        %v740 = vpop.f32.mrb[0].mxu0
        %741 = vmatprep.mubr.bf16.mxu0 0
        %742 = vmatmul.mubr.bf16.gmra.mrb[0].mxu0 %v669
        %v743 = vpop.f32.mrb[0].mxu0
        %v744 = vadd.f32 0.0, %v743
        %v745 = vpop.f32.mrb[0].mxu0
        %v746 = vpop.f32.mrb[0].mxu0
        %v747 = vadd.f32 0.0, %v746
        %v748 = vpop.f32.mrb[0].mxu0
        %749 = vmatprep.mubr.bf16.mxu0 0
        %750 = vmatmul.mubr.bf16.gmra.mrb[0].mxu0 %v672
        %v751 = vpop.f32.mrb[0].mxu0
        %v752 = vadd.f32 0.0, %v751
        %v753 = vpop.f32.mrb[0].mxu0
        %v754 = vpop.f32.mrb[0].mxu0
        %v755 = vadd.f32 0.0, %v754
        %v756 = vpop.f32.mrb[0].mxu0
        %757 = vdwg.mxu0
        %v758 = vld [vmem:[#allocation3] sm:$0xff]
        %v759 = vld [vmem:[#allocation3 + $0x8] sm:$0xff]
        %v760 = vld [vmem:[#allocation3 + $0x10] sm:$0xff]
        %v761 = vld [vmem:[#allocation3 + $0x18] sm:$0xff]
        %v762 = vld [vmem:[#allocation3 + $0x20] sm:$0xff]
        %v763 = vld [vmem:[#allocation3 + $0x28] sm:$0xff]
        %v764 = vld [vmem:[#allocation3 + $0x30] sm:$0xff]
        %v765 = vld [vmem:[#allocation3 + $0x38] sm:$0xff]
        %v766 = vld [vmem:[#allocation3 + $0x40] sm:$0xff]
        %v767 = vld [vmem:[#allocation3 + $0x48] sm:$0xff]
        %v768 = vld [vmem:[#allocation3 + $0x50] sm:$0xff]
        %v769 = vld [vmem:[#allocation3 + $0x58] sm:$0xff]
        %v770 = vadd.f32 %v758, %v712
        %v771 = vadd.f32 %v759, %v715
        %v772 = vadd.f32 %v760, %v720
        %v773 = vadd.f32 %v761, %v723
        %v774 = vadd.f32 %v762, %v728
        %v775 = vadd.f32 %v763, %v731
        %v776 = vadd.f32 %v764, %v736
        %v777 = vadd.f32 %v765, %v739
        %v778 = vadd.f32 %v766, %v744
        %v779 = vadd.f32 %v767, %v747
        %v780 = vadd.f32 %v768, %v752
        %v781 = vadd.f32 %v769, %v755
        %782 = vst [vmem:[#allocation3] sm:$0xff] %v770
        %783 = vst [vmem:[#allocation3 + $0x8] sm:$0xff] %v771
        %784 = vst [vmem:[#allocation3 + $0x10] sm:$0xff] %v772
        %785 = vst [vmem:[#allocation3 + $0x18] sm:$0xff] %v773
        %786 = vst [vmem:[#allocation3 + $0x20] sm:$0xff] %v774
        %787 = vst [vmem:[#allocation3 + $0x28] sm:$0xff] %v775
        %788 = vst [vmem:[#allocation3 + $0x30] sm:$0xff] %v776
        %789 = vst [vmem:[#allocation3 + $0x38] sm:$0xff] %v777
        %790 = vst [vmem:[#allocation3 + $0x40] sm:$0xff] %v778
        %791 = vst [vmem:[#allocation3 + $0x48] sm:$0xff] %v779
        %792 = vst [vmem:[#allocation3 + $0x50] sm:$0xff] %v780
        %793 = vst [vmem:[#allocation3 + $0x58] sm:$0xff] %v781
        %v794 = vld [vmem:[%s311] sm:$0xe]
        %v795 = vld [vmem:[%s311 + $0x4] sm:$0xf]
        %v796 = vld [vmem:[%s311 + $0x8] sm:$0x1]
        %v797 = vld [vmem:[%s311 + $0xc] sm:$0xe]
        %v798 = vld [vmem:[%s311 + $0x10] sm:$0xf]
        %v799 = vld [vmem:[%s311 + $0x14] sm:$0x1]
        %v800 = vld [vmem:[%s311 + $0x18] sm:$0xe]
        %v801 = vld [vmem:[%s311 + $0x1c] sm:$0xf]
        %v802 = vld [vmem:[%s311 + $0x20] sm:$0x1]
        %v803 = vld [vmem:[%s311 + $0x24] sm:$0xe]
        %v804 = vld [vmem:[%s311 + $0x28] sm:$0xf]
        %v805 = vld [vmem:[%s311 + $0x2c] sm:$0x1]
        %v806 = vld [vmem:[%s311 + $0x30] sm:$0xe]
        %v807 = vld [vmem:[%s311 + $0x34] sm:$0xf]
        %v808 = vld [vmem:[%s311 + $0x38] sm:$0x1]
        %v809 = vld [vmem:[%s311 + $0x3c] sm:$0xe]
        %v810 = vld [vmem:[%s311 + $0x40] sm:$0xf]
        %v811 = vld [vmem:[%s311 + $0x44] sm:$0x1]
        %vm830 = vcmask 1042432
        %vm831 = vcmask 1046532
        %vm832 = vmor %vm830, %vm831
        %v833 = vrot.slane %v794, 5
        %v834 = vrot.slane %v833, 4
        %v835 = vrot.slane %v795, 5
        %v836 = vsel %vm832, %v834, %v835
        %v837 = vrot.slane %v835, 4
        %v838 = vrot.slane %v796, 5
        %v839 = vsel %vm832, %v837, %v838
        %v840 = vrot.slane %v797, 5
        %v841 = vrot.slane %v840, 4
        %v842 = vrot.slane %v798, 5
        %v843 = vsel %vm832, %v841, %v842
        %v844 = vrot.slane %v842, 4
        %v845 = vrot.slane %v799, 5
        %v846 = vsel %vm832, %v844, %v845
        %v847 = vrot.slane %v800, 5
        %v848 = vrot.slane %v847, 4
        %v849 = vrot.slane %v801, 5
        %v850 = vsel %vm832, %v848, %v849
        %v851 = vrot.slane %v849, 4
        %v852 = vrot.slane %v802, 5
        %v853 = vsel %vm832, %v851, %v852
        %v854 = vrot.slane %v803, 5
        %v855 = vrot.slane %v854, 4
        %v856 = vrot.slane %v804, 5
        %v857 = vsel %vm832, %v855, %v856
        %v858 = vrot.slane %v856, 4
        %v859 = vrot.slane %v805, 5
        %v860 = vsel %vm832, %v858, %v859
        %v861 = vrot.slane %v806, 5
        %v862 = vrot.slane %v861, 4
        %v863 = vrot.slane %v807, 5
        %v864 = vsel %vm832, %v862, %v863
        %v865 = vrot.slane %v863, 4
        %v866 = vrot.slane %v808, 5
        %v867 = vsel %vm832, %v865, %v866
        %v868 = vrot.slane %v809, 5
        %v869 = vrot.slane %v868, 4
        %v870 = vrot.slane %v810, 5
        %v871 = vsel %vm832, %v869, %v870
        %v872 = vrot.slane %v870, 4
        %v873 = vrot.slane %v811, 5
        %v874 = vsel %vm832, %v872, %v873
        %s875 = scalar_lea.vmem %s1, 4
        %v876 = vld [vmem:[%s875] sm:$0x3]
        %v877 = vunpack.c.l.b16 %v836
        %v878 = vunpack.c.l.b16 %v839
        %v879 = vunpack.c.l.b16 %v843
        %v880 = vunpack.c.l.b16 %v846
        %v881 = vunpack.c.l.b16 %v850
        %v882 = vunpack.c.l.b16 %v853
        %v883 = vunpack.c.l.b16 %v857
        %v884 = vunpack.c.l.b16 %v860
        %v885 = vunpack.c.l.b16 %v864
        %v886 = vunpack.c.l.b16 %v867
        %v887 = vunpack.c.l.b16 %v871
        %v888 = vunpack.c.l.b16 %v874
        %v889 = vpack.c.b16 %v878, %v877
        %v890 = vpack.c.b16 %v880, %v879
        %v891 = vpack.c.b16 %v882, %v881
        %v892 = vpack.c.b16 %v884, %v883
        %v893 = vpack.c.b16 %v886, %v885
        %v894 = vpack.c.b16 %v888, %v887
        %v896 = vsel %vm355, %v889, 0
        %v899 = vsel %vm355, %v890, 0
        %v902 = vsel %vm355, %v891, 0
        %v905 = vsel %vm355, %v892, 0
        %v908 = vsel %vm355, %v893, 0
        %v911 = vsel %vm355, %v894, 0
        %v914 = vsel %vm374, %v876, 0
        %916 = vmatprep.subr.bf16.mxu0 0
        %917 = vmatpush1.bf16.msra.mxu0 %v914
        %918 = vmatprep.subr.bf16.mxu0 0
        %919 = vmatpush1.bf16.msra.mxu0 0
        %920 = vmatprep.subr.bf16.mxu0 0
        %921 = vmatpush1.bf16.msra.mxu0 0
        %922 = vmatprep.subr.bf16.mxu0 0
        %923 = vmatpush1.bf16.msra.mxu0 0
        %924 = vmatprep.subr.bf16.mxu0 0
        %925 = vmatpush1.bf16.msra.mxu0 0
        %926 = vmatprep.subr.bf16.mxu0 0
        %927 = vmatpush1.bf16.msra.mxu0 0
        %928 = vmatprep.subr.bf16.mxu0 0
        %929 = vmatpush1.bf16.msra.mxu0 0
        %930 = vmatprep.subr.bf16.mxu0 0
        %931 = vmatpush1.bf16.msra.mxu0 0
        %932 = vmatprep.subr.bf16.mxu0 0
        %933 = vmatpush1.bf16.msra.mxu0 0
        %934 = vmatprep.subr.bf16.mxu0 0
        %935 = vmatpush1.bf16.msra.mxu0 0
        %936 = vmatprep.subr.bf16.mxu0 0
        %937 = vmatpush1.bf16.msra.mxu0 0
        %938 = vmatprep.subr.bf16.mxu0 0
        %939 = vmatpush1.bf16.msra.mxu0 0
        %940 = vmatprep.subr.bf16.mxu0 0
        %941 = vmatpush1.bf16.msra.mxu0 0
        %942 = vmatprep.subr.bf16.mxu0 0
        %943 = vmatpush1.bf16.msra.mxu0 0
        %944 = vmatprep.subr.bf16.mxu0 0
        %945 = vmatpush1.bf16.msra.mxu0 0
        %946 = vmatprep.subr.bf16.mxu0 0
        %947 = vmatpush1.bf16.msra.mxu0 0
        %948 = vmatprep.mubr.bf16.mxu0 0
        %949 = vmatmul.mubr.bf16.gmra.mrb[0].mxu0 %v896
        %v950 = vpop.f32.mrb[0].mxu0
        %v951 = vadd.f32 0.0, %v950
        %v952 = vpop.f32.mrb[0].mxu0
        %v953 = vpop.f32.mrb[0].mxu0
        %v954 = vadd.f32 0.0, %v953
        %v955 = vpop.f32.mrb[0].mxu0
        %956 = vmatprep.mubr.bf16.mxu0 0
        %957 = vmatmul.mubr.bf16.gmra.mrb[0].mxu0 %v899
        %v958 = vpop.f32.mrb[0].mxu0
        %v959 = vadd.f32 0.0, %v958
        %v960 = vpop.f32.mrb[0].mxu0
        %v961 = vpop.f32.mrb[0].mxu0
        %v962 = vadd.f32 0.0, %v961
        %v963 = vpop.f32.mrb[0].mxu0
        %964 = vmatprep.mubr.bf16.mxu0 0
        %965 = vmatmul.mubr.bf16.gmra.mrb[0].mxu0 %v902
        %v966 = vpop.f32.mrb[0].mxu0
        %v967 = vadd.f32 0.0, %v966
        %v968 = vpop.f32.mrb[0].mxu0
        %v969 = vpop.f32.mrb[0].mxu0
        %v970 = vadd.f32 0.0, %v969
        %v971 = vpop.f32.mrb[0].mxu0
        %972 = vmatprep.mubr.bf16.mxu0 0
        %973 = vmatmul.mubr.bf16.gmra.mrb[0].mxu0 %v905
        %v974 = vpop.f32.mrb[0].mxu0
        %v975 = vadd.f32 0.0, %v974
        %v976 = vpop.f32.mrb[0].mxu0
        %v977 = vpop.f32.mrb[0].mxu0
        %v978 = vadd.f32 0.0, %v977
        %v979 = vpop.f32.mrb[0].mxu0
        %980 = vmatprep.mubr.bf16.mxu0 0
        %981 = vmatmul.mubr.bf16.gmra.mrb[0].mxu0 %v908
        %v982 = vpop.f32.mrb[0].mxu0
        %v983 = vadd.f32 0.0, %v982
        %v984 = vpop.f32.mrb[0].mxu0
        %v985 = vpop.f32.mrb[0].mxu0
        %v986 = vadd.f32 0.0, %v985
        %v987 = vpop.f32.mrb[0].mxu0
        %988 = vmatprep.mubr.bf16.mxu0 0
        %989 = vmatmul.mubr.bf16.gmra.mrb[0].mxu0 %v911
        %v990 = vpop.f32.mrb[0].mxu0
        %v991 = vadd.f32 0.0, %v990
        %v992 = vpop.f32.mrb[0].mxu0
        %v993 = vpop.f32.mrb[0].mxu0
        %v994 = vadd.f32 0.0, %v993
        %v995 = vpop.f32.mrb[0].mxu0
        %996 = vdwg.mxu0
        %v997 = vld [vmem:[#allocation3] sm:$0xff]
        %v998 = vld [vmem:[#allocation3 + $0x8] sm:$0xff]
        %v999 = vld [vmem:[#allocation3 + $0x10] sm:$0xff]
        %v1000 = vld [vmem:[#allocation3 + $0x18] sm:$0xff]
        %v1001 = vld [vmem:[#allocation3 + $0x20] sm:$0xff]
        %v1002 = vld [vmem:[#allocation3 + $0x28] sm:$0xff]
        %v1003 = vld [vmem:[#allocation3 + $0x30] sm:$0xff]
        %v1004 = vld [vmem:[#allocation3 + $0x38] sm:$0xff]
        %v1005 = vld [vmem:[#allocation3 + $0x40] sm:$0xff]
        %v1006 = vld [vmem:[#allocation3 + $0x48] sm:$0xff]
        %v1007 = vld [vmem:[#allocation3 + $0x50] sm:$0xff]
        %v1008 = vld [vmem:[#allocation3 + $0x58] sm:$0xff]
        %v1009 = vadd.f32 %v997, %v951
        %v1010 = vadd.f32 %v998, %v954
        %v1011 = vadd.f32 %v999, %v959
        %v1012 = vadd.f32 %v1000, %v962
        %v1013 = vadd.f32 %v1001, %v967
        %v1014 = vadd.f32 %v1002, %v970
        %v1015 = vadd.f32 %v1003, %v975
        %v1016 = vadd.f32 %v1004, %v978
        %v1017 = vadd.f32 %v1005, %v983
        %v1018 = vadd.f32 %v1006, %v986
        %v1019 = vadd.f32 %v1007, %v991
        %v1020 = vadd.f32 %v1008, %v994
        %1021 = vst [vmem:[#allocation3] sm:$0xff] %v1009
        %1022 = vst [vmem:[#allocation3 + $0x8] sm:$0xff] %v1010
        %1023 = vst [vmem:[#allocation3 + $0x10] sm:$0xff] %v1011
        %1024 = vst [vmem:[#allocation3 + $0x18] sm:$0xff] %v1012
        %1025 = vst [vmem:[#allocation3 + $0x20] sm:$0xff] %v1013
        %1026 = vst [vmem:[#allocation3 + $0x28] sm:$0xff] %v1014
        %1027 = vst [vmem:[#allocation3 + $0x30] sm:$0xff] %v1015
        %1028 = vst [vmem:[#allocation3 + $0x38] sm:$0xff] %v1016
        %1029 = vst [vmem:[#allocation3 + $0x40] sm:$0xff] %v1017
        %1030 = vst [vmem:[#allocation3 + $0x48] sm:$0xff] %v1018
        %1031 = vst [vmem:[#allocation3 + $0x50] sm:$0xff] %v1019
        %1032 = vst [vmem:[#allocation3 + $0x58] sm:$0xff] %v1020
        %s1033 = sadd.s32 %s308, 1
        %s1034 = smul.u32 %s1033, 3
        %s1035 = smul.addr %s1034, 4
        %s1036 = scalar_lea.vmem %s305, %s1035
        %v1037 = vld [vmem:[%s1036] sm:$0xf]
        %v1038 = vld [vmem:[%s1036 + $0x4] sm:$0xf]
        %v1039 = vld [vmem:[%s1036 + $0xc] sm:$0xf]
        %v1040 = vld [vmem:[%s1036 + $0x10] sm:$0xf]
        %v1041 = vld [vmem:[%s1036 + $0x18] sm:$0xf]
        %v1042 = vld [vmem:[%s1036 + $0x1c] sm:$0xf]
        %v1043 = vld [vmem:[%s1036 + $0x24] sm:$0xf]
        %v1044 = vld [vmem:[%s1036 + $0x28] sm:$0xf]
        %v1045 = vld [vmem:[%s1036 + $0x30] sm:$0xf]
        %v1046 = vld [vmem:[%s1036 + $0x34] sm:$0xf]
        %v1047 = vld [vmem:[%s1036 + $0x3c] sm:$0xf]
        %v1048 = vld [vmem:[%s1036 + $0x40] sm:$0xf]
        %s1049 = scalar_lea.vmem %s1, 6
        %v1050 = vld [vmem:[%s1049] sm:$0x3]
        %v1063 = vunpack.c.l.b16 %v1037
        %v1064 = vunpack.c.l.b16 %v1038
        %v1065 = vunpack.c.l.b16 %v1039
        %v1066 = vunpack.c.l.b16 %v1040
        %v1067 = vunpack.c.l.b16 %v1041
        %v1068 = vunpack.c.l.b16 %v1042
        %v1069 = vunpack.c.l.b16 %v1043
        %v1070 = vunpack.c.l.b16 %v1044
        %v1071 = vunpack.c.l.b16 %v1045
        %v1072 = vunpack.c.l.b16 %v1046
        %v1073 = vunpack.c.l.b16 %v1047
        %v1074 = vunpack.c.l.b16 %v1048
        %v1075 = vpack.c.b16 %v1064, %v1063
        %v1076 = vpack.c.b16 %v1066, %v1065
        %v1077 = vpack.c.b16 %v1068, %v1067
        %v1078 = vpack.c.b16 %v1070, %v1069
        %v1079 = vpack.c.b16 %v1072, %v1071
        %v1080 = vpack.c.b16 %v1074, %v1073
        %v1082 = vsel %vm355, %v1075, 0
        %v1085 = vsel %vm355, %v1076, 0
        %v1088 = vsel %vm355, %v1077, 0
        %v1091 = vsel %vm355, %v1078, 0
        %v1094 = vsel %vm355, %v1079, 0
        %v1097 = vsel %vm355, %v1080, 0
        %v1100 = vsel %vm374, %v1050, 0
        %1102 = vmatprep.subr.bf16.mxu0 0
        %1103 = vmatpush1.bf16.msra.mxu0 %v1100
        %1104 = vmatprep.subr.bf16.mxu0 0
        %1105 = vmatpush1.bf16.msra.mxu0 0
        %1106 = vmatprep.subr.bf16.mxu0 0
        %1107 = vmatpush1.bf16.msra.mxu0 0
        %1108 = vmatprep.subr.bf16.mxu0 0
        %1109 = vmatpush1.bf16.msra.mxu0 0
        %1110 = vmatprep.subr.bf16.mxu0 0
        %1111 = vmatpush1.bf16.msra.mxu0 0
        %1112 = vmatprep.subr.bf16.mxu0 0
        %1113 = vmatpush1.bf16.msra.mxu0 0
        %1114 = vmatprep.subr.bf16.mxu0 0
        %1115 = vmatpush1.bf16.msra.mxu0 0
        %1116 = vmatprep.subr.bf16.mxu0 0
        %1117 = vmatpush1.bf16.msra.mxu0 0
        %1118 = vmatprep.subr.bf16.mxu0 0
        %1119 = vmatpush1.bf16.msra.mxu0 0
        %1120 = vmatprep.subr.bf16.mxu0 0
        %1121 = vmatpush1.bf16.msra.mxu0 0
        %1122 = vmatprep.subr.bf16.mxu0 0
        %1123 = vmatpush1.bf16.msra.mxu0 0
        %1124 = vmatprep.subr.bf16.mxu0 0
        %1125 = vmatpush1.bf16.msra.mxu0 0
        %1126 = vmatprep.subr.bf16.mxu0 0
        %1127 = vmatpush1.bf16.msra.mxu0 0
        %1128 = vmatprep.subr.bf16.mxu0 0
        %1129 = vmatpush1.bf16.msra.mxu0 0
        %1130 = vmatprep.subr.bf16.mxu0 0
        %1131 = vmatpush1.bf16.msra.mxu0 0
        %1132 = vmatprep.subr.bf16.mxu0 0
        %1133 = vmatpush1.bf16.msra.mxu0 0
        %1134 = vmatprep.mubr.bf16.mxu0 0
        %1135 = vmatmul.mubr.bf16.gmra.mrb[0].mxu0 %v1082
        %v1136 = vpop.f32.mrb[0].mxu0
        %v1137 = vadd.f32 0.0, %v1136
        %v1138 = vpop.f32.mrb[0].mxu0
        %v1139 = vpop.f32.mrb[0].mxu0
        %v1140 = vadd.f32 0.0, %v1139
        %v1141 = vpop.f32.mrb[0].mxu0
        %1142 = vmatprep.mubr.bf16.mxu0 0
        %1143 = vmatmul.mubr.bf16.gmra.mrb[0].mxu0 %v1085
        %v1144 = vpop.f32.mrb[0].mxu0
        %v1145 = vadd.f32 0.0, %v1144
        %v1146 = vpop.f32.mrb[0].mxu0
        %v1147 = vpop.f32.mrb[0].mxu0
        %v1148 = vadd.f32 0.0, %v1147
        %v1149 = vpop.f32.mrb[0].mxu0
        %1150 = vmatprep.mubr.bf16.mxu0 0
        %1151 = vmatmul.mubr.bf16.gmra.mrb[0].mxu0 %v1088
        %v1152 = vpop.f32.mrb[0].mxu0
        %v1153 = vadd.f32 0.0, %v1152
        %v1154 = vpop.f32.mrb[0].mxu0
        %v1155 = vpop.f32.mrb[0].mxu0
        %v1156 = vadd.f32 0.0, %v1155
        %v1157 = vpop.f32.mrb[0].mxu0
        %1158 = vmatprep.mubr.bf16.mxu0 0
        %1159 = vmatmul.mubr.bf16.gmra.mrb[0].mxu0 %v1091
        %v1160 = vpop.f32.mrb[0].mxu0
        %v1161 = vadd.f32 0.0, %v1160
        %v1162 = vpop.f32.mrb[0].mxu0
        %v1163 = vpop.f32.mrb[0].mxu0
        %v1164 = vadd.f32 0.0, %v1163
        %v1165 = vpop.f32.mrb[0].mxu0
        %1166 = vmatprep.mubr.bf16.mxu0 0
        %1167 = vmatmul.mubr.bf16.gmra.mrb[0].mxu0 %v1094
        %v1168 = vpop.f32.mrb[0].mxu0
        %v1169 = vadd.f32 0.0, %v1168
        %v1170 = vpop.f32.mrb[0].mxu0
        %v1171 = vpop.f32.mrb[0].mxu0
        %v1172 = vadd.f32 0.0, %v1171
        %v1173 = vpop.f32.mrb[0].mxu0
        %1174 = vmatprep.mubr.bf16.mxu0 0
        %1175 = vmatmul.mubr.bf16.gmra.mrb[0].mxu0 %v1097
        %v1176 = vpop.f32.mrb[0].mxu0
        %v1177 = vadd.f32 0.0, %v1176
        %v1178 = vpop.f32.mrb[0].mxu0
        %v1179 = vpop.f32.mrb[0].mxu0
        %v1180 = vadd.f32 0.0, %v1179
        %v1181 = vpop.f32.mrb[0].mxu0
        %1182 = vdwg.mxu0
        %v1183 = vld [vmem:[#allocation3] sm:$0xff]
        %v1184 = vld [vmem:[#allocation3 + $0x8] sm:$0xff]
        %v1185 = vld [vmem:[#allocation3 + $0x10] sm:$0xff]
        %v1186 = vld [vmem:[#allocation3 + $0x18] sm:$0xff]
        %v1187 = vld [vmem:[#allocation3 + $0x20] sm:$0xff]
        %v1188 = vld [vmem:[#allocation3 + $0x28] sm:$0xff]
        %v1189 = vld [vmem:[#allocation3 + $0x30] sm:$0xff]
        %v1190 = vld [vmem:[#allocation3 + $0x38] sm:$0xff]
        %v1191 = vld [vmem:[#allocation3 + $0x40] sm:$0xff]
        %v1192 = vld [vmem:[#allocation3 + $0x48] sm:$0xff]
        %v1193 = vld [vmem:[#allocation3 + $0x50] sm:$0xff]
        %v1194 = vld [vmem:[#allocation3 + $0x58] sm:$0xff]
        %v1195 = vadd.f32 %v1183, %v1137
        %v1196 = vadd.f32 %v1184, %v1140
        %v1197 = vadd.f32 %v1185, %v1145
        %v1198 = vadd.f32 %v1186, %v1148
        %v1199 = vadd.f32 %v1187, %v1153
        %v1200 = vadd.f32 %v1188, %v1156
        %v1201 = vadd.f32 %v1189, %v1161
        %v1202 = vadd.f32 %v1190, %v1164
        %v1203 = vadd.f32 %v1191, %v1169
        %v1204 = vadd.f32 %v1192, %v1172
        %v1205 = vadd.f32 %v1193, %v1177
        %v1206 = vadd.f32 %v1194, %v1180
        %1207 = vst [vmem:[#allocation3] sm:$0xff] %v1195
        %1208 = vst [vmem:[#allocation3 + $0x8] sm:$0xff] %v1196
        %1209 = vst [vmem:[#allocation3 + $0x10] sm:$0xff] %v1197
        %1210 = vst [vmem:[#allocation3 + $0x18] sm:$0xff] %v1198
        %1211 = vst [vmem:[#allocation3 + $0x20] sm:$0xff] %v1199
        %1212 = vst [vmem:[#allocation3 + $0x28] sm:$0xff] %v1200
        %1213 = vst [vmem:[#allocation3 + $0x30] sm:$0xff] %v1201
        %1214 = vst [vmem:[#allocation3 + $0x38] sm:$0xff] %v1202
        %1215 = vst [vmem:[#allocation3 + $0x40] sm:$0xff] %v1203
        %1216 = vst [vmem:[#allocation3 + $0x48] sm:$0xff] %v1204
        %1217 = vst [vmem:[#allocation3 + $0x50] sm:$0xff] %v1205
        %1218 = vst [vmem:[#allocation3 + $0x58] sm:$0xff] %v1206
        %v1219 = vld [vmem:[%s1036] sm:$0xf]
        %v1220 = vld [vmem:[%s1036 + $0x4] sm:$0xf]
        %v1221 = vld [vmem:[%s1036 + $0x8] sm:$0x1]
        %v1222 = vld [vmem:[%s1036 + $0xc] sm:$0xf]
        %v1223 = vld [vmem:[%s1036 + $0x10] sm:$0xf]
        %v1224 = vld [vmem:[%s1036 + $0x14] sm:$0x1]
        %v1225 = vld [vmem:[%s1036 + $0x18] sm:$0xf]
        %v1226 = vld [vmem:[%s1036 + $0x1c] sm:$0xf]
        %v1227 = vld [vmem:[%s1036 + $0x20] sm:$0x1]
        %v1228 = vld [vmem:[%s1036 + $0x24] sm:$0xf]
        %v1229 = vld [vmem:[%s1036 + $0x28] sm:$0xf]
        %v1230 = vld [vmem:[%s1036 + $0x2c] sm:$0x1]
        %v1231 = vld [vmem:[%s1036 + $0x30] sm:$0xf]
        %v1232 = vld [vmem:[%s1036 + $0x34] sm:$0xf]
        %v1233 = vld [vmem:[%s1036 + $0x38] sm:$0x1]
        %v1234 = vld [vmem:[%s1036 + $0x3c] sm:$0xf]
        %v1235 = vld [vmem:[%s1036 + $0x40] sm:$0xf]
        %v1236 = vld [vmem:[%s1036 + $0x44] sm:$0x1]
        %v1238 = vshrl.u32 %v1219, 16
        %v1240 = vrot.slane %v1238, 4
        %v1241 = vshll.u32 %v1219, 16
        %v1243 = vrot.slane %v1241, 5
        %v1244 = vor.u32 %v1240, %v1243
        %v1245 = vrot.slane %v1244, 4
        %v1247 = vshll.u32 %v1220, 16
        %v1249 = vrot.slane %v1247, 5
        %v1250 = vsel %vm491, %v1245, %v1249
        %v1251 = vshrl.u32 %v1220, 16
        %v1253 = vrot.slane %v1251, 4
        %v1254 = vor.u32 %v1253, %v1249
        %v1255 = vrot.slane %v1254, 4
        %v1257 = vshll.u32 %v1221, 16
        %v1259 = vrot.slane %v1257, 5
        %v1260 = vsel %vm491, %v1255, %v1259
        %v1262 = vshrl.u32 %v1222, 16
        %v1264 = vrot.slane %v1262, 4
        %v1265 = vshll.u32 %v1222, 16
        %v1267 = vrot.slane %v1265, 5
        %v1268 = vor.u32 %v1264, %v1267
        %v1269 = vrot.slane %v1268, 4
        %v1271 = vshll.u32 %v1223, 16
        %v1273 = vrot.slane %v1271, 5
        %v1274 = vsel %vm491, %v1269, %v1273
        %v1275 = vshrl.u32 %v1223, 16
        %v1277 = vrot.slane %v1275, 4
        %v1278 = vor.u32 %v1277, %v1273
        %v1279 = vrot.slane %v1278, 4
        %v1281 = vshll.u32 %v1224, 16
        %v1283 = vrot.slane %v1281, 5
        %v1284 = vsel %vm491, %v1279, %v1283
        %v1286 = vshrl.u32 %v1225, 16
        %v1288 = vrot.slane %v1286, 4
        %v1289 = vshll.u32 %v1225, 16
        %v1291 = vrot.slane %v1289, 5
        %v1292 = vor.u32 %v1288, %v1291
        %v1293 = vrot.slane %v1292, 4
        %v1295 = vshll.u32 %v1226, 16
        %v1297 = vrot.slane %v1295, 5
        %v1298 = vsel %vm491, %v1293, %v1297
        %v1299 = vshrl.u32 %v1226, 16
        %v1301 = vrot.slane %v1299, 4
        %v1302 = vor.u32 %v1301, %v1297
        %v1303 = vrot.slane %v1302, 4
        %v1305 = vshll.u32 %v1227, 16
        %v1307 = vrot.slane %v1305, 5
        %v1308 = vsel %vm491, %v1303, %v1307
        %v1310 = vshrl.u32 %v1228, 16
        %v1312 = vrot.slane %v1310, 4
        %v1313 = vshll.u32 %v1228, 16
        %v1315 = vrot.slane %v1313, 5
        %v1316 = vor.u32 %v1312, %v1315
        %v1317 = vrot.slane %v1316, 4
        %v1319 = vshll.u32 %v1229, 16
        %v1321 = vrot.slane %v1319, 5
        %v1322 = vsel %vm491, %v1317, %v1321
        %v1323 = vshrl.u32 %v1229, 16
        %v1325 = vrot.slane %v1323, 4
        %v1326 = vor.u32 %v1325, %v1321
        %v1327 = vrot.slane %v1326, 4
        %v1329 = vshll.u32 %v1230, 16
        %v1331 = vrot.slane %v1329, 5
        %v1332 = vsel %vm491, %v1327, %v1331
        %v1334 = vshrl.u32 %v1231, 16
        %v1336 = vrot.slane %v1334, 4
        %v1337 = vshll.u32 %v1231, 16
        %v1339 = vrot.slane %v1337, 5
        %v1340 = vor.u32 %v1336, %v1339
        %v1341 = vrot.slane %v1340, 4
        %v1343 = vshll.u32 %v1232, 16
        %v1345 = vrot.slane %v1343, 5
        %v1346 = vsel %vm491, %v1341, %v1345
        %v1347 = vshrl.u32 %v1232, 16
        %v1349 = vrot.slane %v1347, 4
        %v1350 = vor.u32 %v1349, %v1345
        %v1351 = vrot.slane %v1350, 4
        %v1353 = vshll.u32 %v1233, 16
        %v1355 = vrot.slane %v1353, 5
        %v1356 = vsel %vm491, %v1351, %v1355
        %v1358 = vshrl.u32 %v1234, 16
        %v1360 = vrot.slane %v1358, 4
        %v1361 = vshll.u32 %v1234, 16
        %v1363 = vrot.slane %v1361, 5
        %v1364 = vor.u32 %v1360, %v1363
        %v1365 = vrot.slane %v1364, 4
        %v1367 = vshll.u32 %v1235, 16
        %v1369 = vrot.slane %v1367, 5
        %v1370 = vsel %vm491, %v1365, %v1369
        %v1371 = vshrl.u32 %v1235, 16
        %v1373 = vrot.slane %v1371, 4
        %v1374 = vor.u32 %v1373, %v1369
        %v1375 = vrot.slane %v1374, 4
        %v1377 = vshll.u32 %v1236, 16
        %v1379 = vrot.slane %v1377, 5
        %v1380 = vsel %vm491, %v1375, %v1379
        %s1381 = scalar_lea.vmem %s1, 8
        %v1382 = vld [vmem:[%s1381] sm:$0x3]
        %v1383 = vunpack.c.l.b16 %v1250
        %v1384 = vunpack.c.l.b16 %v1260
        %v1385 = vunpack.c.l.b16 %v1274
        %v1386 = vunpack.c.l.b16 %v1284
        %v1387 = vunpack.c.l.b16 %v1298
        %v1388 = vunpack.c.l.b16 %v1308
        %v1389 = vunpack.c.l.b16 %v1322
        %v1390 = vunpack.c.l.b16 %v1332
        %v1391 = vunpack.c.l.b16 %v1346
        %v1392 = vunpack.c.l.b16 %v1356
        %v1393 = vunpack.c.l.b16 %v1370
        %v1394 = vunpack.c.l.b16 %v1380
        %v1395 = vpack.c.b16 %v1384, %v1383
        %v1396 = vpack.c.b16 %v1386, %v1385
        %v1397 = vpack.c.b16 %v1388, %v1387
        %v1398 = vpack.c.b16 %v1390, %v1389
        %v1399 = vpack.c.b16 %v1392, %v1391
        %v1400 = vpack.c.b16 %v1394, %v1393
        %v1402 = vsel %vm355, %v1395, 0
        %v1405 = vsel %vm355, %v1396, 0
        %v1408 = vsel %vm355, %v1397, 0
        %v1411 = vsel %vm355, %v1398, 0
        %v1414 = vsel %vm355, %v1399, 0
        %v1417 = vsel %vm355, %v1400, 0
        %v1420 = vsel %vm374, %v1382, 0
        %1422 = vmatprep.subr.bf16.mxu0 0
        %1423 = vmatpush1.bf16.msra.mxu0 %v1420
        %1424 = vmatprep.subr.bf16.mxu0 0
        %1425 = vmatpush1.bf16.msra.mxu0 0
        %1426 = vmatprep.subr.bf16.mxu0 0
        %1427 = vmatpush1.bf16.msra.mxu0 0
        %1428 = vmatprep.subr.bf16.mxu0 0
        %1429 = vmatpush1.bf16.msra.mxu0 0
        %1430 = vmatprep.subr.bf16.mxu0 0
        %1431 = vmatpush1.bf16.msra.mxu0 0
        %1432 = vmatprep.subr.bf16.mxu0 0
        %1433 = vmatpush1.bf16.msra.mxu0 0
        %1434 = vmatprep.subr.bf16.mxu0 0
        %1435 = vmatpush1.bf16.msra.mxu0 0
        %1436 = vmatprep.subr.bf16.mxu0 0
        %1437 = vmatpush1.bf16.msra.mxu0 0
        %1438 = vmatprep.subr.bf16.mxu0 0
        %1439 = vmatpush1.bf16.msra.mxu0 0
        %1440 = vmatprep.subr.bf16.mxu0 0
        %1441 = vmatpush1.bf16.msra.mxu0 0
        %1442 = vmatprep.subr.bf16.mxu0 0
        %1443 = vmatpush1.bf16.msra.mxu0 0
        %1444 = vmatprep.subr.bf16.mxu0 0
        %1445 = vmatpush1.bf16.msra.mxu0 0
        %1446 = vmatprep.subr.bf16.mxu0 0
        %1447 = vmatpush1.bf16.msra.mxu0 0
        %1448 = vmatprep.subr.bf16.mxu0 0
        %1449 = vmatpush1.bf16.msra.mxu0 0
        %1450 = vmatprep.subr.bf16.mxu0 0
        %1451 = vmatpush1.bf16.msra.mxu0 0
        %1452 = vmatprep.subr.bf16.mxu0 0
        %1453 = vmatpush1.bf16.msra.mxu0 0
        %1454 = vmatprep.mubr.bf16.mxu0 0
        %1455 = vmatmul.mubr.bf16.gmra.mrb[0].mxu0 %v1402
        %v1456 = vpop.f32.mrb[0].mxu0
        %v1457 = vadd.f32 0.0, %v1456
        %v1458 = vpop.f32.mrb[0].mxu0
        %v1459 = vpop.f32.mrb[0].mxu0
        %v1460 = vadd.f32 0.0, %v1459
        %v1461 = vpop.f32.mrb[0].mxu0
        %1462 = vmatprep.mubr.bf16.mxu0 0
        %1463 = vmatmul.mubr.bf16.gmra.mrb[0].mxu0 %v1405
        %v1464 = vpop.f32.mrb[0].mxu0
        %v1465 = vadd.f32 0.0, %v1464
        %v1466 = vpop.f32.mrb[0].mxu0
        %v1467 = vpop.f32.mrb[0].mxu0
        %v1468 = vadd.f32 0.0, %v1467
        %v1469 = vpop.f32.mrb[0].mxu0
        %1470 = vmatprep.mubr.bf16.mxu0 0
        %1471 = vmatmul.mubr.bf16.gmra.mrb[0].mxu0 %v1408
        %v1472 = vpop.f32.mrb[0].mxu0
        %v1473 = vadd.f32 0.0, %v1472
        %v1474 = vpop.f32.mrb[0].mxu0
        %v1475 = vpop.f32.mrb[0].mxu0
        %v1476 = vadd.f32 0.0, %v1475
        %v1477 = vpop.f32.mrb[0].mxu0
        %1478 = vmatprep.mubr.bf16.mxu0 0
        %1479 = vmatmul.mubr.bf16.gmra.mrb[0].mxu0 %v1411
        %v1480 = vpop.f32.mrb[0].mxu0
        %v1481 = vadd.f32 0.0, %v1480
        %v1482 = vpop.f32.mrb[0].mxu0
        %v1483 = vpop.f32.mrb[0].mxu0
        %v1484 = vadd.f32 0.0, %v1483
        %v1485 = vpop.f32.mrb[0].mxu0
        %1486 = vmatprep.mubr.bf16.mxu0 0
        %1487 = vmatmul.mubr.bf16.gmra.mrb[0].mxu0 %v1414
        %v1488 = vpop.f32.mrb[0].mxu0
        %v1489 = vadd.f32 0.0, %v1488
        %v1490 = vpop.f32.mrb[0].mxu0
        %v1491 = vpop.f32.mrb[0].mxu0
        %v1492 = vadd.f32 0.0, %v1491
        %v1493 = vpop.f32.mrb[0].mxu0
        %1494 = vmatprep.mubr.bf16.mxu0 0
        %1495 = vmatmul.mubr.bf16.gmra.mrb[0].mxu0 %v1417
        %v1496 = vpop.f32.mrb[0].mxu0
        %v1497 = vadd.f32 0.0, %v1496
        %v1498 = vpop.f32.mrb[0].mxu0
        %v1499 = vpop.f32.mrb[0].mxu0
        %v1500 = vadd.f32 0.0, %v1499
        %v1501 = vpop.f32.mrb[0].mxu0
        %1502 = vdwg.mxu0
        %v1503 = vld [vmem:[#allocation3] sm:$0xff]
        %v1504 = vld [vmem:[#allocation3 + $0x8] sm:$0xff]
        %v1505 = vld [vmem:[#allocation3 + $0x10] sm:$0xff]
        %v1506 = vld [vmem:[#allocation3 + $0x18] sm:$0xff]
        %v1507 = vld [vmem:[#allocation3 + $0x20] sm:$0xff]
        %v1508 = vld [vmem:[#allocation3 + $0x28] sm:$0xff]
        %v1509 = vld [vmem:[#allocation3 + $0x30] sm:$0xff]
        %v1510 = vld [vmem:[#allocation3 + $0x38] sm:$0xff]
        %v1511 = vld [vmem:[#allocation3 + $0x40] sm:$0xff]
        %v1512 = vld [vmem:[#allocation3 + $0x48] sm:$0xff]
        %v1513 = vld [vmem:[#allocation3 + $0x50] sm:$0xff]
        %v1514 = vld [vmem:[#allocation3 + $0x58] sm:$0xff]
        %v1515 = vadd.f32 %v1503, %v1457
        %v1516 = vadd.f32 %v1504, %v1460
        %v1517 = vadd.f32 %v1505, %v1465
        %v1518 = vadd.f32 %v1506, %v1468
        %v1519 = vadd.f32 %v1507, %v1473
        %v1520 = vadd.f32 %v1508, %v1476
        %v1521 = vadd.f32 %v1509, %v1481
        %v1522 = vadd.f32 %v1510, %v1484
        %v1523 = vadd.f32 %v1511, %v1489
        %v1524 = vadd.f32 %v1512, %v1492
        %v1525 = vadd.f32 %v1513, %v1497
        %v1526 = vadd.f32 %v1514, %v1500
        %1527 = vst [vmem:[#allocation3] sm:$0xff] %v1515
        %1528 = vst [vmem:[#allocation3 + $0x8] sm:$0xff] %v1516
        %1529 = vst [vmem:[#allocation3 + $0x10] sm:$0xff] %v1517
        %1530 = vst [vmem:[#allocation3 + $0x18] sm:$0xff] %v1518
        %1531 = vst [vmem:[#allocation3 + $0x20] sm:$0xff] %v1519
        %1532 = vst [vmem:[#allocation3 + $0x28] sm:$0xff] %v1520
        %1533 = vst [vmem:[#allocation3 + $0x30] sm:$0xff] %v1521
        %1534 = vst [vmem:[#allocation3 + $0x38] sm:$0xff] %v1522
        %1535 = vst [vmem:[#allocation3 + $0x40] sm:$0xff] %v1523
        %1536 = vst [vmem:[#allocation3 + $0x48] sm:$0xff] %v1524
        %1537 = vst [vmem:[#allocation3 + $0x50] sm:$0xff] %v1525
        %1538 = vst [vmem:[#allocation3 + $0x58] sm:$0xff] %v1526
        %v1539 = vld [vmem:[%s1036] sm:$0xe]
        %v1540 = vld [vmem:[%s1036 + $0x4] sm:$0xf]
        %v1541 = vld [vmem:[%s1036 + $0x8] sm:$0x1]
        %v1542 = vld [vmem:[%s1036 + $0xc] sm:$0xe]
        %v1543 = vld [vmem:[%s1036 + $0x10] sm:$0xf]
        %v1544 = vld [vmem:[%s1036 + $0x14] sm:$0x1]
        %v1545 = vld [vmem:[%s1036 + $0x18] sm:$0xe]
        %v1546 = vld [vmem:[%s1036 + $0x1c] sm:$0xf]
        %v1547 = vld [vmem:[%s1036 + $0x20] sm:$0x1]
        %v1548 = vld [vmem:[%s1036 + $0x24] sm:$0xe]
        %v1549 = vld [vmem:[%s1036 + $0x28] sm:$0xf]
        %v1550 = vld [vmem:[%s1036 + $0x2c] sm:$0x1]
        %v1551 = vld [vmem:[%s1036 + $0x30] sm:$0xe]
        %v1552 = vld [vmem:[%s1036 + $0x34] sm:$0xf]
        %v1553 = vld [vmem:[%s1036 + $0x38] sm:$0x1]
        %v1554 = vld [vmem:[%s1036 + $0x3c] sm:$0xe]
        %v1555 = vld [vmem:[%s1036 + $0x40] sm:$0xf]
        %v1556 = vld [vmem:[%s1036 + $0x44] sm:$0x1]
        %v1575 = vrot.slane %v1539, 5
        %v1576 = vrot.slane %v1575, 4
        %v1577 = vrot.slane %v1540, 5
        %v1578 = vsel %vm832, %v1576, %v1577
        %v1579 = vrot.slane %v1577, 4
        %v1580 = vrot.slane %v1541, 5
        %v1581 = vsel %vm832, %v1579, %v1580
        %v1582 = vrot.slane %v1542, 5
        %v1583 = vrot.slane %v1582, 4
        %v1584 = vrot.slane %v1543, 5
        %v1585 = vsel %vm832, %v1583, %v1584
        %v1586 = vrot.slane %v1584, 4
        %v1587 = vrot.slane %v1544, 5
        %v1588 = vsel %vm832, %v1586, %v1587
        %v1589 = vrot.slane %v1545, 5
        %v1590 = vrot.slane %v1589, 4
        %v1591 = vrot.slane %v1546, 5
        %v1592 = vsel %vm832, %v1590, %v1591
        %v1593 = vrot.slane %v1591, 4
        %v1594 = vrot.slane %v1547, 5
        %v1595 = vsel %vm832, %v1593, %v1594
        %v1596 = vrot.slane %v1548, 5
        %v1597 = vrot.slane %v1596, 4
        %v1598 = vrot.slane %v1549, 5
        %v1599 = vsel %vm832, %v1597, %v1598
        %v1600 = vrot.slane %v1598, 4
        %v1601 = vrot.slane %v1550, 5
        %v1602 = vsel %vm832, %v1600, %v1601
        %v1603 = vrot.slane %v1551, 5
        %v1604 = vrot.slane %v1603, 4
        %v1605 = vrot.slane %v1552, 5
        %v1606 = vsel %vm832, %v1604, %v1605
        %v1607 = vrot.slane %v1605, 4
        %v1608 = vrot.slane %v1553, 5
        %v1609 = vsel %vm832, %v1607, %v1608
        %v1610 = vrot.slane %v1554, 5
        %v1611 = vrot.slane %v1610, 4
        %v1612 = vrot.slane %v1555, 5
        %v1613 = vsel %vm832, %v1611, %v1612
        %v1614 = vrot.slane %v1612, 4
        %v1615 = vrot.slane %v1556, 5
        %v1616 = vsel %vm832, %v1614, %v1615
        %s1617 = scalar_lea.vmem %s1, 10
        %v1618 = vld [vmem:[%s1617] sm:$0x3]
        %v1619 = vunpack.c.l.b16 %v1578
        %v1620 = vunpack.c.l.b16 %v1581
        %v1621 = vunpack.c.l.b16 %v1585
        %v1622 = vunpack.c.l.b16 %v1588
        %v1623 = vunpack.c.l.b16 %v1592
        %v1624 = vunpack.c.l.b16 %v1595
        %v1625 = vunpack.c.l.b16 %v1599
        %v1626 = vunpack.c.l.b16 %v1602
        %v1627 = vunpack.c.l.b16 %v1606
        %v1628 = vunpack.c.l.b16 %v1609
        %v1629 = vunpack.c.l.b16 %v1613
        %v1630 = vunpack.c.l.b16 %v1616
        %v1631 = vpack.c.b16 %v1620, %v1619
        %v1632 = vpack.c.b16 %v1622, %v1621
        %v1633 = vpack.c.b16 %v1624, %v1623
        %v1634 = vpack.c.b16 %v1626, %v1625
        %v1635 = vpack.c.b16 %v1628, %v1627
        %v1636 = vpack.c.b16 %v1630, %v1629
        %v1638 = vsel %vm355, %v1631, 0
        %v1641 = vsel %vm355, %v1632, 0
        %v1644 = vsel %vm355, %v1633, 0
        %v1647 = vsel %vm355, %v1634, 0
        %v1650 = vsel %vm355, %v1635, 0
        %v1653 = vsel %vm355, %v1636, 0
        %v1656 = vsel %vm374, %v1618, 0
        %1658 = vmatprep.subr.bf16.mxu0 0
        %1659 = vmatpush1.bf16.msra.mxu0 %v1656
        %1660 = vmatprep.subr.bf16.mxu0 0
        %1661 = vmatpush1.bf16.msra.mxu0 0
        %1662 = vmatprep.subr.bf16.mxu0 0
        %1663 = vmatpush1.bf16.msra.mxu0 0
        %1664 = vmatprep.subr.bf16.mxu0 0
        %1665 = vmatpush1.bf16.msra.mxu0 0
        %1666 = vmatprep.subr.bf16.mxu0 0
        %1667 = vmatpush1.bf16.msra.mxu0 0
        %1668 = vmatprep.subr.bf16.mxu0 0
        %1669 = vmatpush1.bf16.msra.mxu0 0
        %1670 = vmatprep.subr.bf16.mxu0 0
        %1671 = vmatpush1.bf16.msra.mxu0 0
        %1672 = vmatprep.subr.bf16.mxu0 0
        %1673 = vmatpush1.bf16.msra.mxu0 0
        %1674 = vmatprep.subr.bf16.mxu0 0
        %1675 = vmatpush1.bf16.msra.mxu0 0
        %1676 = vmatprep.subr.bf16.mxu0 0
        %1677 = vmatpush1.bf16.msra.mxu0 0
        %1678 = vmatprep.subr.bf16.mxu0 0
        %1679 = vmatpush1.bf16.msra.mxu0 0
        %1680 = vmatprep.subr.bf16.mxu0 0
        %1681 = vmatpush1.bf16.msra.mxu0 0
        %1682 = vmatprep.subr.bf16.mxu0 0
        %1683 = vmatpush1.bf16.msra.mxu0 0
        %1684 = vmatprep.subr.bf16.mxu0 0
        %1685 = vmatpush1.bf16.msra.mxu0 0
        %1686 = vmatprep.subr.bf16.mxu0 0
        %1687 = vmatpush1.bf16.msra.mxu0 0
        %1688 = vmatprep.subr.bf16.mxu0 0
        %1689 = vmatpush1.bf16.msra.mxu0 0
        %1690 = vmatprep.mubr.bf16.mxu0 0
        %1691 = vmatmul.mubr.bf16.gmra.mrb[0].mxu0 %v1638
        %v1692 = vpop.f32.mrb[0].mxu0
        %v1693 = vadd.f32 0.0, %v1692
        %v1694 = vpop.f32.mrb[0].mxu0
        %v1695 = vpop.f32.mrb[0].mxu0
        %v1696 = vadd.f32 0.0, %v1695
        %v1697 = vpop.f32.mrb[0].mxu0
        %1698 = vmatprep.mubr.bf16.mxu0 0
        %1699 = vmatmul.mubr.bf16.gmra.mrb[0].mxu0 %v1641
        %v1700 = vpop.f32.mrb[0].mxu0
        %v1701 = vadd.f32 0.0, %v1700
        %v1702 = vpop.f32.mrb[0].mxu0
        %v1703 = vpop.f32.mrb[0].mxu0
        %v1704 = vadd.f32 0.0, %v1703
        %v1705 = vpop.f32.mrb[0].mxu0
        %1706 = vmatprep.mubr.bf16.mxu0 0
        %1707 = vmatmul.mubr.bf16.gmra.mrb[0].mxu0 %v1644
        %v1708 = vpop.f32.mrb[0].mxu0
        %v1709 = vadd.f32 0.0, %v1708
        %v1710 = vpop.f32.mrb[0].mxu0
        %v1711 = vpop.f32.mrb[0].mxu0
        %v1712 = vadd.f32 0.0, %v1711
        %v1713 = vpop.f32.mrb[0].mxu0
        %1714 = vmatprep.mubr.bf16.mxu0 0
        %1715 = vmatmul.mubr.bf16.gmra.mrb[0].mxu0 %v1647
        %v1716 = vpop.f32.mrb[0].mxu0
        %v1717 = vadd.f32 0.0, %v1716
        %v1718 = vpop.f32.mrb[0].mxu0
        %v1719 = vpop.f32.mrb[0].mxu0
        %v1720 = vadd.f32 0.0, %v1719
        %v1721 = vpop.f32.mrb[0].mxu0
        %1722 = vmatprep.mubr.bf16.mxu0 0
        %1723 = vmatmul.mubr.bf16.gmra.mrb[0].mxu0 %v1650
        %v1724 = vpop.f32.mrb[0].mxu0
        %v1725 = vadd.f32 0.0, %v1724
        %v1726 = vpop.f32.mrb[0].mxu0
        %v1727 = vpop.f32.mrb[0].mxu0
        %v1728 = vadd.f32 0.0, %v1727
        %v1729 = vpop.f32.mrb[0].mxu0
        %1730 = vmatprep.mubr.bf16.mxu0 0
        %1731 = vmatmul.mubr.bf16.gmra.mrb[0].mxu0 %v1653
        %v1732 = vpop.f32.mrb[0].mxu0
        %v1733 = vadd.f32 0.0, %v1732
        %v1734 = vpop.f32.mrb[0].mxu0
        %v1735 = vpop.f32.mrb[0].mxu0
        %v1736 = vadd.f32 0.0, %v1735
        %v1737 = vpop.f32.mrb[0].mxu0
        %1738 = vdwg.mxu0
        %v1739 = vld [vmem:[#allocation3] sm:$0xff]
        %v1740 = vld [vmem:[#allocation3 + $0x8] sm:$0xff]
        %v1741 = vld [vmem:[#allocation3 + $0x10] sm:$0xff]
        %v1742 = vld [vmem:[#allocation3 + $0x18] sm:$0xff]
        %v1743 = vld [vmem:[#allocation3 + $0x20] sm:$0xff]
        %v1744 = vld [vmem:[#allocation3 + $0x28] sm:$0xff]
        %v1745 = vld [vmem:[#allocation3 + $0x30] sm:$0xff]
        %v1746 = vld [vmem:[#allocation3 + $0x38] sm:$0xff]
        %v1747 = vld [vmem:[#allocation3 + $0x40] sm:$0xff]
        %v1748 = vld [vmem:[#allocation3 + $0x48] sm:$0xff]
        %v1749 = vld [vmem:[#allocation3 + $0x50] sm:$0xff]
        %v1750 = vld [vmem:[#allocation3 + $0x58] sm:$0xff]
        %v1751 = vadd.f32 %v1739, %v1693
        %v1752 = vadd.f32 %v1740, %v1696
        %v1753 = vadd.f32 %v1741, %v1701
        %v1754 = vadd.f32 %v1742, %v1704
        %v1755 = vadd.f32 %v1743, %v1709
        %v1756 = vadd.f32 %v1744, %v1712
        %v1757 = vadd.f32 %v1745, %v1717
        %v1758 = vadd.f32 %v1746, %v1720
        %v1759 = vadd.f32 %v1747, %v1725
        %v1760 = vadd.f32 %v1748, %v1728
        %v1761 = vadd.f32 %v1749, %v1733
        %v1762 = vadd.f32 %v1750, %v1736
        %1763 = vst [vmem:[#allocation3] sm:$0xff] %v1751
        %1764 = vst [vmem:[#allocation3 + $0x8] sm:$0xff] %v1752
        %1765 = vst [vmem:[#allocation3 + $0x10] sm:$0xff] %v1753
        %1766 = vst [vmem:[#allocation3 + $0x18] sm:$0xff] %v1754
        %1767 = vst [vmem:[#allocation3 + $0x20] sm:$0xff] %v1755
        %1768 = vst [vmem:[#allocation3 + $0x28] sm:$0xff] %v1756
        %1769 = vst [vmem:[#allocation3 + $0x30] sm:$0xff] %v1757
        %1770 = vst [vmem:[#allocation3 + $0x38] sm:$0xff] %v1758
        %1771 = vst [vmem:[#allocation3 + $0x40] sm:$0xff] %v1759
        %1772 = vst [vmem:[#allocation3 + $0x48] sm:$0xff] %v1760
        %1773 = vst [vmem:[#allocation3 + $0x50] sm:$0xff] %v1761
        %1774 = vst [vmem:[#allocation3 + $0x58] sm:$0xff] %v1762
        %s1775 = sadd.s32 %s308, 2
        %s1776 = smul.u32 %s1775, 3
        %s1777 = smul.addr %s1776, 4
        %s1778 = scalar_lea.vmem %s305, %s1777
        %v1779 = vld [vmem:[%s1778] sm:$0xf]
        %v1780 = vld [vmem:[%s1778 + $0x4] sm:$0xf]
        %v1781 = vld [vmem:[%s1778 + $0xc] sm:$0xf]
        %v1782 = vld [vmem:[%s1778 + $0x10] sm:$0xf]
        %v1783 = vld [vmem:[%s1778 + $0x18] sm:$0xf]
        %v1784 = vld [vmem:[%s1778 + $0x1c] sm:$0xf]
        %v1785 = vld [vmem:[%s1778 + $0x24] sm:$0xf]
        %v1786 = vld [vmem:[%s1778 + $0x28] sm:$0xf]
        %v1787 = vld [vmem:[%s1778 + $0x30] sm:$0xf]
        %v1788 = vld [vmem:[%s1778 + $0x34] sm:$0xf]
        %v1789 = vld [vmem:[%s1778 + $0x3c] sm:$0xf]
        %v1790 = vld [vmem:[%s1778 + $0x40] sm:$0xf]
        %s1791 = scalar_lea.vmem %s1, 12
        %v1792 = vld [vmem:[%s1791] sm:$0x3]
        %v1805 = vunpack.c.l.b16 %v1779
        %v1806 = vunpack.c.l.b16 %v1780
        %v1807 = vunpack.c.l.b16 %v1781
        %v1808 = vunpack.c.l.b16 %v1782
        %v1809 = vunpack.c.l.b16 %v1783
        %v1810 = vunpack.c.l.b16 %v1784
        %v1811 = vunpack.c.l.b16 %v1785
        %v1812 = vunpack.c.l.b16 %v1786
        %v1813 = vunpack.c.l.b16 %v1787
        %v1814 = vunpack.c.l.b16 %v1788
        %v1815 = vunpack.c.l.b16 %v1789
        %v1816 = vunpack.c.l.b16 %v1790
        %v1817 = vpack.c.b16 %v1806, %v1805
        %v1818 = vpack.c.b16 %v1808, %v1807
        %v1819 = vpack.c.b16 %v1810, %v1809
        %v1820 = vpack.c.b16 %v1812, %v1811
        %v1821 = vpack.c.b16 %v1814, %v1813
        %v1822 = vpack.c.b16 %v1816, %v1815
        %v1824 = vsel %vm355, %v1817, 0
        %v1827 = vsel %vm355, %v1818, 0
        %v1830 = vsel %vm355, %v1819, 0
        %v1833 = vsel %vm355, %v1820, 0
        %v1836 = vsel %vm355, %v1821, 0
        %v1839 = vsel %vm355, %v1822, 0
        %v1842 = vsel %vm374, %v1792, 0
        %1844 = vmatprep.subr.bf16.mxu0 0
        %1845 = vmatpush1.bf16.msra.mxu0 %v1842
        %1846 = vmatprep.subr.bf16.mxu0 0
        %1847 = vmatpush1.bf16.msra.mxu0 0
        %1848 = vmatprep.subr.bf16.mxu0 0
        %1849 = vmatpush1.bf16.msra.mxu0 0
        %1850 = vmatprep.subr.bf16.mxu0 0
        %1851 = vmatpush1.bf16.msra.mxu0 0
        %1852 = vmatprep.subr.bf16.mxu0 0
        %1853 = vmatpush1.bf16.msra.mxu0 0
        %1854 = vmatprep.subr.bf16.mxu0 0
        %1855 = vmatpush1.bf16.msra.mxu0 0
        %1856 = vmatprep.subr.bf16.mxu0 0
        %1857 = vmatpush1.bf16.msra.mxu0 0
        %1858 = vmatprep.subr.bf16.mxu0 0
        %1859 = vmatpush1.bf16.msra.mxu0 0
        %1860 = vmatprep.subr.bf16.mxu0 0
        %1861 = vmatpush1.bf16.msra.mxu0 0
        %1862 = vmatprep.subr.bf16.mxu0 0
        %1863 = vmatpush1.bf16.msra.mxu0 0
        %1864 = vmatprep.subr.bf16.mxu0 0
        %1865 = vmatpush1.bf16.msra.mxu0 0
        %1866 = vmatprep.subr.bf16.mxu0 0
        %1867 = vmatpush1.bf16.msra.mxu0 0
        %1868 = vmatprep.subr.bf16.mxu0 0
        %1869 = vmatpush1.bf16.msra.mxu0 0
        %1870 = vmatprep.subr.bf16.mxu0 0
        %1871 = vmatpush1.bf16.msra.mxu0 0
        %1872 = vmatprep.subr.bf16.mxu0 0
        %1873 = vmatpush1.bf16.msra.mxu0 0
        %1874 = vmatprep.subr.bf16.mxu0 0
        %1875 = vmatpush1.bf16.msra.mxu0 0
        %1876 = vmatprep.mubr.bf16.mxu0 0
        %1877 = vmatmul.mubr.bf16.gmra.mrb[0].mxu0 %v1824
        %v1878 = vpop.f32.mrb[0].mxu0
        %v1879 = vadd.f32 0.0, %v1878
        %v1880 = vpop.f32.mrb[0].mxu0
        %v1881 = vpop.f32.mrb[0].mxu0
        %v1882 = vadd.f32 0.0, %v1881
        %v1883 = vpop.f32.mrb[0].mxu0
        %1884 = vmatprep.mubr.bf16.mxu0 0
        %1885 = vmatmul.mubr.bf16.gmra.mrb[0].mxu0 %v1827
        %v1886 = vpop.f32.mrb[0].mxu0
        %v1887 = vadd.f32 0.0, %v1886
        %v1888 = vpop.f32.mrb[0].mxu0
        %v1889 = vpop.f32.mrb[0].mxu0
        %v1890 = vadd.f32 0.0, %v1889
        %v1891 = vpop.f32.mrb[0].mxu0
        %1892 = vmatprep.mubr.bf16.mxu0 0
        %1893 = vmatmul.mubr.bf16.gmra.mrb[0].mxu0 %v1830
        %v1894 = vpop.f32.mrb[0].mxu0
        %v1895 = vadd.f32 0.0, %v1894
        %v1896 = vpop.f32.mrb[0].mxu0
        %v1897 = vpop.f32.mrb[0].mxu0
        %v1898 = vadd.f32 0.0, %v1897
        %v1899 = vpop.f32.mrb[0].mxu0
        %1900 = vmatprep.mubr.bf16.mxu0 0
        %1901 = vmatmul.mubr.bf16.gmra.mrb[0].mxu0 %v1833
        %v1902 = vpop.f32.mrb[0].mxu0
        %v1903 = vadd.f32 0.0, %v1902
        %v1904 = vpop.f32.mrb[0].mxu0
        %v1905 = vpop.f32.mrb[0].mxu0
        %v1906 = vadd.f32 0.0, %v1905
        %v1907 = vpop.f32.mrb[0].mxu0
        %1908 = vmatprep.mubr.bf16.mxu0 0
        %1909 = vmatmul.mubr.bf16.gmra.mrb[0].mxu0 %v1836
        %v1910 = vpop.f32.mrb[0].mxu0
        %v1911 = vadd.f32 0.0, %v1910
        %v1912 = vpop.f32.mrb[0].mxu0
        %v1913 = vpop.f32.mrb[0].mxu0
        %v1914 = vadd.f32 0.0, %v1913
        %v1915 = vpop.f32.mrb[0].mxu0
        %1916 = vmatprep.mubr.bf16.mxu0 0
        %1917 = vmatmul.mubr.bf16.gmra.mrb[0].mxu0 %v1839
        %v1918 = vpop.f32.mrb[0].mxu0
        %v1919 = vadd.f32 0.0, %v1918
        %v1920 = vpop.f32.mrb[0].mxu0
        %v1921 = vpop.f32.mrb[0].mxu0
        %v1922 = vadd.f32 0.0, %v1921
        %v1923 = vpop.f32.mrb[0].mxu0
        %1924 = vdwg.mxu0
        %v1925 = vld [vmem:[#allocation3] sm:$0xff]
        %v1926 = vld [vmem:[#allocation3 + $0x8] sm:$0xff]
        %v1927 = vld [vmem:[#allocation3 + $0x10] sm:$0xff]
        %v1928 = vld [vmem:[#allocation3 + $0x18] sm:$0xff]
        %v1929 = vld [vmem:[#allocation3 + $0x20] sm:$0xff]
        %v1930 = vld [vmem:[#allocation3 + $0x28] sm:$0xff]
        %v1931 = vld [vmem:[#allocation3 + $0x30] sm:$0xff]
        %v1932 = vld [vmem:[#allocation3 + $0x38] sm:$0xff]
        %v1933 = vld [vmem:[#allocation3 + $0x40] sm:$0xff]
        %v1934 = vld [vmem:[#allocation3 + $0x48] sm:$0xff]
        %v1935 = vld [vmem:[#allocation3 + $0x50] sm:$0xff]
        %v1936 = vld [vmem:[#allocation3 + $0x58] sm:$0xff]
        %v1937 = vadd.f32 %v1925, %v1879
        %v1938 = vadd.f32 %v1926, %v1882
        %v1939 = vadd.f32 %v1927, %v1887
        %v1940 = vadd.f32 %v1928, %v1890
        %v1941 = vadd.f32 %v1929, %v1895
        %v1942 = vadd.f32 %v1930, %v1898
        %v1943 = vadd.f32 %v1931, %v1903
        %v1944 = vadd.f32 %v1932, %v1906
        %v1945 = vadd.f32 %v1933, %v1911
        %v1946 = vadd.f32 %v1934, %v1914
        %v1947 = vadd.f32 %v1935, %v1919
        %v1948 = vadd.f32 %v1936, %v1922
        %1949 = vst [vmem:[#allocation3] sm:$0xff] %v1937
        %1950 = vst [vmem:[#allocation3 + $0x8] sm:$0xff] %v1938
        %1951 = vst [vmem:[#allocation3 + $0x10] sm:$0xff] %v1939
        %1952 = vst [vmem:[#allocation3 + $0x18] sm:$0xff] %v1940
        %1953 = vst [vmem:[#allocation3 + $0x20] sm:$0xff] %v1941
        %1954 = vst [vmem:[#allocation3 + $0x28] sm:$0xff] %v1942
        %1955 = vst [vmem:[#allocation3 + $0x30] sm:$0xff] %v1943
        %1956 = vst [vmem:[#allocation3 + $0x38] sm:$0xff] %v1944
        %1957 = vst [vmem:[#allocation3 + $0x40] sm:$0xff] %v1945
        %1958 = vst [vmem:[#allocation3 + $0x48] sm:$0xff] %v1946
        %1959 = vst [vmem:[#allocation3 + $0x50] sm:$0xff] %v1947
        %1960 = vst [vmem:[#allocation3 + $0x58] sm:$0xff] %v1948
        %v1961 = vld [vmem:[%s1778] sm:$0xf]
        %v1962 = vld [vmem:[%s1778 + $0x4] sm:$0xf]
        %v1963 = vld [vmem:[%s1778 + $0x8] sm:$0x1]
        %v1964 = vld [vmem:[%s1778 + $0xc] sm:$0xf]
        %v1965 = vld [vmem:[%s1778 + $0x10] sm:$0xf]
        %v1966 = vld [vmem:[%s1778 + $0x14] sm:$0x1]
        %v1967 = vld [vmem:[%s1778 + $0x18] sm:$0xf]
        %v1968 = vld [vmem:[%s1778 + $0x1c] sm:$0xf]
        %v1969 = vld [vmem:[%s1778 + $0x20] sm:$0x1]
        %v1970 = vld [vmem:[%s1778 + $0x24] sm:$0xf]
        %v1971 = vld [vmem:[%s1778 + $0x28] sm:$0xf]
        %v1972 = vld [vmem:[%s1778 + $0x2c] sm:$0x1]
        %v1973 = vld [vmem:[%s1778 + $0x30] sm:$0xf]
        %v1974 = vld [vmem:[%s1778 + $0x34] sm:$0xf]
        %v1975 = vld [vmem:[%s1778 + $0x38] sm:$0x1]
        %v1976 = vld [vmem:[%s1778 + $0x3c] sm:$0xf]
        %v1977 = vld [vmem:[%s1778 + $0x40] sm:$0xf]
        %v1978 = vld [vmem:[%s1778 + $0x44] sm:$0x1]
        %v1980 = vshrl.u32 %v1961, 16
        %v1982 = vrot.slane %v1980, 4
        %v1983 = vshll.u32 %v1961, 16
        %v1985 = vrot.slane %v1983, 5
        %v1986 = vor.u32 %v1982, %v1985
        %v1987 = vrot.slane %v1986, 4
        %v1989 = vshll.u32 %v1962, 16
        %v1991 = vrot.slane %v1989, 5
        %v1992 = vsel %vm491, %v1987, %v1991
        %v1993 = vshrl.u32 %v1962, 16
        %v1995 = vrot.slane %v1993, 4
        %v1996 = vor.u32 %v1995, %v1991
        %v1997 = vrot.slane %v1996, 4
        %v1999 = vshll.u32 %v1963, 16
        %v2001 = vrot.slane %v1999, 5
        %v2002 = vsel %vm491, %v1997, %v2001
        %v2004 = vshrl.u32 %v1964, 16
        %v2006 = vrot.slane %v2004, 4
        %v2007 = vshll.u32 %v1964, 16
        %v2009 = vrot.slane %v2007, 5
        %v2010 = vor.u32 %v2006, %v2009
        %v2011 = vrot.slane %v2010, 4
        %v2013 = vshll.u32 %v1965, 16
        %v2015 = vrot.slane %v2013, 5
        %v2016 = vsel %vm491, %v2011, %v2015
        %v2017 = vshrl.u32 %v1965, 16
        %v2019 = vrot.slane %v2017, 4
        %v2020 = vor.u32 %v2019, %v2015
        %v2021 = vrot.slane %v2020, 4
        %v2023 = vshll.u32 %v1966, 16
        %v2025 = vrot.slane %v2023, 5
        %v2026 = vsel %vm491, %v2021, %v2025
        %v2028 = vshrl.u32 %v1967, 16
        %v2030 = vrot.slane %v2028, 4
        %v2031 = vshll.u32 %v1967, 16
        %v2033 = vrot.slane %v2031, 5
        %v2034 = vor.u32 %v2030, %v2033
        %v2035 = vrot.slane %v2034, 4
        %v2037 = vshll.u32 %v1968, 16
        %v2039 = vrot.slane %v2037, 5
        %v2040 = vsel %vm491, %v2035, %v2039
        %v2041 = vshrl.u32 %v1968, 16
        %v2043 = vrot.slane %v2041, 4
        %v2044 = vor.u32 %v2043, %v2039
        %v2045 = vrot.slane %v2044, 4
        %v2047 = vshll.u32 %v1969, 16
        %v2049 = vrot.slane %v2047, 5
        %v2050 = vsel %vm491, %v2045, %v2049
        %v2052 = vshrl.u32 %v1970, 16
        %v2054 = vrot.slane %v2052, 4
        %v2055 = vshll.u32 %v1970, 16
        %v2057 = vrot.slane %v2055, 5
        %v2058 = vor.u32 %v2054, %v2057
        %v2059 = vrot.slane %v2058, 4
        %v2061 = vshll.u32 %v1971, 16
        %v2063 = vrot.slane %v2061, 5
        %v2064 = vsel %vm491, %v2059, %v2063
        %v2065 = vshrl.u32 %v1971, 16
        %v2067 = vrot.slane %v2065, 4
        %v2068 = vor.u32 %v2067, %v2063
        %v2069 = vrot.slane %v2068, 4
        %v2071 = vshll.u32 %v1972, 16
        %v2073 = vrot.slane %v2071, 5
        %v2074 = vsel %vm491, %v2069, %v2073
        %v2076 = vshrl.u32 %v1973, 16
        %v2078 = vrot.slane %v2076, 4
        %v2079 = vshll.u32 %v1973, 16
        %v2081 = vrot.slane %v2079, 5
        %v2082 = vor.u32 %v2078, %v2081
        %v2083 = vrot.slane %v2082, 4
        %v2085 = vshll.u32 %v1974, 16
        %v2087 = vrot.slane %v2085, 5
        %v2088 = vsel %vm491, %v2083, %v2087
        %v2089 = vshrl.u32 %v1974, 16
        %v2091 = vrot.slane %v2089, 4
        %v2092 = vor.u32 %v2091, %v2087
        %v2093 = vrot.slane %v2092, 4
        %v2095 = vshll.u32 %v1975, 16
        %v2097 = vrot.slane %v2095, 5
        %v2098 = vsel %vm491, %v2093, %v2097
        %v2100 = vshrl.u32 %v1976, 16
        %v2102 = vrot.slane %v2100, 4
        %v2103 = vshll.u32 %v1976, 16
        %v2105 = vrot.slane %v2103, 5
        %v2106 = vor.u32 %v2102, %v2105
        %v2107 = vrot.slane %v2106, 4
        %v2109 = vshll.u32 %v1977, 16
        %v2111 = vrot.slane %v2109, 5
        %v2112 = vsel %vm491, %v2107, %v2111
        %v2113 = vshrl.u32 %v1977, 16
        %v2115 = vrot.slane %v2113, 4
        %v2116 = vor.u32 %v2115, %v2111
        %v2117 = vrot.slane %v2116, 4
        %v2119 = vshll.u32 %v1978, 16
        %v2121 = vrot.slane %v2119, 5
        %v2122 = vsel %vm491, %v2117, %v2121
        %s2123 = scalar_lea.vmem %s1, 14
        %v2124 = vld [vmem:[%s2123] sm:$0x3]
        %v2125 = vunpack.c.l.b16 %v1992
        %v2126 = vunpack.c.l.b16 %v2002
        %v2127 = vunpack.c.l.b16 %v2016
        %v2128 = vunpack.c.l.b16 %v2026
        %v2129 = vunpack.c.l.b16 %v2040
        %v2130 = vunpack.c.l.b16 %v2050
        %v2131 = vunpack.c.l.b16 %v2064
        %v2132 = vunpack.c.l.b16 %v2074
        %v2133 = vunpack.c.l.b16 %v2088
        %v2134 = vunpack.c.l.b16 %v2098
        %v2135 = vunpack.c.l.b16 %v2112
        %v2136 = vunpack.c.l.b16 %v2122
        %v2137 = vpack.c.b16 %v2126, %v2125
        %v2138 = vpack.c.b16 %v2128, %v2127
        %v2139 = vpack.c.b16 %v2130, %v2129
        %v2140 = vpack.c.b16 %v2132, %v2131
        %v2141 = vpack.c.b16 %v2134, %v2133
        %v2142 = vpack.c.b16 %v2136, %v2135
        %v2144 = vsel %vm355, %v2137, 0
        %v2147 = vsel %vm355, %v2138, 0
        %v2150 = vsel %vm355, %v2139, 0
        %v2153 = vsel %vm355, %v2140, 0
        %v2156 = vsel %vm355, %v2141, 0
        %v2159 = vsel %vm355, %v2142, 0
        %v2162 = vsel %vm374, %v2124, 0
        %2164 = vmatprep.subr.bf16.mxu0 0
        %2165 = vmatpush1.bf16.msra.mxu0 %v2162
        %2166 = vmatprep.subr.bf16.mxu0 0
        %2167 = vmatpush1.bf16.msra.mxu0 0
        %2168 = vmatprep.subr.bf16.mxu0 0
        %2169 = vmatpush1.bf16.msra.mxu0 0
        %2170 = vmatprep.subr.bf16.mxu0 0
        %2171 = vmatpush1.bf16.msra.mxu0 0
        %2172 = vmatprep.subr.bf16.mxu0 0
        %2173 = vmatpush1.bf16.msra.mxu0 0
        %2174 = vmatprep.subr.bf16.mxu0 0
        %2175 = vmatpush1.bf16.msra.mxu0 0
        %2176 = vmatprep.subr.bf16.mxu0 0
        %2177 = vmatpush1.bf16.msra.mxu0 0
        %2178 = vmatprep.subr.bf16.mxu0 0
        %2179 = vmatpush1.bf16.msra.mxu0 0
        %2180 = vmatprep.subr.bf16.mxu0 0
        %2181 = vmatpush1.bf16.msra.mxu0 0
        %2182 = vmatprep.subr.bf16.mxu0 0
        %2183 = vmatpush1.bf16.msra.mxu0 0
        %2184 = vmatprep.subr.bf16.mxu0 0
        %2185 = vmatpush1.bf16.msra.mxu0 0
        %2186 = vmatprep.subr.bf16.mxu0 0
        %2187 = vmatpush1.bf16.msra.mxu0 0
        %2188 = vmatprep.subr.bf16.mxu0 0
        %2189 = vmatpush1.bf16.msra.mxu0 0
        %2190 = vmatprep.subr.bf16.mxu0 0
        %2191 = vmatpush1.bf16.msra.mxu0 0
        %2192 = vmatprep.subr.bf16.mxu0 0
        %2193 = vmatpush1.bf16.msra.mxu0 0
        %2194 = vmatprep.subr.bf16.mxu0 0
        %2195 = vmatpush1.bf16.msra.mxu0 0
        %2196 = vmatprep.mubr.bf16.mxu0 0
        %2197 = vmatmul.mubr.bf16.gmra.mrb[0].mxu0 %v2144
        %v2198 = vpop.f32.mrb[0].mxu0
        %v2199 = vadd.f32 0.0, %v2198
        %v2200 = vpop.f32.mrb[0].mxu0
        %v2201 = vpop.f32.mrb[0].mxu0
        %v2202 = vadd.f32 0.0, %v2201
        %v2203 = vpop.f32.mrb[0].mxu0
        %2204 = vmatprep.mubr.bf16.mxu0 0
        %2205 = vmatmul.mubr.bf16.gmra.mrb[0].mxu0 %v2147
        %v2206 = vpop.f32.mrb[0].mxu0
        %v2207 = vadd.f32 0.0, %v2206
        %v2208 = vpop.f32.mrb[0].mxu0
        %v2209 = vpop.f32.mrb[0].mxu0
        %v2210 = vadd.f32 0.0, %v2209
        %v2211 = vpop.f32.mrb[0].mxu0
        %2212 = vmatprep.mubr.bf16.mxu0 0
        %2213 = vmatmul.mubr.bf16.gmra.mrb[0].mxu0 %v2150
        %v2214 = vpop.f32.mrb[0].mxu0
        %v2215 = vadd.f32 0.0, %v2214
        %v2216 = vpop.f32.mrb[0].mxu0
        %v2217 = vpop.f32.mrb[0].mxu0
        %v2218 = vadd.f32 0.0, %v2217
        %v2219 = vpop.f32.mrb[0].mxu0
        %2220 = vmatprep.mubr.bf16.mxu0 0
        %2221 = vmatmul.mubr.bf16.gmra.mrb[0].mxu0 %v2153
        %v2222 = vpop.f32.mrb[0].mxu0
        %v2223 = vadd.f32 0.0, %v2222
        %v2224 = vpop.f32.mrb[0].mxu0
        %v2225 = vpop.f32.mrb[0].mxu0
        %v2226 = vadd.f32 0.0, %v2225
        %v2227 = vpop.f32.mrb[0].mxu0
        %2228 = vmatprep.mubr.bf16.mxu0 0
        %2229 = vmatmul.mubr.bf16.gmra.mrb[0].mxu0 %v2156
        %v2230 = vpop.f32.mrb[0].mxu0
        %v2231 = vadd.f32 0.0, %v2230
        %v2232 = vpop.f32.mrb[0].mxu0
        %v2233 = vpop.f32.mrb[0].mxu0
        %v2234 = vadd.f32 0.0, %v2233
        %v2235 = vpop.f32.mrb[0].mxu0
        %2236 = vmatprep.mubr.bf16.mxu0 0
        %2237 = vmatmul.mubr.bf16.gmra.mrb[0].mxu0 %v2159
        %v2238 = vpop.f32.mrb[0].mxu0
        %v2239 = vadd.f32 0.0, %v2238
        %v2240 = vpop.f32.mrb[0].mxu0
        %v2241 = vpop.f32.mrb[0].mxu0
        %v2242 = vadd.f32 0.0, %v2241
        %v2243 = vpop.f32.mrb[0].mxu0
        %2244 = vdwg.mxu0
        %v2245 = vld [vmem:[#allocation3] sm:$0xff]
        %v2246 = vld [vmem:[#allocation3 + $0x8] sm:$0xff]
        %v2247 = vld [vmem:[#allocation3 + $0x10] sm:$0xff]
        %v2248 = vld [vmem:[#allocation3 + $0x18] sm:$0xff]
        %v2249 = vld [vmem:[#allocation3 + $0x20] sm:$0xff]
        %v2250 = vld [vmem:[#allocation3 + $0x28] sm:$0xff]
        %v2251 = vld [vmem:[#allocation3 + $0x30] sm:$0xff]
        %v2252 = vld [vmem:[#allocation3 + $0x38] sm:$0xff]
        %v2253 = vld [vmem:[#allocation3 + $0x40] sm:$0xff]
        %v2254 = vld [vmem:[#allocation3 + $0x48] sm:$0xff]
        %v2255 = vld [vmem:[#allocation3 + $0x50] sm:$0xff]
        %v2256 = vld [vmem:[#allocation3 + $0x58] sm:$0xff]
        %v2257 = vadd.f32 %v2245, %v2199
        %v2258 = vadd.f32 %v2246, %v2202
        %v2259 = vadd.f32 %v2247, %v2207
        %v2260 = vadd.f32 %v2248, %v2210
        %v2261 = vadd.f32 %v2249, %v2215
        %v2262 = vadd.f32 %v2250, %v2218
        %v2263 = vadd.f32 %v2251, %v2223
        %v2264 = vadd.f32 %v2252, %v2226
        %v2265 = vadd.f32 %v2253, %v2231
        %v2266 = vadd.f32 %v2254, %v2234
        %v2267 = vadd.f32 %v2255, %v2239
        %v2268 = vadd.f32 %v2256, %v2242
        %2269 = vst [vmem:[#allocation3] sm:$0xff] %v2257
        %2270 = vst [vmem:[#allocation3 + $0x8] sm:$0xff] %v2258
        %2271 = vst [vmem:[#allocation3 + $0x10] sm:$0xff] %v2259
        %2272 = vst [vmem:[#allocation3 + $0x18] sm:$0xff] %v2260
        %2273 = vst [vmem:[#allocation3 + $0x20] sm:$0xff] %v2261
        %2274 = vst [vmem:[#allocation3 + $0x28] sm:$0xff] %v2262
        %2275 = vst [vmem:[#allocation3 + $0x30] sm:$0xff] %v2263
        %2276 = vst [vmem:[#allocation3 + $0x38] sm:$0xff] %v2264
        %2277 = vst [vmem:[#allocation3 + $0x40] sm:$0xff] %v2265
        %2278 = vst [vmem:[#allocation3 + $0x48] sm:$0xff] %v2266
        %2279 = vst [vmem:[#allocation3 + $0x50] sm:$0xff] %v2267
        %2280 = vst [vmem:[#allocation3 + $0x58] sm:$0xff] %v2268
        %v2281 = vld [vmem:[%s1778] sm:$0xe]
        %v2282 = vld [vmem:[%s1778 + $0x4] sm:$0xf]
        %v2283 = vld [vmem:[%s1778 + $0x8] sm:$0x1]
        %v2284 = vld [vmem:[%s1778 + $0xc] sm:$0xe]
        %v2285 = vld [vmem:[%s1778 + $0x10] sm:$0xf]
        %v2286 = vld [vmem:[%s1778 + $0x14] sm:$0x1]
        %v2287 = vld [vmem:[%s1778 + $0x18] sm:$0xe]
        %v2288 = vld [vmem:[%s1778 + $0x1c] sm:$0xf]
        %v2289 = vld [vmem:[%s1778 + $0x20] sm:$0x1]
        %v2290 = vld [vmem:[%s1778 + $0x24] sm:$0xe]
        %v2291 = vld [vmem:[%s1778 + $0x28] sm:$0xf]
        %v2292 = vld [vmem:[%s1778 + $0x2c] sm:$0x1]
        %v2293 = vld [vmem:[%s1778 + $0x30] sm:$0xe]
        %v2294 = vld [vmem:[%s1778 + $0x34] sm:$0xf]
        %v2295 = vld [vmem:[%s1778 + $0x38] sm:$0x1]
        %v2296 = vld [vmem:[%s1778 + $0x3c] sm:$0xe]
        %v2297 = vld [vmem:[%s1778 + $0x40] sm:$0xf]
        %v2298 = vld [vmem:[%s1778 + $0x44] sm:$0x1]
        %v2317 = vrot.slane %v2281, 5
        %v2318 = vrot.slane %v2317, 4
        %v2319 = vrot.slane %v2282, 5
        %v2320 = vsel %vm832, %v2318, %v2319
        %v2321 = vrot.slane %v2319, 4
        %v2322 = vrot.slane %v2283, 5
        %v2323 = vsel %vm832, %v2321, %v2322
        %v2324 = vrot.slane %v2284, 5
        %v2325 = vrot.slane %v2324, 4
        %v2326 = vrot.slane %v2285, 5
        %v2327 = vsel %vm832, %v2325, %v2326
        %v2328 = vrot.slane %v2326, 4
        %v2329 = vrot.slane %v2286, 5
        %v2330 = vsel %vm832, %v2328, %v2329
        %v2331 = vrot.slane %v2287, 5
        %v2332 = vrot.slane %v2331, 4
        %v2333 = vrot.slane %v2288, 5
        %v2334 = vsel %vm832, %v2332, %v2333
        %v2335 = vrot.slane %v2333, 4
        %v2336 = vrot.slane %v2289, 5
        %v2337 = vsel %vm832, %v2335, %v2336
        %v2338 = vrot.slane %v2290, 5
        %v2339 = vrot.slane %v2338, 4
        %v2340 = vrot.slane %v2291, 5
        %v2341 = vsel %vm832, %v2339, %v2340
        %v2342 = vrot.slane %v2340, 4
        %v2343 = vrot.slane %v2292, 5
        %v2344 = vsel %vm832, %v2342, %v2343
        %v2345 = vrot.slane %v2293, 5
        %v2346 = vrot.slane %v2345, 4
        %v2347 = vrot.slane %v2294, 5
        %v2348 = vsel %vm832, %v2346, %v2347
        %v2349 = vrot.slane %v2347, 4
        %v2350 = vrot.slane %v2295, 5
        %v2351 = vsel %vm832, %v2349, %v2350
        %v2352 = vrot.slane %v2296, 5
        %v2353 = vrot.slane %v2352, 4
        %v2354 = vrot.slane %v2297, 5
        %v2355 = vsel %vm832, %v2353, %v2354
        %v2356 = vrot.slane %v2354, 4
        %v2357 = vrot.slane %v2298, 5
        %v2358 = vsel %vm832, %v2356, %v2357
        %s2359 = scalar_lea.vmem %s1, 16
        %v2360 = vld [vmem:[%s2359] sm:$0x3]
        %v2361 = vunpack.c.l.b16 %v2320
        %v2362 = vunpack.c.l.b16 %v2323
        %v2363 = vunpack.c.l.b16 %v2327
        %v2364 = vunpack.c.l.b16 %v2330
        %v2365 = vunpack.c.l.b16 %v2334
        %v2366 = vunpack.c.l.b16 %v2337
        %v2367 = vunpack.c.l.b16 %v2341
        %v2368 = vunpack.c.l.b16 %v2344
        %v2369 = vunpack.c.l.b16 %v2348
        %v2370 = vunpack.c.l.b16 %v2351
        %v2371 = vunpack.c.l.b16 %v2355
        %v2372 = vunpack.c.l.b16 %v2358
        %v2373 = vpack.c.b16 %v2362, %v2361
        %v2374 = vpack.c.b16 %v2364, %v2363
        %v2375 = vpack.c.b16 %v2366, %v2365
        %v2376 = vpack.c.b16 %v2368, %v2367
        %v2377 = vpack.c.b16 %v2370, %v2369
        %v2378 = vpack.c.b16 %v2372, %v2371
        %v2380 = vsel %vm355, %v2373, 0
        %v2383 = vsel %vm355, %v2374, 0
        %v2386 = vsel %vm355, %v2375, 0
        %v2389 = vsel %vm355, %v2376, 0
        %v2392 = vsel %vm355, %v2377, 0
        %v2395 = vsel %vm355, %v2378, 0
        %v2398 = vsel %vm374, %v2360, 0
        %2400 = vmatprep.subr.bf16.mxu0 0
        %2401 = vmatpush1.bf16.msra.mxu0 %v2398
        %2402 = vmatprep.subr.bf16.mxu0 0
        %2403 = vmatpush1.bf16.msra.mxu0 0
        %2404 = vmatprep.subr.bf16.mxu0 0
        %2405 = vmatpush1.bf16.msra.mxu0 0
        %2406 = vmatprep.subr.bf16.mxu0 0
        %2407 = vmatpush1.bf16.msra.mxu0 0
        %2408 = vmatprep.subr.bf16.mxu0 0
        %2409 = vmatpush1.bf16.msra.mxu0 0
        %2410 = vmatprep.subr.bf16.mxu0 0
        %2411 = vmatpush1.bf16.msra.mxu0 0
        %2412 = vmatprep.subr.bf16.mxu0 0
        %2413 = vmatpush1.bf16.msra.mxu0 0
        %2414 = vmatprep.subr.bf16.mxu0 0
        %2415 = vmatpush1.bf16.msra.mxu0 0
        %2416 = vmatprep.subr.bf16.mxu0 0
        %2417 = vmatpush1.bf16.msra.mxu0 0
        %2418 = vmatprep.subr.bf16.mxu0 0
        %2419 = vmatpush1.bf16.msra.mxu0 0
        %2420 = vmatprep.subr.bf16.mxu0 0
        %2421 = vmatpush1.bf16.msra.mxu0 0
        %2422 = vmatprep.subr.bf16.mxu0 0
        %2423 = vmatpush1.bf16.msra.mxu0 0
        %2424 = vmatprep.subr.bf16.mxu0 0
        %2425 = vmatpush1.bf16.msra.mxu0 0
        %2426 = vmatprep.subr.bf16.mxu0 0
        %2427 = vmatpush1.bf16.msra.mxu0 0
        %2428 = vmatprep.subr.bf16.mxu0 0
        %2429 = vmatpush1.bf16.msra.mxu0 0
        %2430 = vmatprep.subr.bf16.mxu0 0
        %2431 = vmatpush1.bf16.msra.mxu0 0
        %2432 = vmatprep.mubr.bf16.mxu0 0
        %2433 = vmatmul.mubr.bf16.gmra.mrb[0].mxu0 %v2380
        %v2434 = vpop.f32.mrb[0].mxu0
        %v2435 = vadd.f32 0.0, %v2434
        %v2436 = vpop.f32.mrb[0].mxu0
        %v2437 = vpop.f32.mrb[0].mxu0
        %v2438 = vadd.f32 0.0, %v2437
        %v2439 = vpop.f32.mrb[0].mxu0
        %2440 = vmatprep.mubr.bf16.mxu0 0
        %2441 = vmatmul.mubr.bf16.gmra.mrb[0].mxu0 %v2383
        %v2442 = vpop.f32.mrb[0].mxu0
        %v2443 = vadd.f32 0.0, %v2442
        %v2444 = vpop.f32.mrb[0].mxu0
        %v2445 = vpop.f32.mrb[0].mxu0
        %v2446 = vadd.f32 0.0, %v2445
        %v2447 = vpop.f32.mrb[0].mxu0
        %2448 = vmatprep.mubr.bf16.mxu0 0
        %2449 = vmatmul.mubr.bf16.gmra.mrb[0].mxu0 %v2386
        %v2450 = vpop.f32.mrb[0].mxu0
        %v2451 = vadd.f32 0.0, %v2450
        %v2452 = vpop.f32.mrb[0].mxu0
        %v2453 = vpop.f32.mrb[0].mxu0
        %v2454 = vadd.f32 0.0, %v2453
        %v2455 = vpop.f32.mrb[0].mxu0
        %2456 = vmatprep.mubr.bf16.mxu0 0
        %2457 = vmatmul.mubr.bf16.gmra.mrb[0].mxu0 %v2389
        %v2458 = vpop.f32.mrb[0].mxu0
        %v2459 = vadd.f32 0.0, %v2458
        %v2460 = vpop.f32.mrb[0].mxu0
        %v2461 = vpop.f32.mrb[0].mxu0
        %v2462 = vadd.f32 0.0, %v2461
        %v2463 = vpop.f32.mrb[0].mxu0
        %2464 = vmatprep.mubr.bf16.mxu0 0
        %2465 = vmatmul.mubr.bf16.gmra.mrb[0].mxu0 %v2392
        %v2466 = vpop.f32.mrb[0].mxu0
        %v2467 = vadd.f32 0.0, %v2466
        %v2468 = vpop.f32.mrb[0].mxu0
        %v2469 = vpop.f32.mrb[0].mxu0
        %v2470 = vadd.f32 0.0, %v2469
        %v2471 = vpop.f32.mrb[0].mxu0
        %2472 = vmatprep.mubr.bf16.mxu0 0
        %2473 = vmatmul.mubr.bf16.gmra.mrb[0].mxu0 %v2395
        %v2474 = vpop.f32.mrb[0].mxu0
        %v2475 = vadd.f32 0.0, %v2474
        %v2476 = vpop.f32.mrb[0].mxu0
        %v2477 = vpop.f32.mrb[0].mxu0
        %v2478 = vadd.f32 0.0, %v2477
        %v2479 = vpop.f32.mrb[0].mxu0
        %2480 = vdwg.mxu0
        %v2481 = vld [vmem:[#allocation3] sm:$0xff]
        %v2482 = vld [vmem:[#allocation3 + $0x8] sm:$0xff]
        %v2483 = vld [vmem:[#allocation3 + $0x10] sm:$0xff]
        %v2484 = vld [vmem:[#allocation3 + $0x18] sm:$0xff]
        %v2485 = vld [vmem:[#allocation3 + $0x20] sm:$0xff]
        %v2486 = vld [vmem:[#allocation3 + $0x28] sm:$0xff]
        %v2487 = vld [vmem:[#allocation3 + $0x30] sm:$0xff]
        %v2488 = vld [vmem:[#allocation3 + $0x38] sm:$0xff]
        %v2489 = vld [vmem:[#allocation3 + $0x40] sm:$0xff]
        %v2490 = vld [vmem:[#allocation3 + $0x48] sm:$0xff]
        %v2491 = vld [vmem:[#allocation3 + $0x50] sm:$0xff]
        %v2492 = vld [vmem:[#allocation3 + $0x58] sm:$0xff]
        %v2493 = vadd.f32 %v2481, %v2435
        %v2494 = vadd.f32 %v2482, %v2438
        %v2495 = vadd.f32 %v2483, %v2443
        %v2496 = vadd.f32 %v2484, %v2446
        %v2497 = vadd.f32 %v2485, %v2451
        %v2498 = vadd.f32 %v2486, %v2454
        %v2499 = vadd.f32 %v2487, %v2459
        %v2500 = vadd.f32 %v2488, %v2462
        %v2501 = vadd.f32 %v2489, %v2467
        %v2502 = vadd.f32 %v2490, %v2470
        %v2503 = vadd.f32 %v2491, %v2475
        %v2504 = vadd.f32 %v2492, %v2478
        %2505 = vst [vmem:[#allocation3] sm:$0xff] %v2493
        %2506 = vst [vmem:[#allocation3 + $0x8] sm:$0xff] %v2494
        %2507 = vst [vmem:[#allocation3 + $0x10] sm:$0xff] %v2495
        %2508 = vst [vmem:[#allocation3 + $0x18] sm:$0xff] %v2496
        %2509 = vst [vmem:[#allocation3 + $0x20] sm:$0xff] %v2497
        %2510 = vst [vmem:[#allocation3 + $0x28] sm:$0xff] %v2498
        %2511 = vst [vmem:[#allocation3 + $0x30] sm:$0xff] %v2499
        %2512 = vst [vmem:[#allocation3 + $0x38] sm:$0xff] %v2500
        %2513 = vst [vmem:[#allocation3 + $0x40] sm:$0xff] %v2501
        %2514 = vst [vmem:[#allocation3 + $0x48] sm:$0xff] %v2502
        %2515 = vst [vmem:[#allocation3 + $0x50] sm:$0xff] %v2503
        %2516 = vst [vmem:[#allocation3 + $0x58] sm:$0xff] %v2504
        %2517 = vst [vmem:[#allocation2] sm:$0xff] 0.0
        %2518 = vst [vmem:[#allocation2 + $0x8] sm:$0xff] 0.0
        %2519 = vst [vmem:[#allocation2 + $0x10] sm:$0x3] 0.0
        %2520 = vst [vmem:[#allocation2 + $0x18] sm:$0xff] 0.0
        %2521 = vst [vmem:[#allocation2 + $0x20] sm:$0xff] 0.0
        %2522 = vst [vmem:[#allocation2 + $0x28] sm:$0x3] 0.0
        %2523 = vst [vmem:[#allocation2 + $0x30] sm:$0xff] 0.0
        %2524 = vst [vmem:[#allocation2 + $0x38] sm:$0xff] 0.0
        %2525 = vst [vmem:[#allocation2 + $0x40] sm:$0x3] 0.0
        %2526 = vst [vmem:[#allocation2 + $0x48] sm:$0xff] 0.0
        %2527 = vst [vmem:[#allocation2 + $0x50] sm:$0xff] 0.0
        %2528 = vst [vmem:[#allocation2 + $0x58] sm:$0x3] 0.0
        %2529 = vst [vmem:[#allocation2 + $0x60] sm:$0xff] 0.0
        %2530 = vst [vmem:[#allocation2 + $0x68] sm:$0xff] 0.0
        %2531 = vst [vmem:[#allocation2 + $0x70] sm:$0x3] 0.0
        %2532 = vst [vmem:[#allocation2 + $0x78] sm:$0xff] 0.0
        %2533 = vst [vmem:[#allocation2 + $0x80] sm:$0xff] 0.0
        %2534 = vst [vmem:[#allocation2 + $0x88] sm:$0x3] 0.0
        %v2535 = vld [vmem:[#allocation3] sm:$0xff]
        %v2536 = vld [vmem:[#allocation3 + $0x8] sm:$0xff]
        %v2537 = vld [vmem:[#allocation3 + $0x10] sm:$0xff]
        %v2538 = vld [vmem:[#allocation3 + $0x18] sm:$0xff]
        %v2539 = vld [vmem:[#allocation3 + $0x20] sm:$0xff]
        %v2540 = vld [vmem:[#allocation3 + $0x28] sm:$0xff]
        %v2541 = vld [vmem:[#allocation3 + $0x30] sm:$0xff]
        %v2542 = vld [vmem:[#allocation3 + $0x38] sm:$0xff]
        %v2543 = vld [vmem:[#allocation3 + $0x40] sm:$0xff]
        %v2544 = vld [vmem:[#allocation3 + $0x48] sm:$0xff]
        %v2545 = vld [vmem:[#allocation3 + $0x50] sm:$0xff]
        %v2546 = vld [vmem:[#allocation3 + $0x58] sm:$0xff]
        %v2547 = vld [vmem:[%s4] sm:$0x1]
        %v2549 = vlaneseq
        %v2550 = vshrl.u32 %v2549, 7
        %v2551 = vsub.s32 0, %v2550
        %v2552 = vrot.slane %v2547, %v2551
        %v2554 = vadd.f32 %v2535, %v2552
        %v2555 = vadd.f32 %v2536, %v2552
        %v2556 = vadd.f32 %v2537, %v2552
        %v2557 = vadd.f32 %v2538, %v2552
        %v2558 = vadd.f32 %v2539, %v2552
        %v2559 = vadd.f32 %v2540, %v2552
        %v2560 = vadd.f32 %v2541, %v2552
        %v2561 = vadd.f32 %v2542, %v2552
        %v2562 = vadd.f32 %v2543, %v2552
        %v2563 = vadd.f32 %v2544, %v2552
        %v2564 = vadd.f32 %v2545, %v2552
        %v2565 = vadd.f32 %v2546, %v2552
        %v2566 = vmax.f32 %v2554, 0.0
        %v2567 = vmax.f32 %v2555, 0.0
        %v2568 = vmax.f32 %v2556, 0.0
        %v2569 = vmax.f32 %v2557, 0.0
        %v2570 = vmax.f32 %v2558, 0.0
        %v2571 = vmax.f32 %v2559, 0.0
        %v2572 = vmax.f32 %v2560, 0.0
        %v2573 = vmax.f32 %v2561, 0.0
        %v2574 = vmax.f32 %v2562, 0.0
        %v2575 = vmax.f32 %v2563, 0.0
        %v2576 = vmax.f32 %v2564, 0.0
        %v2577 = vmax.f32 %v2565, 0.0
        %2578 = vst [vmem:[#allocation2 + $0x1] sm:$0xff] %v2566
        %2579 = vst [vmem:[#allocation2 + $0x9] sm:$0xff] %v2567
        %2580 = vst [vmem:[#allocation2 + $0x19] sm:$0xff] %v2568
        %2581 = vst [vmem:[#allocation2 + $0x21] sm:$0xff] %v2569
        %2582 = vst [vmem:[#allocation2 + $0x31] sm:$0xff] %v2570
        %2583 = vst [vmem:[#allocation2 + $0x39] sm:$0xff] %v2571
        %2584 = vst [vmem:[#allocation2 + $0x49] sm:$0xff] %v2572
        %2585 = vst [vmem:[#allocation2 + $0x51] sm:$0xff] %v2573
        %2586 = vst [vmem:[#allocation2 + $0x61] sm:$0xff] %v2574
        %2587 = vst [vmem:[#allocation2 + $0x69] sm:$0xff] %v2575
        %2588 = vst [vmem:[#allocation2 + $0x79] sm:$0xff] %v2576
        %2589 = vst [vmem:[#allocation2 + $0x81] sm:$0xff] %v2577
        %p2590 = scmp.eq.s32.totalorder %s27, 0
        // Predicated region
        $region53: #{tpu_custom_call.1} parent=47 // pred_check
          %p2591 = pneg %p2590
        $region54: #{tpu_custom_call.1} parent=47 // pred_check_branch
          %2593 = sbr.rel (%p2591) target = $region56
        $region55: #{tpu_custom_call.1} parent=47 // pred_region
          %2594 = vst [vmem:[#allocation2] sm:$0xff] 0.0
          %2595 = vst [vmem:[#allocation2 + $0x8] sm:$0xff] 0.0
          %2596 = vst [vmem:[#allocation2 + $0x10] sm:$0x3] 0.0
        $region56: #{tpu_custom_call.1} parent=47 // pred_fallthru
          _
        %p2597 = scmp.eq.s32.totalorder %s27, 3
        // Predicated region
        $region57: #{tpu_custom_call.1} parent=47 // pred_check
          %p2598 = pneg %p2597
        $region58: #{tpu_custom_call.1} parent=47 // pred_check_branch
          %2600 = sbr.rel (%p2598) target = $region60
        $region59: #{tpu_custom_call.1} parent=47 // pred_region
          %s2601 = scalar_lea.vmem [#allocation2], 120
          %2602 = vst [vmem:[%s2601] sm:$0xff] 0.0
          %2603 = vst [vmem:[%s2601 + $0x8] sm:$0xff] 0.0
          %2604 = vst [vmem:[%s2601 + $0x10] sm:$0x3] 0.0
        $region60: #{tpu_custom_call.1} parent=47 // pred_fallthru
          _
        %v2605 = vld [vmem:[#allocation2] sm:$0xff]
        %v2606 = vld [vmem:[#allocation2 + $0x8] sm:$0xff]
        %v2607 = vld [vmem:[#allocation2 + $0x18] sm:$0xff]
        %v2608 = vld [vmem:[#allocation2 + $0x20] sm:$0xff]
        %v2609 = vld [vmem:[#allocation2 + $0x30] sm:$0xff]
        %v2610 = vld [vmem:[#allocation2 + $0x38] sm:$0xff]
        %v2611 = vld [vmem:[#allocation2 + $0x48] sm:$0xff]
        %v2612 = vld [vmem:[#allocation2 + $0x50] sm:$0xff]
        %v2613 = vpack.c.bf16 %v2606, %v2605
        %v2614 = vpack.c.bf16 %v2608, %v2607
        %v2615 = vpack.c.bf16 %v2610, %v2609
        %v2616 = vpack.c.bf16 %v2612, %v2611
        %v2617 = vld [vmem:[#allocation5] sm:$0xf]
        %v2618 = vld [vmem:[#allocation5 + $0x4] sm:$0xf]
        %v2619 = vld [vmem:[#allocation5 + $0x8] sm:$0xf]
        %v2620 = vld [vmem:[#allocation5 + $0xc] sm:$0xf]
        %v2621 = vld [vmem:[#allocation5 + $0x10] sm:$0xf]
        %v2622 = vld [vmem:[#allocation5 + $0x14] sm:$0xf]
        %v2623 = vld [vmem:[#allocation5 + $0x18] sm:$0xf]
        %v2624 = vld [vmem:[#allocation5 + $0x1c] sm:$0xf]
        %v2625 = vld [vmem:[#allocation5 + $0x20] sm:$0xf]
        %v2626 = vld [vmem:[#allocation5 + $0x24] sm:$0xf]
        %v2627 = vld [vmem:[#allocation5 + $0x28] sm:$0xf]
        %v2628 = vld [vmem:[#allocation5 + $0x2c] sm:$0xf]
        %v2629 = vld [vmem:[#allocation5 + $0x30] sm:$0xf]
        %v2630 = vld [vmem:[#allocation5 + $0x34] sm:$0xf]
        %v2631 = vld [vmem:[#allocation5 + $0x38] sm:$0xf]
        %v2632 = vld [vmem:[#allocation5 + $0x3c] sm:$0xf]
        %v2649 = vunpack.c.l.b16 %v2617
        %v2650 = vunpack.c.l.b16 %v2618
        %v2651 = vunpack.c.l.b16 %v2619
        %v2652 = vunpack.c.l.b16 %v2620
        %v2653 = vunpack.c.l.b16 %v2621
        %v2654 = vunpack.c.l.b16 %v2622
        %v2655 = vunpack.c.l.b16 %v2623
        %v2656 = vunpack.c.l.b16 %v2624
        %v2657 = vunpack.c.l.b16 %v2625
        %v2658 = vunpack.c.l.b16 %v2626
        %v2659 = vunpack.c.l.b16 %v2627
        %v2660 = vunpack.c.l.b16 %v2628
        %v2661 = vunpack.c.l.b16 %v2629
        %v2662 = vunpack.c.l.b16 %v2630
        %v2663 = vunpack.c.l.b16 %v2631
        %v2664 = vunpack.c.l.b16 %v2632
        %v2665 = vpack.c.b16 %v2650, %v2649
        %v2666 = vpack.c.b16 %v2652, %v2651
        %v2667 = vpack.c.b16 %v2654, %v2653
        %v2668 = vpack.c.b16 %v2656, %v2655
        %v2669 = vpack.c.b16 %v2658, %v2657
        %v2670 = vpack.c.b16 %v2660, %v2659
        %v2671 = vpack.c.b16 %v2662, %v2661
        %v2672 = vpack.c.b16 %v2664, %v2663
        %2681 = vmatprep.subr.bf16.mxu0 0
        %2682 = vmatpush1.bf16.msra.mxu0 %v2665
        %2683 = vmatprep.subr.bf16.mxu0 0
        %2684 = vmatpush1.bf16.msra.mxu0 %v2666
        %2685 = vmatprep.subr.bf16.mxu0 0
        %2686 = vmatpush1.bf16.msra.mxu0 %v2667
        %2687 = vmatprep.subr.bf16.mxu0 0
        %2688 = vmatpush1.bf16.msra.mxu0 %v2668
        %2689 = vmatprep.subr.bf16.mxu0 0
        %2690 = vmatpush1.bf16.msra.mxu0 %v2669
        %2691 = vmatprep.subr.bf16.mxu0 0
        %2692 = vmatpush1.bf16.msra.mxu0 %v2670
        %2693 = vmatprep.subr.bf16.mxu0 0
        %2694 = vmatpush1.bf16.msra.mxu0 %v2671
        %2695 = vmatprep.subr.bf16.mxu0 0
        %2696 = vmatpush1.bf16.msra.mxu0 %v2672
        %2697 = vmatprep.subr.bf16.mxu0 0
        %2698 = vmatpush1.bf16.msra.mxu0 0
        %2699 = vmatprep.subr.bf16.mxu0 0
        %2700 = vmatpush1.bf16.msra.mxu0 0
        %2701 = vmatprep.subr.bf16.mxu0 0
        %2702 = vmatpush1.bf16.msra.mxu0 0
        %2703 = vmatprep.subr.bf16.mxu0 0
        %2704 = vmatpush1.bf16.msra.mxu0 0
        %2705 = vmatprep.subr.bf16.mxu0 0
        %2706 = vmatpush1.bf16.msra.mxu0 0
        %2707 = vmatprep.subr.bf16.mxu0 0
        %2708 = vmatpush1.bf16.msra.mxu0 0
        %2709 = vmatprep.subr.bf16.mxu0 0
        %2710 = vmatpush1.bf16.msra.mxu0 0
        %2711 = vmatprep.subr.bf16.mxu0 0
        %2712 = vmatpush1.bf16.msra.mxu0 0
        %2713 = vmatprep.mubr.bf16.mxu0 0
        %2714 = vmatmul.mubr.bf16.gmra.mrb[0].mxu0 %v2613
        %v2715 = vpop.f32.mrb[0].mxu0
        %v2716 = vadd.f32 0.0, %v2715
        %v2717 = vpop.f32.mrb[0].mxu0
        %v2718 = vpop.f32.mrb[0].mxu0
        %v2719 = vadd.f32 0.0, %v2718
        %v2720 = vpop.f32.mrb[0].mxu0
        %2721 = vmatprep.mubr.bf16.mxu0 0
        %2722 = vmatmul.mubr.bf16.gmra.mrb[0].mxu0 %v2614
        %v2723 = vpop.f32.mrb[0].mxu0
        %v2724 = vadd.f32 0.0, %v2723
        %v2725 = vpop.f32.mrb[0].mxu0
        %v2726 = vpop.f32.mrb[0].mxu0
        %v2727 = vadd.f32 0.0, %v2726
        %v2728 = vpop.f32.mrb[0].mxu0
        %2729 = vmatprep.mubr.bf16.mxu0 0
        %2730 = vmatmul.mubr.bf16.gmra.mrb[0].mxu0 %v2615
        %v2731 = vpop.f32.mrb[0].mxu0
        %v2732 = vadd.f32 0.0, %v2731
        %v2733 = vpop.f32.mrb[0].mxu0
        %v2734 = vpop.f32.mrb[0].mxu0
        %v2735 = vadd.f32 0.0, %v2734
        %v2736 = vpop.f32.mrb[0].mxu0
        %2737 = vmatprep.mubr.bf16.mxu0 0
        %2738 = vmatmul.mubr.bf16.gmra.mrb[0].mxu0 %v2616
        %v2739 = vpop.f32.mrb[0].mxu0
        %v2740 = vadd.f32 0.0, %v2739
        %v2741 = vpop.f32.mrb[0].mxu0
        %v2742 = vpop.f32.mrb[0].mxu0
        %v2743 = vadd.f32 0.0, %v2742
        %v2744 = vpop.f32.mrb[0].mxu0
        %2745 = vdwg.mxu0
        %2746 = vst [vmem:[#allocation4] sm:$0xff] %v2716
        %2747 = vst [vmem:[#allocation4 + $0x8] sm:$0xff] %v2719
        %2748 = vst [vmem:[#allocation4 + $0x10] sm:$0xff] %v2724
        %2749 = vst [vmem:[#allocation4 + $0x18] sm:$0xff] %v2727
        %2750 = vst [vmem:[#allocation4 + $0x20] sm:$0xff] %v2732
        %2751 = vst [vmem:[#allocation4 + $0x28] sm:$0xff] %v2735
        %2752 = vst [vmem:[#allocation4 + $0x30] sm:$0xff] %v2740
        %2753 = vst [vmem:[#allocation4 + $0x38] sm:$0xff] %v2743
        %v2754 = vld [vmem:[#allocation2 + $0x1] sm:$0xff]
        %v2755 = vld [vmem:[#allocation2 + $0x9] sm:$0xff]
        %v2756 = vld [vmem:[#allocation2 + $0x19] sm:$0xff]
        %v2757 = vld [vmem:[#allocation2 + $0x21] sm:$0xff]
        %v2758 = vld [vmem:[#allocation2 + $0x31] sm:$0xff]
        %v2759 = vld [vmem:[#allocation2 + $0x39] sm:$0xff]
        %v2760 = vld [vmem:[#allocation2 + $0x49] sm:$0xff]
        %v2761 = vld [vmem:[#allocation2 + $0x51] sm:$0xff]
        %v2762 = vpack.c.bf16 %v2755, %v2754
        %v2763 = vpack.c.bf16 %v2757, %v2756
        %v2764 = vpack.c.bf16 %v2759, %v2758
        %v2765 = vpack.c.bf16 %v2761, %v2760
        %s2766 = scalar_lea.vmem [#allocation5], 64
        %v2767 = vld [vmem:[%s2766] sm:$0xf]
        %v2768 = vld [vmem:[%s2766 + $0x4] sm:$0xf]
        %v2769 = vld [vmem:[%s2766 + $0x8] sm:$0xf]
        %v2770 = vld [vmem:[%s2766 + $0xc] sm:$0xf]
        %v2771 = vld [vmem:[%s2766 + $0x10] sm:$0xf]
        %v2772 = vld [vmem:[%s2766 + $0x14] sm:$0xf]
        %v2773 = vld [vmem:[%s2766 + $0x18] sm:$0xf]
        %v2774 = vld [vmem:[%s2766 + $0x1c] sm:$0xf]
        %v2775 = vld [vmem:[%s2766 + $0x20] sm:$0xf]
        %v2776 = vld [vmem:[%s2766 + $0x24] sm:$0xf]
        %v2777 = vld [vmem:[%s2766 + $0x28] sm:$0xf]
        %v2778 = vld [vmem:[%s2766 + $0x2c] sm:$0xf]
        %v2779 = vld [vmem:[%s2766 + $0x30] sm:$0xf]
        %v2780 = vld [vmem:[%s2766 + $0x34] sm:$0xf]
        %v2781 = vld [vmem:[%s2766 + $0x38] sm:$0xf]
        %v2782 = vld [vmem:[%s2766 + $0x3c] sm:$0xf]
        %v2799 = vunpack.c.l.b16 %v2767
        %v2800 = vunpack.c.l.b16 %v2768
        %v2801 = vunpack.c.l.b16 %v2769
        %v2802 = vunpack.c.l.b16 %v2770
        %v2803 = vunpack.c.l.b16 %v2771
        %v2804 = vunpack.c.l.b16 %v2772
        %v2805 = vunpack.c.l.b16 %v2773
        %v2806 = vunpack.c.l.b16 %v2774
        %v2807 = vunpack.c.l.b16 %v2775
        %v2808 = vunpack.c.l.b16 %v2776
        %v2809 = vunpack.c.l.b16 %v2777
        %v2810 = vunpack.c.l.b16 %v2778
        %v2811 = vunpack.c.l.b16 %v2779
        %v2812 = vunpack.c.l.b16 %v2780
        %v2813 = vunpack.c.l.b16 %v2781
        %v2814 = vunpack.c.l.b16 %v2782
        %v2815 = vpack.c.b16 %v2800, %v2799
        %v2816 = vpack.c.b16 %v2802, %v2801
        %v2817 = vpack.c.b16 %v2804, %v2803
        %v2818 = vpack.c.b16 %v2806, %v2805
        %v2819 = vpack.c.b16 %v2808, %v2807
        %v2820 = vpack.c.b16 %v2810, %v2809
        %v2821 = vpack.c.b16 %v2812, %v2811
        %v2822 = vpack.c.b16 %v2814, %v2813
        %2831 = vmatprep.subr.bf16.mxu0 0
        %2832 = vmatpush1.bf16.msra.mxu0 %v2815
        %2833 = vmatprep.subr.bf16.mxu0 0
        %2834 = vmatpush1.bf16.msra.mxu0 %v2816
        %2835 = vmatprep.subr.bf16.mxu0 0
        %2836 = vmatpush1.bf16.msra.mxu0 %v2817
        %2837 = vmatprep.subr.bf16.mxu0 0
        %2838 = vmatpush1.bf16.msra.mxu0 %v2818
        %2839 = vmatprep.subr.bf16.mxu0 0
        %2840 = vmatpush1.bf16.msra.mxu0 %v2819
        %2841 = vmatprep.subr.bf16.mxu0 0
        %2842 = vmatpush1.bf16.msra.mxu0 %v2820
        %2843 = vmatprep.subr.bf16.mxu0 0
        %2844 = vmatpush1.bf16.msra.mxu0 %v2821
        %2845 = vmatprep.subr.bf16.mxu0 0
        %2846 = vmatpush1.bf16.msra.mxu0 %v2822
        %2847 = vmatprep.subr.bf16.mxu0 0
        %2848 = vmatpush1.bf16.msra.mxu0 0
        %2849 = vmatprep.subr.bf16.mxu0 0
        %2850 = vmatpush1.bf16.msra.mxu0 0
        %2851 = vmatprep.subr.bf16.mxu0 0
        %2852 = vmatpush1.bf16.msra.mxu0 0
        %2853 = vmatprep.subr.bf16.mxu0 0
        %2854 = vmatpush1.bf16.msra.mxu0 0
        %2855 = vmatprep.subr.bf16.mxu0 0
        %2856 = vmatpush1.bf16.msra.mxu0 0
        %2857 = vmatprep.subr.bf16.mxu0 0
        %2858 = vmatpush1.bf16.msra.mxu0 0
        %2859 = vmatprep.subr.bf16.mxu0 0
        %2860 = vmatpush1.bf16.msra.mxu0 0
        %2861 = vmatprep.subr.bf16.mxu0 0
        %2862 = vmatpush1.bf16.msra.mxu0 0
        %2863 = vmatprep.mubr.bf16.mxu0 0
        %2864 = vmatmul.mubr.bf16.gmra.mrb[0].mxu0 %v2762
        %v2865 = vpop.f32.mrb[0].mxu0
        %v2866 = vadd.f32 0.0, %v2865
        %v2867 = vpop.f32.mrb[0].mxu0
        %v2868 = vpop.f32.mrb[0].mxu0
        %v2869 = vadd.f32 0.0, %v2868
        %v2870 = vpop.f32.mrb[0].mxu0
        %2871 = vmatprep.mubr.bf16.mxu0 0
        %2872 = vmatmul.mubr.bf16.gmra.mrb[0].mxu0 %v2763
        %v2873 = vpop.f32.mrb[0].mxu0
        %v2874 = vadd.f32 0.0, %v2873
        %v2875 = vpop.f32.mrb[0].mxu0
        %v2876 = vpop.f32.mrb[0].mxu0
        %v2877 = vadd.f32 0.0, %v2876
        %v2878 = vpop.f32.mrb[0].mxu0
        %2879 = vmatprep.mubr.bf16.mxu0 0
        %2880 = vmatmul.mubr.bf16.gmra.mrb[0].mxu0 %v2764
        %v2881 = vpop.f32.mrb[0].mxu0
        %v2882 = vadd.f32 0.0, %v2881
        %v2883 = vpop.f32.mrb[0].mxu0
        %v2884 = vpop.f32.mrb[0].mxu0
        %v2885 = vadd.f32 0.0, %v2884
        %v2886 = vpop.f32.mrb[0].mxu0
        %2887 = vmatprep.mubr.bf16.mxu0 0
        %2888 = vmatmul.mubr.bf16.gmra.mrb[0].mxu0 %v2765
        %v2889 = vpop.f32.mrb[0].mxu0
        %v2890 = vadd.f32 0.0, %v2889
        %v2891 = vpop.f32.mrb[0].mxu0
        %v2892 = vpop.f32.mrb[0].mxu0
        %v2893 = vadd.f32 0.0, %v2892
        %v2894 = vpop.f32.mrb[0].mxu0
        %2895 = vdwg.mxu0
        %v2896 = vld [vmem:[#allocation4] sm:$0xff]
        %v2897 = vld [vmem:[#allocation4 + $0x8] sm:$0xff]
        %v2898 = vld [vmem:[#allocation4 + $0x10] sm:$0xff]
        %v2899 = vld [vmem:[#allocation4 + $0x18] sm:$0xff]
        %v2900 = vld [vmem:[#allocation4 + $0x20] sm:$0xff]
        %v2901 = vld [vmem:[#allocation4 + $0x28] sm:$0xff]
        %v2902 = vld [vmem:[#allocation4 + $0x30] sm:$0xff]
        %v2903 = vld [vmem:[#allocation4 + $0x38] sm:$0xff]
        %v2904 = vadd.f32 %v2896, %v2866
        %v2905 = vadd.f32 %v2897, %v2869
        %v2906 = vadd.f32 %v2898, %v2874
        %v2907 = vadd.f32 %v2899, %v2877
        %v2908 = vadd.f32 %v2900, %v2882
        %v2909 = vadd.f32 %v2901, %v2885
        %v2910 = vadd.f32 %v2902, %v2890
        %v2911 = vadd.f32 %v2903, %v2893
        %2912 = vst [vmem:[#allocation4] sm:$0xff] %v2904
        %2913 = vst [vmem:[#allocation4 + $0x8] sm:$0xff] %v2905
        %2914 = vst [vmem:[#allocation4 + $0x10] sm:$0xff] %v2906
        %2915 = vst [vmem:[#allocation4 + $0x18] sm:$0xff] %v2907
        %2916 = vst [vmem:[#allocation4 + $0x20] sm:$0xff] %v2908
        %2917 = vst [vmem:[#allocation4 + $0x28] sm:$0xff] %v2909
        %2918 = vst [vmem:[#allocation4 + $0x30] sm:$0xff] %v2910
        %2919 = vst [vmem:[#allocation4 + $0x38] sm:$0xff] %v2911
        %v2920 = vld [vmem:[#allocation2 + $0x2] sm:$0xff]
        %v2921 = vld [vmem:[#allocation2 + $0xa] sm:$0xff]
        %v2922 = vld [vmem:[#allocation2 + $0x1a] sm:$0xff]
        %v2923 = vld [vmem:[#allocation2 + $0x22] sm:$0xff]
        %v2924 = vld [vmem:[#allocation2 + $0x32] sm:$0xff]
        %v2925 = vld [vmem:[#allocation2 + $0x3a] sm:$0xff]
        %v2926 = vld [vmem:[#allocation2 + $0x4a] sm:$0xff]
        %v2927 = vld [vmem:[#allocation2 + $0x52] sm:$0xff]
        %v2928 = vpack.c.bf16 %v2921, %v2920
        %v2929 = vpack.c.bf16 %v2923, %v2922
        %v2930 = vpack.c.bf16 %v2925, %v2924
        %v2931 = vpack.c.bf16 %v2927, %v2926
        %s2932 = scalar_lea.vmem [#allocation5], 128
        %v2933 = vld [vmem:[%s2932] sm:$0xf]
        %v2934 = vld [vmem:[%s2932 + $0x4] sm:$0xf]
        %v2935 = vld [vmem:[%s2932 + $0x8] sm:$0xf]
        %v2936 = vld [vmem:[%s2932 + $0xc] sm:$0xf]
        %v2937 = vld [vmem:[%s2932 + $0x10] sm:$0xf]
        %v2938 = vld [vmem:[%s2932 + $0x14] sm:$0xf]
        %v2939 = vld [vmem:[%s2932 + $0x18] sm:$0xf]
        %v2940 = vld [vmem:[%s2932 + $0x1c] sm:$0xf]
        %v2941 = vld [vmem:[%s2932 + $0x20] sm:$0xf]
        %v2942 = vld [vmem:[%s2932 + $0x24] sm:$0xf]
        %v2943 = vld [vmem:[%s2932 + $0x28] sm:$0xf]
        %v2944 = vld [vmem:[%s2932 + $0x2c] sm:$0xf]
        %v2945 = vld [vmem:[%s2932 + $0x30] sm:$0xf]
        %v2946 = vld [vmem:[%s2932 + $0x34] sm:$0xf]
        %v2947 = vld [vmem:[%s2932 + $0x38] sm:$0xf]
        %v2948 = vld [vmem:[%s2932 + $0x3c] sm:$0xf]
        %v2965 = vunpack.c.l.b16 %v2933
        %v2966 = vunpack.c.l.b16 %v2934
        %v2967 = vunpack.c.l.b16 %v2935
        %v2968 = vunpack.c.l.b16 %v2936
        %v2969 = vunpack.c.l.b16 %v2937
        %v2970 = vunpack.c.l.b16 %v2938
        %v2971 = vunpack.c.l.b16 %v2939
        %v2972 = vunpack.c.l.b16 %v2940
        %v2973 = vunpack.c.l.b16 %v2941
        %v2974 = vunpack.c.l.b16 %v2942
        %v2975 = vunpack.c.l.b16 %v2943
        %v2976 = vunpack.c.l.b16 %v2944
        %v2977 = vunpack.c.l.b16 %v2945
        %v2978 = vunpack.c.l.b16 %v2946
        %v2979 = vunpack.c.l.b16 %v2947
        %v2980 = vunpack.c.l.b16 %v2948
        %v2981 = vpack.c.b16 %v2966, %v2965
        %v2982 = vpack.c.b16 %v2968, %v2967
        %v2983 = vpack.c.b16 %v2970, %v2969
        %v2984 = vpack.c.b16 %v2972, %v2971
        %v2985 = vpack.c.b16 %v2974, %v2973
        %v2986 = vpack.c.b16 %v2976, %v2975
        %v2987 = vpack.c.b16 %v2978, %v2977
        %v2988 = vpack.c.b16 %v2980, %v2979
        %2997 = vmatprep.subr.bf16.mxu0 0
        %2998 = vmatpush1.bf16.msra.mxu0 %v2981
        %2999 = vmatprep.subr.bf16.mxu0 0
        %3000 = vmatpush1.bf16.msra.mxu0 %v2982
        %3001 = vmatprep.subr.bf16.mxu0 0
        %3002 = vmatpush1.bf16.msra.mxu0 %v2983
        %3003 = vmatprep.subr.bf16.mxu0 0
        %3004 = vmatpush1.bf16.msra.mxu0 %v2984
        %3005 = vmatprep.subr.bf16.mxu0 0
        %3006 = vmatpush1.bf16.msra.mxu0 %v2985
        %3007 = vmatprep.subr.bf16.mxu0 0
        %3008 = vmatpush1.bf16.msra.mxu0 %v2986
        %3009 = vmatprep.subr.bf16.mxu0 0
        %3010 = vmatpush1.bf16.msra.mxu0 %v2987
        %3011 = vmatprep.subr.bf16.mxu0 0
        %3012 = vmatpush1.bf16.msra.mxu0 %v2988
        %3013 = vmatprep.subr.bf16.mxu0 0
        %3014 = vmatpush1.bf16.msra.mxu0 0
        %3015 = vmatprep.subr.bf16.mxu0 0
        %3016 = vmatpush1.bf16.msra.mxu0 0
        %3017 = vmatprep.subr.bf16.mxu0 0
        %3018 = vmatpush1.bf16.msra.mxu0 0
        %3019 = vmatprep.subr.bf16.mxu0 0
        %3020 = vmatpush1.bf16.msra.mxu0 0
        %3021 = vmatprep.subr.bf16.mxu0 0
        %3022 = vmatpush1.bf16.msra.mxu0 0
        %3023 = vmatprep.subr.bf16.mxu0 0
        %3024 = vmatpush1.bf16.msra.mxu0 0
        %3025 = vmatprep.subr.bf16.mxu0 0
        %3026 = vmatpush1.bf16.msra.mxu0 0
        %3027 = vmatprep.subr.bf16.mxu0 0
        %3028 = vmatpush1.bf16.msra.mxu0 0
        %3029 = vmatprep.mubr.bf16.mxu0 0
        %3030 = vmatmul.mubr.bf16.gmra.mrb[0].mxu0 %v2928
        %v3031 = vpop.f32.mrb[0].mxu0
        %v3032 = vadd.f32 0.0, %v3031
        %v3033 = vpop.f32.mrb[0].mxu0
        %v3034 = vpop.f32.mrb[0].mxu0
        %v3035 = vadd.f32 0.0, %v3034
        %v3036 = vpop.f32.mrb[0].mxu0
        %3037 = vmatprep.mubr.bf16.mxu0 0
        %3038 = vmatmul.mubr.bf16.gmra.mrb[0].mxu0 %v2929
        %v3039 = vpop.f32.mrb[0].mxu0
        %v3040 = vadd.f32 0.0, %v3039
        %v3041 = vpop.f32.mrb[0].mxu0
        %v3042 = vpop.f32.mrb[0].mxu0
        %v3043 = vadd.f32 0.0, %v3042
        %v3044 = vpop.f32.mrb[0].mxu0
        %3045 = vmatprep.mubr.bf16.mxu0 0
        %3046 = vmatmul.mubr.bf16.gmra.mrb[0].mxu0 %v2930
        %v3047 = vpop.f32.mrb[0].mxu0
        %v3048 = vadd.f32 0.0, %v3047
        %v3049 = vpop.f32.mrb[0].mxu0
        %v3050 = vpop.f32.mrb[0].mxu0
        %v3051 = vadd.f32 0.0, %v3050
        %v3052 = vpop.f32.mrb[0].mxu0
        %3053 = vmatprep.mubr.bf16.mxu0 0
        %3054 = vmatmul.mubr.bf16.gmra.mrb[0].mxu0 %v2931
        %v3055 = vpop.f32.mrb[0].mxu0
        %v3056 = vadd.f32 0.0, %v3055
        %v3057 = vpop.f32.mrb[0].mxu0
        %v3058 = vpop.f32.mrb[0].mxu0
        %v3059 = vadd.f32 0.0, %v3058
        %v3060 = vpop.f32.mrb[0].mxu0
        %3061 = vdwg.mxu0
        %v3062 = vld [vmem:[#allocation4] sm:$0xff]
        %v3063 = vld [vmem:[#allocation4 + $0x8] sm:$0xff]
        %v3064 = vld [vmem:[#allocation4 + $0x10] sm:$0xff]
        %v3065 = vld [vmem:[#allocation4 + $0x18] sm:$0xff]
        %v3066 = vld [vmem:[#allocation4 + $0x20] sm:$0xff]
        %v3067 = vld [vmem:[#allocation4 + $0x28] sm:$0xff]
        %v3068 = vld [vmem:[#allocation4 + $0x30] sm:$0xff]
        %v3069 = vld [vmem:[#allocation4 + $0x38] sm:$0xff]
        %v3070 = vadd.f32 %v3062, %v3032
        %v3071 = vadd.f32 %v3063, %v3035
        %v3072 = vadd.f32 %v3064, %v3040
        %v3073 = vadd.f32 %v3065, %v3043
        %v3074 = vadd.f32 %v3066, %v3048
        %v3075 = vadd.f32 %v3067, %v3051
        %v3076 = vadd.f32 %v3068, %v3056
        %v3077 = vadd.f32 %v3069, %v3059
        %3078 = vst [vmem:[#allocation4] sm:$0xff] %v3070
        %3079 = vst [vmem:[#allocation4 + $0x8] sm:$0xff] %v3071
        %3080 = vst [vmem:[#allocation4 + $0x10] sm:$0xff] %v3072
        %3081 = vst [vmem:[#allocation4 + $0x18] sm:$0xff] %v3073
        %3082 = vst [vmem:[#allocation4 + $0x20] sm:$0xff] %v3074
        %3083 = vst [vmem:[#allocation4 + $0x28] sm:$0xff] %v3075
        %3084 = vst [vmem:[#allocation4 + $0x30] sm:$0xff] %v3076
        %3085 = vst [vmem:[#allocation4 + $0x38] sm:$0xff] %v3077
        %s3086 = scalar_lea.vmem [#allocation2], 24
        %v3087 = vld [vmem:[%s3086] sm:$0xff]
        %v3088 = vld [vmem:[%s3086 + $0x8] sm:$0xff]
        %v3089 = vld [vmem:[%s3086 + $0x18] sm:$0xff]
        %v3090 = vld [vmem:[%s3086 + $0x20] sm:$0xff]
        %v3091 = vld [vmem:[%s3086 + $0x30] sm:$0xff]
        %v3092 = vld [vmem:[%s3086 + $0x38] sm:$0xff]
        %v3093 = vld [vmem:[%s3086 + $0x48] sm:$0xff]
        %v3094 = vld [vmem:[%s3086 + $0x50] sm:$0xff]
        %v3095 = vpack.c.bf16 %v3088, %v3087
        %v3096 = vpack.c.bf16 %v3090, %v3089
        %v3097 = vpack.c.bf16 %v3092, %v3091
        %v3098 = vpack.c.bf16 %v3094, %v3093
        %s3099 = scalar_lea.vmem [#allocation5], 192
        %v3100 = vld [vmem:[%s3099] sm:$0xf]
        %v3101 = vld [vmem:[%s3099 + $0x4] sm:$0xf]
        %v3102 = vld [vmem:[%s3099 + $0x8] sm:$0xf]
        %v3103 = vld [vmem:[%s3099 + $0xc] sm:$0xf]
        %v3104 = vld [vmem:[%s3099 + $0x10] sm:$0xf]
        %v3105 = vld [vmem:[%s3099 + $0x14] sm:$0xf]
        %v3106 = vld [vmem:[%s3099 + $0x18] sm:$0xf]
        %v3107 = vld [vmem:[%s3099 + $0x1c] sm:$0xf]
        %v3108 = vld [vmem:[%s3099 + $0x20] sm:$0xf]
        %v3109 = vld [vmem:[%s3099 + $0x24] sm:$0xf]
        %v3110 = vld [vmem:[%s3099 + $0x28] sm:$0xf]
        %v3111 = vld [vmem:[%s3099 + $0x2c] sm:$0xf]
        %v3112 = vld [vmem:[%s3099 + $0x30] sm:$0xf]
        %v3113 = vld [vmem:[%s3099 + $0x34] sm:$0xf]
        %v3114 = vld [vmem:[%s3099 + $0x38] sm:$0xf]
        %v3115 = vld [vmem:[%s3099 + $0x3c] sm:$0xf]
        %v3132 = vunpack.c.l.b16 %v3100
        %v3133 = vunpack.c.l.b16 %v3101
        %v3134 = vunpack.c.l.b16 %v3102
        %v3135 = vunpack.c.l.b16 %v3103
        %v3136 = vunpack.c.l.b16 %v3104
        %v3137 = vunpack.c.l.b16 %v3105
        %v3138 = vunpack.c.l.b16 %v3106
        %v3139 = vunpack.c.l.b16 %v3107
        %v3140 = vunpack.c.l.b16 %v3108
        %v3141 = vunpack.c.l.b16 %v3109
        %v3142 = vunpack.c.l.b16 %v3110
        %v3143 = vunpack.c.l.b16 %v3111
        %v3144 = vunpack.c.l.b16 %v3112
        %v3145 = vunpack.c.l.b16 %v3113
        %v3146 = vunpack.c.l.b16 %v3114
        %v3147 = vunpack.c.l.b16 %v3115
        %v3148 = vpack.c.b16 %v3133, %v3132
        %v3149 = vpack.c.b16 %v3135, %v3134
        %v3150 = vpack.c.b16 %v3137, %v3136
        %v3151 = vpack.c.b16 %v3139, %v3138
        %v3152 = vpack.c.b16 %v3141, %v3140
        %v3153 = vpack.c.b16 %v3143, %v3142
        %v3154 = vpack.c.b16 %v3145, %v3144
        %v3155 = vpack.c.b16 %v3147, %v3146
        %3164 = vmatprep.subr.bf16.mxu0 0
        %3165 = vmatpush1.bf16.msra.mxu0 %v3148
        %3166 = vmatprep.subr.bf16.mxu0 0
        %3167 = vmatpush1.bf16.msra.mxu0 %v3149
        %3168 = vmatprep.subr.bf16.mxu0 0
        %3169 = vmatpush1.bf16.msra.mxu0 %v3150
        %3170 = vmatprep.subr.bf16.mxu0 0
        %3171 = vmatpush1.bf16.msra.mxu0 %v3151
        %3172 = vmatprep.subr.bf16.mxu0 0
        %3173 = vmatpush1.bf16.msra.mxu0 %v3152
        %3174 = vmatprep.subr.bf16.mxu0 0
        %3175 = vmatpush1.bf16.msra.mxu0 %v3153
        %3176 = vmatprep.subr.bf16.mxu0 0
        %3177 = vmatpush1.bf16.msra.mxu0 %v3154
        %3178 = vmatprep.subr.bf16.mxu0 0
        %3179 = vmatpush1.bf16.msra.mxu0 %v3155
        %3180 = vmatprep.subr.bf16.mxu0 0
        %3181 = vmatpush1.bf16.msra.mxu0 0
        %3182 = vmatprep.subr.bf16.mxu0 0
        %3183 = vmatpush1.bf16.msra.mxu0 0
        %3184 = vmatprep.subr.bf16.mxu0 0
        %3185 = vmatpush1.bf16.msra.mxu0 0
        %3186 = vmatprep.subr.bf16.mxu0 0
        %3187 = vmatpush1.bf16.msra.mxu0 0
        %3188 = vmatprep.subr.bf16.mxu0 0
        %3189 = vmatpush1.bf16.msra.mxu0 0
        %3190 = vmatprep.subr.bf16.mxu0 0
        %3191 = vmatpush1.bf16.msra.mxu0 0
        %3192 = vmatprep.subr.bf16.mxu0 0
        %3193 = vmatpush1.bf16.msra.mxu0 0
        %3194 = vmatprep.subr.bf16.mxu0 0
        %3195 = vmatpush1.bf16.msra.mxu0 0
        %3196 = vmatprep.mubr.bf16.mxu0 0
        %3197 = vmatmul.mubr.bf16.gmra.mrb[0].mxu0 %v3095
        %v3198 = vpop.f32.mrb[0].mxu0
        %v3199 = vadd.f32 0.0, %v3198
        %v3200 = vpop.f32.mrb[0].mxu0
        %v3201 = vpop.f32.mrb[0].mxu0
        %v3202 = vadd.f32 0.0, %v3201
        %v3203 = vpop.f32.mrb[0].mxu0
        %3204 = vmatprep.mubr.bf16.mxu0 0
        %3205 = vmatmul.mubr.bf16.gmra.mrb[0].mxu0 %v3096
        %v3206 = vpop.f32.mrb[0].mxu0
        %v3207 = vadd.f32 0.0, %v3206
        %v3208 = vpop.f32.mrb[0].mxu0
        %v3209 = vpop.f32.mrb[0].mxu0
        %v3210 = vadd.f32 0.0, %v3209
        %v3211 = vpop.f32.mrb[0].mxu0
        %3212 = vmatprep.mubr.bf16.mxu0 0
        %3213 = vmatmul.mubr.bf16.gmra.mrb[0].mxu0 %v3097
        %v3214 = vpop.f32.mrb[0].mxu0
        %v3215 = vadd.f32 0.0, %v3214
        %v3216 = vpop.f32.mrb[0].mxu0
        %v3217 = vpop.f32.mrb[0].mxu0
        %v3218 = vadd.f32 0.0, %v3217
        %v3219 = vpop.f32.mrb[0].mxu0
        %3220 = vmatprep.mubr.bf16.mxu0 0
        %3221 = vmatmul.mubr.bf16.gmra.mrb[0].mxu0 %v3098
        %v3222 = vpop.f32.mrb[0].mxu0
        %v3223 = vadd.f32 0.0, %v3222
        %v3224 = vpop.f32.mrb[0].mxu0
        %v3225 = vpop.f32.mrb[0].mxu0
        %v3226 = vadd.f32 0.0, %v3225
        %v3227 = vpop.f32.mrb[0].mxu0
        %3228 = vdwg.mxu0
        %v3229 = vld [vmem:[#allocation4] sm:$0xff]
        %v3230 = vld [vmem:[#allocation4 + $0x8] sm:$0xff]
        %v3231 = vld [vmem:[#allocation4 + $0x10] sm:$0xff]
        %v3232 = vld [vmem:[#allocation4 + $0x18] sm:$0xff]
        %v3233 = vld [vmem:[#allocation4 + $0x20] sm:$0xff]
        %v3234 = vld [vmem:[#allocation4 + $0x28] sm:$0xff]
        %v3235 = vld [vmem:[#allocation4 + $0x30] sm:$0xff]
        %v3236 = vld [vmem:[#allocation4 + $0x38] sm:$0xff]
        %v3237 = vadd.f32 %v3229, %v3199
        %v3238 = vadd.f32 %v3230, %v3202
        %v3239 = vadd.f32 %v3231, %v3207
        %v3240 = vadd.f32 %v3232, %v3210
        %v3241 = vadd.f32 %v3233, %v3215
        %v3242 = vadd.f32 %v3234, %v3218
        %v3243 = vadd.f32 %v3235, %v3223
        %v3244 = vadd.f32 %v3236, %v3226
        %3245 = vst [vmem:[#allocation4] sm:$0xff] %v3237
        %3246 = vst [vmem:[#allocation4 + $0x8] sm:$0xff] %v3238
        %3247 = vst [vmem:[#allocation4 + $0x10] sm:$0xff] %v3239
        %3248 = vst [vmem:[#allocation4 + $0x18] sm:$0xff] %v3240
        %3249 = vst [vmem:[#allocation4 + $0x20] sm:$0xff] %v3241
        %3250 = vst [vmem:[#allocation4 + $0x28] sm:$0xff] %v3242
        %3251 = vst [vmem:[#allocation4 + $0x30] sm:$0xff] %v3243
        %3252 = vst [vmem:[#allocation4 + $0x38] sm:$0xff] %v3244
        %v3253 = vld [vmem:[%s3086 + $0x1] sm:$0xff]
        %v3254 = vld [vmem:[%s3086 + $0x9] sm:$0xff]
        %v3255 = vld [vmem:[%s3086 + $0x19] sm:$0xff]
        %v3256 = vld [vmem:[%s3086 + $0x21] sm:$0xff]
        %v3257 = vld [vmem:[%s3086 + $0x31] sm:$0xff]
        %v3258 = vld [vmem:[%s3086 + $0x39] sm:$0xff]
        %v3259 = vld [vmem:[%s3086 + $0x49] sm:$0xff]
        %v3260 = vld [vmem:[%s3086 + $0x51] sm:$0xff]
        %v3261 = vpack.c.bf16 %v3254, %v3253
        %v3262 = vpack.c.bf16 %v3256, %v3255
        %v3263 = vpack.c.bf16 %v3258, %v3257
        %v3264 = vpack.c.bf16 %v3260, %v3259
        %s3265 = scalar_lea.vmem [#allocation5], 256
        %v3266 = vld [vmem:[%s3265] sm:$0xf]
        %v3267 = vld [vmem:[%s3265 + $0x4] sm:$0xf]
        %v3268 = vld [vmem:[%s3265 + $0x8] sm:$0xf]
        %v3269 = vld [vmem:[%s3265 + $0xc] sm:$0xf]
        %v3270 = vld [vmem:[%s3265 + $0x10] sm:$0xf]
        %v3271 = vld [vmem:[%s3265 + $0x14] sm:$0xf]
        %v3272 = vld [vmem:[%s3265 + $0x18] sm:$0xf]
        %v3273 = vld [vmem:[%s3265 + $0x1c] sm:$0xf]
        %v3274 = vld [vmem:[%s3265 + $0x20] sm:$0xf]
        %v3275 = vld [vmem:[%s3265 + $0x24] sm:$0xf]
        %v3276 = vld [vmem:[%s3265 + $0x28] sm:$0xf]
        %v3277 = vld [vmem:[%s3265 + $0x2c] sm:$0xf]
        %v3278 = vld [vmem:[%s3265 + $0x30] sm:$0xf]
        %v3279 = vld [vmem:[%s3265 + $0x34] sm:$0xf]
        %v3280 = vld [vmem:[%s3265 + $0x38] sm:$0xf]
        %v3281 = vld [vmem:[%s3265 + $0x3c] sm:$0xf]
        %v3298 = vunpack.c.l.b16 %v3266
        %v3299 = vunpack.c.l.b16 %v3267
        %v3300 = vunpack.c.l.b16 %v3268
        %v3301 = vunpack.c.l.b16 %v3269
        %v3302 = vunpack.c.l.b16 %v3270
        %v3303 = vunpack.c.l.b16 %v3271
        %v3304 = vunpack.c.l.b16 %v3272
        %v3305 = vunpack.c.l.b16 %v3273
        %v3306 = vunpack.c.l.b16 %v3274
        %v3307 = vunpack.c.l.b16 %v3275
        %v3308 = vunpack.c.l.b16 %v3276
        %v3309 = vunpack.c.l.b16 %v3277
        %v3310 = vunpack.c.l.b16 %v3278
        %v3311 = vunpack.c.l.b16 %v3279
        %v3312 = vunpack.c.l.b16 %v3280
        %v3313 = vunpack.c.l.b16 %v3281
        %v3314 = vpack.c.b16 %v3299, %v3298
        %v3315 = vpack.c.b16 %v3301, %v3300
        %v3316 = vpack.c.b16 %v3303, %v3302
        %v3317 = vpack.c.b16 %v3305, %v3304
        %v3318 = vpack.c.b16 %v3307, %v3306
        %v3319 = vpack.c.b16 %v3309, %v3308
        %v3320 = vpack.c.b16 %v3311, %v3310
        %v3321 = vpack.c.b16 %v3313, %v3312
        %3330 = vmatprep.subr.bf16.mxu0 0
        %3331 = vmatpush1.bf16.msra.mxu0 %v3314
        %3332 = vmatprep.subr.bf16.mxu0 0
        %3333 = vmatpush1.bf16.msra.mxu0 %v3315
        %3334 = vmatprep.subr.bf16.mxu0 0
        %3335 = vmatpush1.bf16.msra.mxu0 %v3316
        %3336 = vmatprep.subr.bf16.mxu0 0
        %3337 = vmatpush1.bf16.msra.mxu0 %v3317
        %3338 = vmatprep.subr.bf16.mxu0 0
        %3339 = vmatpush1.bf16.msra.mxu0 %v3318
        %3340 = vmatprep.subr.bf16.mxu0 0
        %3341 = vmatpush1.bf16.msra.mxu0 %v3319
        %3342 = vmatprep.subr.bf16.mxu0 0
        %3343 = vmatpush1.bf16.msra.mxu0 %v3320
        %3344 = vmatprep.subr.bf16.mxu0 0
        %3345 = vmatpush1.bf16.msra.mxu0 %v3321
        %3346 = vmatprep.subr.bf16.mxu0 0
        %3347 = vmatpush1.bf16.msra.mxu0 0
        %3348 = vmatprep.subr.bf16.mxu0 0
        %3349 = vmatpush1.bf16.msra.mxu0 0
        %3350 = vmatprep.subr.bf16.mxu0 0
        %3351 = vmatpush1.bf16.msra.mxu0 0
        %3352 = vmatprep.subr.bf16.mxu0 0
        %3353 = vmatpush1.bf16.msra.mxu0 0
        %3354 = vmatprep.subr.bf16.mxu0 0
        %3355 = vmatpush1.bf16.msra.mxu0 0
        %3356 = vmatprep.subr.bf16.mxu0 0
        %3357 = vmatpush1.bf16.msra.mxu0 0
        %3358 = vmatprep.subr.bf16.mxu0 0
        %3359 = vmatpush1.bf16.msra.mxu0 0
        %3360 = vmatprep.subr.bf16.mxu0 0
        %3361 = vmatpush1.bf16.msra.mxu0 0
        %3362 = vmatprep.mubr.bf16.mxu0 0
        %3363 = vmatmul.mubr.bf16.gmra.mrb[0].mxu0 %v3261
        %v3364 = vpop.f32.mrb[0].mxu0
        %v3365 = vadd.f32 0.0, %v3364
        %v3366 = vpop.f32.mrb[0].mxu0
        %v3367 = vpop.f32.mrb[0].mxu0
        %v3368 = vadd.f32 0.0, %v3367
        %v3369 = vpop.f32.mrb[0].mxu0
        %3370 = vmatprep.mubr.bf16.mxu0 0
        %3371 = vmatmul.mubr.bf16.gmra.mrb[0].mxu0 %v3262
        %v3372 = vpop.f32.mrb[0].mxu0
        %v3373 = vadd.f32 0.0, %v3372
        %v3374 = vpop.f32.mrb[0].mxu0
        %v3375 = vpop.f32.mrb[0].mxu0
        %v3376 = vadd.f32 0.0, %v3375
        %v3377 = vpop.f32.mrb[0].mxu0
        %3378 = vmatprep.mubr.bf16.mxu0 0
        %3379 = vmatmul.mubr.bf16.gmra.mrb[0].mxu0 %v3263
        %v3380 = vpop.f32.mrb[0].mxu0
        %v3381 = vadd.f32 0.0, %v3380
        %v3382 = vpop.f32.mrb[0].mxu0
        %v3383 = vpop.f32.mrb[0].mxu0
        %v3384 = vadd.f32 0.0, %v3383
        %v3385 = vpop.f32.mrb[0].mxu0
        %3386 = vmatprep.mubr.bf16.mxu0 0
        %3387 = vmatmul.mubr.bf16.gmra.mrb[0].mxu0 %v3264
        %v3388 = vpop.f32.mrb[0].mxu0
        %v3389 = vadd.f32 0.0, %v3388
        %v3390 = vpop.f32.mrb[0].mxu0
        %v3391 = vpop.f32.mrb[0].mxu0
        %v3392 = vadd.f32 0.0, %v3391
        %v3393 = vpop.f32.mrb[0].mxu0
        %3394 = vdwg.mxu0
        %v3395 = vld [vmem:[#allocation4] sm:$0xff]
        %v3396 = vld [vmem:[#allocation4 + $0x8] sm:$0xff]
        %v3397 = vld [vmem:[#allocation4 + $0x10] sm:$0xff]
        %v3398 = vld [vmem:[#allocation4 + $0x18] sm:$0xff]
        %v3399 = vld [vmem:[#allocation4 + $0x20] sm:$0xff]
        %v3400 = vld [vmem:[#allocation4 + $0x28] sm:$0xff]
        %v3401 = vld [vmem:[#allocation4 + $0x30] sm:$0xff]
        %v3402 = vld [vmem:[#allocation4 + $0x38] sm:$0xff]
        %v3403 = vadd.f32 %v3395, %v3365
        %v3404 = vadd.f32 %v3396, %v3368
        %v3405 = vadd.f32 %v3397, %v3373
        %v3406 = vadd.f32 %v3398, %v3376
        %v3407 = vadd.f32 %v3399, %v3381
        %v3408 = vadd.f32 %v3400, %v3384
        %v3409 = vadd.f32 %v3401, %v3389
        %v3410 = vadd.f32 %v3402, %v3392
        %3411 = vst [vmem:[#allocation4] sm:$0xff] %v3403
        %3412 = vst [vmem:[#allocation4 + $0x8] sm:$0xff] %v3404
        %3413 = vst [vmem:[#allocation4 + $0x10] sm:$0xff] %v3405
        %3414 = vst [vmem:[#allocation4 + $0x18] sm:$0xff] %v3406
        %3415 = vst [vmem:[#allocation4 + $0x20] sm:$0xff] %v3407
        %3416 = vst [vmem:[#allocation4 + $0x28] sm:$0xff] %v3408
        %3417 = vst [vmem:[#allocation4 + $0x30] sm:$0xff] %v3409
        %3418 = vst [vmem:[#allocation4 + $0x38] sm:$0xff] %v3410
        %v3419 = vld [vmem:[%s3086 + $0x2] sm:$0xff]
        %v3420 = vld [vmem:[%s3086 + $0xa] sm:$0xff]
        %v3421 = vld [vmem:[%s3086 + $0x1a] sm:$0xff]
        %v3422 = vld [vmem:[%s3086 + $0x22] sm:$0xff]
        %v3423 = vld [vmem:[%s3086 + $0x32] sm:$0xff]
        %v3424 = vld [vmem:[%s3086 + $0x3a] sm:$0xff]
        %v3425 = vld [vmem:[%s3086 + $0x4a] sm:$0xff]
        %v3426 = vld [vmem:[%s3086 + $0x52] sm:$0xff]
        %v3427 = vpack.c.bf16 %v3420, %v3419
        %v3428 = vpack.c.bf16 %v3422, %v3421
        %v3429 = vpack.c.bf16 %v3424, %v3423
        %v3430 = vpack.c.bf16 %v3426, %v3425
        %s3431 = scalar_lea.vmem [#allocation5], 320
        %v3432 = vld [vmem:[%s3431] sm:$0xf]
        %v3433 = vld [vmem:[%s3431 + $0x4] sm:$0xf]
        %v3434 = vld [vmem:[%s3431 + $0x8] sm:$0xf]
        %v3435 = vld [vmem:[%s3431 + $0xc] sm:$0xf]
        %v3436 = vld [vmem:[%s3431 + $0x10] sm:$0xf]
        %v3437 = vld [vmem:[%s3431 + $0x14] sm:$0xf]
        %v3438 = vld [vmem:[%s3431 + $0x18] sm:$0xf]
        %v3439 = vld [vmem:[%s3431 + $0x1c] sm:$0xf]
        %v3440 = vld [vmem:[%s3431 + $0x20] sm:$0xf]
        %v3441 = vld [vmem:[%s3431 + $0x24] sm:$0xf]
        %v3442 = vld [vmem:[%s3431 + $0x28] sm:$0xf]
        %v3443 = vld [vmem:[%s3431 + $0x2c] sm:$0xf]
        %v3444 = vld [vmem:[%s3431 + $0x30] sm:$0xf]
        %v3445 = vld [vmem:[%s3431 + $0x34] sm:$0xf]
        %v3446 = vld [vmem:[%s3431 + $0x38] sm:$0xf]
        %v3447 = vld [vmem:[%s3431 + $0x3c] sm:$0xf]
        %v3464 = vunpack.c.l.b16 %v3432
        %v3465 = vunpack.c.l.b16 %v3433
        %v3466 = vunpack.c.l.b16 %v3434
        %v3467 = vunpack.c.l.b16 %v3435
        %v3468 = vunpack.c.l.b16 %v3436
        %v3469 = vunpack.c.l.b16 %v3437
        %v3470 = vunpack.c.l.b16 %v3438
        %v3471 = vunpack.c.l.b16 %v3439
        %v3472 = vunpack.c.l.b16 %v3440
        %v3473 = vunpack.c.l.b16 %v3441
        %v3474 = vunpack.c.l.b16 %v3442
        %v3475 = vunpack.c.l.b16 %v3443
        %v3476 = vunpack.c.l.b16 %v3444
        %v3477 = vunpack.c.l.b16 %v3445
        %v3478 = vunpack.c.l.b16 %v3446
        %v3479 = vunpack.c.l.b16 %v3447
        %v3480 = vpack.c.b16 %v3465, %v3464
        %v3481 = vpack.c.b16 %v3467, %v3466
        %v3482 = vpack.c.b16 %v3469, %v3468
        %v3483 = vpack.c.b16 %v3471, %v3470
        %v3484 = vpack.c.b16 %v3473, %v3472
        %v3485 = vpack.c.b16 %v3475, %v3474
        %v3486 = vpack.c.b16 %v3477, %v3476
        %v3487 = vpack.c.b16 %v3479, %v3478
        %3496 = vmatprep.subr.bf16.mxu0 0
        %3497 = vmatpush1.bf16.msra.mxu0 %v3480
        %3498 = vmatprep.subr.bf16.mxu0 0
        %3499 = vmatpush1.bf16.msra.mxu0 %v3481
        %3500 = vmatprep.subr.bf16.mxu0 0
        %3501 = vmatpush1.bf16.msra.mxu0 %v3482
        %3502 = vmatprep.subr.bf16.mxu0 0
        %3503 = vmatpush1.bf16.msra.mxu0 %v3483
        %3504 = vmatprep.subr.bf16.mxu0 0
        %3505 = vmatpush1.bf16.msra.mxu0 %v3484
        %3506 = vmatprep.subr.bf16.mxu0 0
        %3507 = vmatpush1.bf16.msra.mxu0 %v3485
        %3508 = vmatprep.subr.bf16.mxu0 0
        %3509 = vmatpush1.bf16.msra.mxu0 %v3486
        %3510 = vmatprep.subr.bf16.mxu0 0
        %3511 = vmatpush1.bf16.msra.mxu0 %v3487
        %3512 = vmatprep.subr.bf16.mxu0 0
        %3513 = vmatpush1.bf16.msra.mxu0 0
        %3514 = vmatprep.subr.bf16.mxu0 0
        %3515 = vmatpush1.bf16.msra.mxu0 0
        %3516 = vmatprep.subr.bf16.mxu0 0
        %3517 = vmatpush1.bf16.msra.mxu0 0
        %3518 = vmatprep.subr.bf16.mxu0 0
        %3519 = vmatpush1.bf16.msra.mxu0 0
        %3520 = vmatprep.subr.bf16.mxu0 0
        %3521 = vmatpush1.bf16.msra.mxu0 0
        %3522 = vmatprep.subr.bf16.mxu0 0
        %3523 = vmatpush1.bf16.msra.mxu0 0
        %3524 = vmatprep.subr.bf16.mxu0 0
        %3525 = vmatpush1.bf16.msra.mxu0 0
        %3526 = vmatprep.subr.bf16.mxu0 0
        %3527 = vmatpush1.bf16.msra.mxu0 0
        %3528 = vmatprep.mubr.bf16.mxu0 0
        %3529 = vmatmul.mubr.bf16.gmra.mrb[0].mxu0 %v3427
        %v3530 = vpop.f32.mrb[0].mxu0
        %v3531 = vadd.f32 0.0, %v3530
        %v3532 = vpop.f32.mrb[0].mxu0
        %v3533 = vpop.f32.mrb[0].mxu0
        %v3534 = vadd.f32 0.0, %v3533
        %v3535 = vpop.f32.mrb[0].mxu0
        %3536 = vmatprep.mubr.bf16.mxu0 0
        %3537 = vmatmul.mubr.bf16.gmra.mrb[0].mxu0 %v3428
        %v3538 = vpop.f32.mrb[0].mxu0
        %v3539 = vadd.f32 0.0, %v3538
        %v3540 = vpop.f32.mrb[0].mxu0
        %v3541 = vpop.f32.mrb[0].mxu0
        %v3542 = vadd.f32 0.0, %v3541
        %v3543 = vpop.f32.mrb[0].mxu0
        %3544 = vmatprep.mubr.bf16.mxu0 0
        %3545 = vmatmul.mubr.bf16.gmra.mrb[0].mxu0 %v3429
        %v3546 = vpop.f32.mrb[0].mxu0
        %v3547 = vadd.f32 0.0, %v3546
        %v3548 = vpop.f32.mrb[0].mxu0
        %v3549 = vpop.f32.mrb[0].mxu0
        %v3550 = vadd.f32 0.0, %v3549
        %v3551 = vpop.f32.mrb[0].mxu0
        %3552 = vmatprep.mubr.bf16.mxu0 0
        %3553 = vmatmul.mubr.bf16.gmra.mrb[0].mxu0 %v3430
        %v3554 = vpop.f32.mrb[0].mxu0
        %v3555 = vadd.f32 0.0, %v3554
        %v3556 = vpop.f32.mrb[0].mxu0
        %v3557 = vpop.f32.mrb[0].mxu0
        %v3558 = vadd.f32 0.0, %v3557
        %v3559 = vpop.f32.mrb[0].mxu0
        %3560 = vdwg.mxu0
        %v3561 = vld [vmem:[#allocation4] sm:$0xff]
        %v3562 = vld [vmem:[#allocation4 + $0x8] sm:$0xff]
        %v3563 = vld [vmem:[#allocation4 + $0x10] sm:$0xff]
        %v3564 = vld [vmem:[#allocation4 + $0x18] sm:$0xff]
        %v3565 = vld [vmem:[#allocation4 + $0x20] sm:$0xff]
        %v3566 = vld [vmem:[#allocation4 + $0x28] sm:$0xff]
        %v3567 = vld [vmem:[#allocation4 + $0x30] sm:$0xff]
        %v3568 = vld [vmem:[#allocation4 + $0x38] sm:$0xff]
        %v3569 = vadd.f32 %v3561, %v3531
        %v3570 = vadd.f32 %v3562, %v3534
        %v3571 = vadd.f32 %v3563, %v3539
        %v3572 = vadd.f32 %v3564, %v3542
        %v3573 = vadd.f32 %v3565, %v3547
        %v3574 = vadd.f32 %v3566, %v3550
        %v3575 = vadd.f32 %v3567, %v3555
        %v3576 = vadd.f32 %v3568, %v3558
        %3577 = vst [vmem:[#allocation4] sm:$0xff] %v3569
        %3578 = vst [vmem:[#allocation4 + $0x8] sm:$0xff] %v3570
        %3579 = vst [vmem:[#allocation4 + $0x10] sm:$0xff] %v3571
        %3580 = vst [vmem:[#allocation4 + $0x18] sm:$0xff] %v3572
        %3581 = vst [vmem:[#allocation4 + $0x20] sm:$0xff] %v3573
        %3582 = vst [vmem:[#allocation4 + $0x28] sm:$0xff] %v3574
        %3583 = vst [vmem:[#allocation4 + $0x30] sm:$0xff] %v3575
        %3584 = vst [vmem:[#allocation4 + $0x38] sm:$0xff] %v3576
        %s3585 = scalar_lea.vmem [#allocation2], 48
        %v3586 = vld [vmem:[%s3585] sm:$0xff]
        %v3587 = vld [vmem:[%s3585 + $0x8] sm:$0xff]
        %v3588 = vld [vmem:[%s3585 + $0x18] sm:$0xff]
        %v3589 = vld [vmem:[%s3585 + $0x20] sm:$0xff]
        %v3590 = vld [vmem:[%s3585 + $0x30] sm:$0xff]
        %v3591 = vld [vmem:[%s3585 + $0x38] sm:$0xff]
        %v3592 = vld [vmem:[%s3585 + $0x48] sm:$0xff]
        %v3593 = vld [vmem:[%s3585 + $0x50] sm:$0xff]
        %v3594 = vpack.c.bf16 %v3587, %v3586
        %v3595 = vpack.c.bf16 %v3589, %v3588
        %v3596 = vpack.c.bf16 %v3591, %v3590
        %v3597 = vpack.c.bf16 %v3593, %v3592
        %s3598 = scalar_lea.vmem [#allocation5], 384
        %v3599 = vld [vmem:[%s3598] sm:$0xf]
        %v3600 = vld [vmem:[%s3598 + $0x4] sm:$0xf]
        %v3601 = vld [vmem:[%s3598 + $0x8] sm:$0xf]
        %v3602 = vld [vmem:[%s3598 + $0xc] sm:$0xf]
        %v3603 = vld [vmem:[%s3598 + $0x10] sm:$0xf]
        %v3604 = vld [vmem:[%s3598 + $0x14] sm:$0xf]
        %v3605 = vld [vmem:[%s3598 + $0x18] sm:$0xf]
        %v3606 = vld [vmem:[%s3598 + $0x1c] sm:$0xf]
        %v3607 = vld [vmem:[%s3598 + $0x20] sm:$0xf]
        %v3608 = vld [vmem:[%s3598 + $0x24] sm:$0xf]
        %v3609 = vld [vmem:[%s3598 + $0x28] sm:$0xf]
        %v3610 = vld [vmem:[%s3598 + $0x2c] sm:$0xf]
        %v3611 = vld [vmem:[%s3598 + $0x30] sm:$0xf]
        %v3612 = vld [vmem:[%s3598 + $0x34] sm:$0xf]
        %v3613 = vld [vmem:[%s3598 + $0x38] sm:$0xf]
        %v3614 = vld [vmem:[%s3598 + $0x3c] sm:$0xf]
        %v3631 = vunpack.c.l.b16 %v3599
        %v3632 = vunpack.c.l.b16 %v3600
        %v3633 = vunpack.c.l.b16 %v3601
        %v3634 = vunpack.c.l.b16 %v3602
        %v3635 = vunpack.c.l.b16 %v3603
        %v3636 = vunpack.c.l.b16 %v3604
        %v3637 = vunpack.c.l.b16 %v3605
        %v3638 = vunpack.c.l.b16 %v3606
        %v3639 = vunpack.c.l.b16 %v3607
        %v3640 = vunpack.c.l.b16 %v3608
        %v3641 = vunpack.c.l.b16 %v3609
        %v3642 = vunpack.c.l.b16 %v3610
        %v3643 = vunpack.c.l.b16 %v3611
        %v3644 = vunpack.c.l.b16 %v3612
        %v3645 = vunpack.c.l.b16 %v3613
        %v3646 = vunpack.c.l.b16 %v3614
        %v3647 = vpack.c.b16 %v3632, %v3631
        %v3648 = vpack.c.b16 %v3634, %v3633
        %v3649 = vpack.c.b16 %v3636, %v3635
        %v3650 = vpack.c.b16 %v3638, %v3637
        %v3651 = vpack.c.b16 %v3640, %v3639
        %v3652 = vpack.c.b16 %v3642, %v3641
        %v3653 = vpack.c.b16 %v3644, %v3643
        %v3654 = vpack.c.b16 %v3646, %v3645
        %3663 = vmatprep.subr.bf16.mxu0 0
        %3664 = vmatpush1.bf16.msra.mxu0 %v3647
        %3665 = vmatprep.subr.bf16.mxu0 0
        %3666 = vmatpush1.bf16.msra.mxu0 %v3648
        %3667 = vmatprep.subr.bf16.mxu0 0
        %3668 = vmatpush1.bf16.msra.mxu0 %v3649
        %3669 = vmatprep.subr.bf16.mxu0 0
        %3670 = vmatpush1.bf16.msra.mxu0 %v3650
        %3671 = vmatprep.subr.bf16.mxu0 0
        %3672 = vmatpush1.bf16.msra.mxu0 %v3651
        %3673 = vmatprep.subr.bf16.mxu0 0
        %3674 = vmatpush1.bf16.msra.mxu0 %v3652
        %3675 = vmatprep.subr.bf16.mxu0 0
        %3676 = vmatpush1.bf16.msra.mxu0 %v3653
        %3677 = vmatprep.subr.bf16.mxu0 0
        %3678 = vmatpush1.bf16.msra.mxu0 %v3654
        %3679 = vmatprep.subr.bf16.mxu0 0
        %3680 = vmatpush1.bf16.msra.mxu0 0
        %3681 = vmatprep.subr.bf16.mxu0 0
        %3682 = vmatpush1.bf16.msra.mxu0 0
        %3683 = vmatprep.subr.bf16.mxu0 0
        %3684 = vmatpush1.bf16.msra.mxu0 0
        %3685 = vmatprep.subr.bf16.mxu0 0
        %3686 = vmatpush1.bf16.msra.mxu0 0
        %3687 = vmatprep.subr.bf16.mxu0 0
        %3688 = vmatpush1.bf16.msra.mxu0 0
        %3689 = vmatprep.subr.bf16.mxu0 0
        %3690 = vmatpush1.bf16.msra.mxu0 0
        %3691 = vmatprep.subr.bf16.mxu0 0
        %3692 = vmatpush1.bf16.msra.mxu0 0
        %3693 = vmatprep.subr.bf16.mxu0 0
        %3694 = vmatpush1.bf16.msra.mxu0 0
        %3695 = vmatprep.mubr.bf16.mxu0 0
        %3696 = vmatmul.mubr.bf16.gmra.mrb[0].mxu0 %v3594
        %v3697 = vpop.f32.mrb[0].mxu0
        %v3698 = vadd.f32 0.0, %v3697
        %v3699 = vpop.f32.mrb[0].mxu0
        %v3700 = vpop.f32.mrb[0].mxu0
        %v3701 = vadd.f32 0.0, %v3700
        %v3702 = vpop.f32.mrb[0].mxu0
        %3703 = vmatprep.mubr.bf16.mxu0 0
        %3704 = vmatmul.mubr.bf16.gmra.mrb[0].mxu0 %v3595
        %v3705 = vpop.f32.mrb[0].mxu0
        %v3706 = vadd.f32 0.0, %v3705
        %v3707 = vpop.f32.mrb[0].mxu0
        %v3708 = vpop.f32.mrb[0].mxu0
        %v3709 = vadd.f32 0.0, %v3708
        %v3710 = vpop.f32.mrb[0].mxu0
        %3711 = vmatprep.mubr.bf16.mxu0 0
        %3712 = vmatmul.mubr.bf16.gmra.mrb[0].mxu0 %v3596
        %v3713 = vpop.f32.mrb[0].mxu0
        %v3714 = vadd.f32 0.0, %v3713
        %v3715 = vpop.f32.mrb[0].mxu0
        %v3716 = vpop.f32.mrb[0].mxu0
        %v3717 = vadd.f32 0.0, %v3716
        %v3718 = vpop.f32.mrb[0].mxu0
        %3719 = vmatprep.mubr.bf16.mxu0 0
        %3720 = vmatmul.mubr.bf16.gmra.mrb[0].mxu0 %v3597
        %v3721 = vpop.f32.mrb[0].mxu0
        %v3722 = vadd.f32 0.0, %v3721
        %v3723 = vpop.f32.mrb[0].mxu0
        %v3724 = vpop.f32.mrb[0].mxu0
        %v3725 = vadd.f32 0.0, %v3724
        %v3726 = vpop.f32.mrb[0].mxu0
        %3727 = vdwg.mxu0
        %v3728 = vld [vmem:[#allocation4] sm:$0xff]
        %v3729 = vld [vmem:[#allocation4 + $0x8] sm:$0xff]
        %v3730 = vld [vmem:[#allocation4 + $0x10] sm:$0xff]
        %v3731 = vld [vmem:[#allocation4 + $0x18] sm:$0xff]
        %v3732 = vld [vmem:[#allocation4 + $0x20] sm:$0xff]
        %v3733 = vld [vmem:[#allocation4 + $0x28] sm:$0xff]
        %v3734 = vld [vmem:[#allocation4 + $0x30] sm:$0xff]
        %v3735 = vld [vmem:[#allocation4 + $0x38] sm:$0xff]
        %v3736 = vadd.f32 %v3728, %v3698
        %v3737 = vadd.f32 %v3729, %v3701
        %v3738 = vadd.f32 %v3730, %v3706
        %v3739 = vadd.f32 %v3731, %v3709
        %v3740 = vadd.f32 %v3732, %v3714
        %v3741 = vadd.f32 %v3733, %v3717
        %v3742 = vadd.f32 %v3734, %v3722
        %v3743 = vadd.f32 %v3735, %v3725
        %3744 = vst [vmem:[#allocation4] sm:$0xff] %v3736
        %3745 = vst [vmem:[#allocation4 + $0x8] sm:$0xff] %v3737
        %3746 = vst [vmem:[#allocation4 + $0x10] sm:$0xff] %v3738
        %3747 = vst [vmem:[#allocation4 + $0x18] sm:$0xff] %v3739
        %3748 = vst [vmem:[#allocation4 + $0x20] sm:$0xff] %v3740
        %3749 = vst [vmem:[#allocation4 + $0x28] sm:$0xff] %v3741
        %3750 = vst [vmem:[#allocation4 + $0x30] sm:$0xff] %v3742
        %3751 = vst [vmem:[#allocation4 + $0x38] sm:$0xff] %v3743
        %v3752 = vld [vmem:[%s3585 + $0x1] sm:$0xff]
        %v3753 = vld [vmem:[%s3585 + $0x9] sm:$0xff]
        %v3754 = vld [vmem:[%s3585 + $0x19] sm:$0xff]
        %v3755 = vld [vmem:[%s3585 + $0x21] sm:$0xff]
        %v3756 = vld [vmem:[%s3585 + $0x31] sm:$0xff]
        %v3757 = vld [vmem:[%s3585 + $0x39] sm:$0xff]
        %v3758 = vld [vmem:[%s3585 + $0x49] sm:$0xff]
        %v3759 = vld [vmem:[%s3585 + $0x51] sm:$0xff]
        %v3760 = vpack.c.bf16 %v3753, %v3752
        %v3761 = vpack.c.bf16 %v3755, %v3754
        %v3762 = vpack.c.bf16 %v3757, %v3756
        %v3763 = vpack.c.bf16 %v3759, %v3758
        %s3764 = scalar_lea.vmem [#allocation5], 448
        %v3765 = vld [vmem:[%s3764] sm:$0xf]
        %v3766 = vld [vmem:[%s3764 + $0x4] sm:$0xf]
        %v3767 = vld [vmem:[%s3764 + $0x8] sm:$0xf]
        %v3768 = vld [vmem:[%s3764 + $0xc] sm:$0xf]
        %v3769 = vld [vmem:[%s3764 + $0x10] sm:$0xf]
        %v3770 = vld [vmem:[%s3764 + $0x14] sm:$0xf]
        %v3771 = vld [vmem:[%s3764 + $0x18] sm:$0xf]
        %v3772 = vld [vmem:[%s3764 + $0x1c] sm:$0xf]
        %v3773 = vld [vmem:[%s3764 + $0x20] sm:$0xf]
        %v3774 = vld [vmem:[%s3764 + $0x24] sm:$0xf]
        %v3775 = vld [vmem:[%s3764 + $0x28] sm:$0xf]
        %v3776 = vld [vmem:[%s3764 + $0x2c] sm:$0xf]
        %v3777 = vld [vmem:[%s3764 + $0x30] sm:$0xf]
        %v3778 = vld [vmem:[%s3764 + $0x34] sm:$0xf]
        %v3779 = vld [vmem:[%s3764 + $0x38] sm:$0xf]
        %v3780 = vld [vmem:[%s3764 + $0x3c] sm:$0xf]
        %v3797 = vunpack.c.l.b16 %v3765
        %v3798 = vunpack.c.l.b16 %v3766
        %v3799 = vunpack.c.l.b16 %v3767
        %v3800 = vunpack.c.l.b16 %v3768
        %v3801 = vunpack.c.l.b16 %v3769
        %v3802 = vunpack.c.l.b16 %v3770
        %v3803 = vunpack.c.l.b16 %v3771
        %v3804 = vunpack.c.l.b16 %v3772
        %v3805 = vunpack.c.l.b16 %v3773
        %v3806 = vunpack.c.l.b16 %v3774
        %v3807 = vunpack.c.l.b16 %v3775
        %v3808 = vunpack.c.l.b16 %v3776
        %v3809 = vunpack.c.l.b16 %v3777
        %v3810 = vunpack.c.l.b16 %v3778
        %v3811 = vunpack.c.l.b16 %v3779
        %v3812 = vunpack.c.l.b16 %v3780
        %v3813 = vpack.c.b16 %v3798, %v3797
        %v3814 = vpack.c.b16 %v3800, %v3799
        %v3815 = vpack.c.b16 %v3802, %v3801
        %v3816 = vpack.c.b16 %v3804, %v3803
        %v3817 = vpack.c.b16 %v3806, %v3805
        %v3818 = vpack.c.b16 %v3808, %v3807
        %v3819 = vpack.c.b16 %v3810, %v3809
        %v3820 = vpack.c.b16 %v3812, %v3811
        %3829 = vmatprep.subr.bf16.mxu0 0
        %3830 = vmatpush1.bf16.msra.mxu0 %v3813
        %3831 = vmatprep.subr.bf16.mxu0 0
        %3832 = vmatpush1.bf16.msra.mxu0 %v3814
        %3833 = vmatprep.subr.bf16.mxu0 0
        %3834 = vmatpush1.bf16.msra.mxu0 %v3815
        %3835 = vmatprep.subr.bf16.mxu0 0
        %3836 = vmatpush1.bf16.msra.mxu0 %v3816
        %3837 = vmatprep.subr.bf16.mxu0 0
        %3838 = vmatpush1.bf16.msra.mxu0 %v3817
        %3839 = vmatprep.subr.bf16.mxu0 0
        %3840 = vmatpush1.bf16.msra.mxu0 %v3818
        %3841 = vmatprep.subr.bf16.mxu0 0
        %3842 = vmatpush1.bf16.msra.mxu0 %v3819
        %3843 = vmatprep.subr.bf16.mxu0 0
        %3844 = vmatpush1.bf16.msra.mxu0 %v3820
        %3845 = vmatprep.subr.bf16.mxu0 0
        %3846 = vmatpush1.bf16.msra.mxu0 0
        %3847 = vmatprep.subr.bf16.mxu0 0
        %3848 = vmatpush1.bf16.msra.mxu0 0
        %3849 = vmatprep.subr.bf16.mxu0 0
        %3850 = vmatpush1.bf16.msra.mxu0 0
        %3851 = vmatprep.subr.bf16.mxu0 0
        %3852 = vmatpush1.bf16.msra.mxu0 0
        %3853 = vmatprep.subr.bf16.mxu0 0
        %3854 = vmatpush1.bf16.msra.mxu0 0
        %3855 = vmatprep.subr.bf16.mxu0 0
        %3856 = vmatpush1.bf16.msra.mxu0 0
        %3857 = vmatprep.subr.bf16.mxu0 0
        %3858 = vmatpush1.bf16.msra.mxu0 0
        %3859 = vmatprep.subr.bf16.mxu0 0
        %3860 = vmatpush1.bf16.msra.mxu0 0
        %3861 = vmatprep.mubr.bf16.mxu0 0
        %3862 = vmatmul.mubr.bf16.gmra.mrb[0].mxu0 %v3760
        %v3863 = vpop.f32.mrb[0].mxu0
        %v3864 = vadd.f32 0.0, %v3863
        %v3865 = vpop.f32.mrb[0].mxu0
        %v3866 = vpop.f32.mrb[0].mxu0
        %v3867 = vadd.f32 0.0, %v3866
        %v3868 = vpop.f32.mrb[0].mxu0
        %3869 = vmatprep.mubr.bf16.mxu0 0
        %3870 = vmatmul.mubr.bf16.gmra.mrb[0].mxu0 %v3761
        %v3871 = vpop.f32.mrb[0].mxu0
        %v3872 = vadd.f32 0.0, %v3871
        %v3873 = vpop.f32.mrb[0].mxu0
        %v3874 = vpop.f32.mrb[0].mxu0
        %v3875 = vadd.f32 0.0, %v3874
        %v3876 = vpop.f32.mrb[0].mxu0
        %3877 = vmatprep.mubr.bf16.mxu0 0
        %3878 = vmatmul.mubr.bf16.gmra.mrb[0].mxu0 %v3762
        %v3879 = vpop.f32.mrb[0].mxu0
        %v3880 = vadd.f32 0.0, %v3879
        %v3881 = vpop.f32.mrb[0].mxu0
        %v3882 = vpop.f32.mrb[0].mxu0
        %v3883 = vadd.f32 0.0, %v3882
        %v3884 = vpop.f32.mrb[0].mxu0
        %3885 = vmatprep.mubr.bf16.mxu0 0
        %3886 = vmatmul.mubr.bf16.gmra.mrb[0].mxu0 %v3763
        %v3887 = vpop.f32.mrb[0].mxu0
        %v3888 = vadd.f32 0.0, %v3887
        %v3889 = vpop.f32.mrb[0].mxu0
        %v3890 = vpop.f32.mrb[0].mxu0
        %v3891 = vadd.f32 0.0, %v3890
        %v3892 = vpop.f32.mrb[0].mxu0
        %3893 = vdwg.mxu0
        %v3894 = vld [vmem:[#allocation4] sm:$0xff]
        %v3895 = vld [vmem:[#allocation4 + $0x8] sm:$0xff]
        %v3896 = vld [vmem:[#allocation4 + $0x10] sm:$0xff]
        %v3897 = vld [vmem:[#allocation4 + $0x18] sm:$0xff]
        %v3898 = vld [vmem:[#allocation4 + $0x20] sm:$0xff]
        %v3899 = vld [vmem:[#allocation4 + $0x28] sm:$0xff]
        %v3900 = vld [vmem:[#allocation4 + $0x30] sm:$0xff]
        %v3901 = vld [vmem:[#allocation4 + $0x38] sm:$0xff]
        %v3902 = vadd.f32 %v3894, %v3864
        %v3903 = vadd.f32 %v3895, %v3867
        %v3904 = vadd.f32 %v3896, %v3872
        %v3905 = vadd.f32 %v3897, %v3875
        %v3906 = vadd.f32 %v3898, %v3880
        %v3907 = vadd.f32 %v3899, %v3883
        %v3908 = vadd.f32 %v3900, %v3888
        %v3909 = vadd.f32 %v3901, %v3891
        %3910 = vst [vmem:[#allocation4] sm:$0xff] %v3902
        %3911 = vst [vmem:[#allocation4 + $0x8] sm:$0xff] %v3903
        %3912 = vst [vmem:[#allocation4 + $0x10] sm:$0xff] %v3904
        %3913 = vst [vmem:[#allocation4 + $0x18] sm:$0xff] %v3905
        %3914 = vst [vmem:[#allocation4 + $0x20] sm:$0xff] %v3906
        %3915 = vst [vmem:[#allocation4 + $0x28] sm:$0xff] %v3907
        %3916 = vst [vmem:[#allocation4 + $0x30] sm:$0xff] %v3908
        %3917 = vst [vmem:[#allocation4 + $0x38] sm:$0xff] %v3909
        %v3918 = vld [vmem:[%s3585 + $0x2] sm:$0xff]
        %v3919 = vld [vmem:[%s3585 + $0xa] sm:$0xff]
        %v3920 = vld [vmem:[%s3585 + $0x1a] sm:$0xff]
        %v3921 = vld [vmem:[%s3585 + $0x22] sm:$0xff]
        %v3922 = vld [vmem:[%s3585 + $0x32] sm:$0xff]
        %v3923 = vld [vmem:[%s3585 + $0x3a] sm:$0xff]
        %v3924 = vld [vmem:[%s3585 + $0x4a] sm:$0xff]
        %v3925 = vld [vmem:[%s3585 + $0x52] sm:$0xff]
        %v3926 = vpack.c.bf16 %v3919, %v3918
        %v3927 = vpack.c.bf16 %v3921, %v3920
        %v3928 = vpack.c.bf16 %v3923, %v3922
        %v3929 = vpack.c.bf16 %v3925, %v3924
        %s3930 = scalar_lea.vmem [#allocation5], 512
        %v3931 = vld [vmem:[%s3930] sm:$0xf]
        %v3932 = vld [vmem:[%s3930 + $0x4] sm:$0xf]
        %v3933 = vld [vmem:[%s3930 + $0x8] sm:$0xf]
        %v3934 = vld [vmem:[%s3930 + $0xc] sm:$0xf]
        %v3935 = vld [vmem:[%s3930 + $0x10] sm:$0xf]
        %v3936 = vld [vmem:[%s3930 + $0x14] sm:$0xf]
        %v3937 = vld [vmem:[%s3930 + $0x18] sm:$0xf]
        %v3938 = vld [vmem:[%s3930 + $0x1c] sm:$0xf]
        %v3939 = vld [vmem:[%s3930 + $0x20] sm:$0xf]
        %v3940 = vld [vmem:[%s3930 + $0x24] sm:$0xf]
        %v3941 = vld [vmem:[%s3930 + $0x28] sm:$0xf]
        %v3942 = vld [vmem:[%s3930 + $0x2c] sm:$0xf]
        %v3943 = vld [vmem:[%s3930 + $0x30] sm:$0xf]
        %v3944 = vld [vmem:[%s3930 + $0x34] sm:$0xf]
        %v3945 = vld [vmem:[%s3930 + $0x38] sm:$0xf]
        %v3946 = vld [vmem:[%s3930 + $0x3c] sm:$0xf]
        %v3963 = vunpack.c.l.b16 %v3931
        %v3964 = vunpack.c.l.b16 %v3932
        %v3965 = vunpack.c.l.b16 %v3933
        %v3966 = vunpack.c.l.b16 %v3934
        %v3967 = vunpack.c.l.b16 %v3935
        %v3968 = vunpack.c.l.b16 %v3936
        %v3969 = vunpack.c.l.b16 %v3937
        %v3970 = vunpack.c.l.b16 %v3938
        %v3971 = vunpack.c.l.b16 %v3939
        %v3972 = vunpack.c.l.b16 %v3940
        %v3973 = vunpack.c.l.b16 %v3941
        %v3974 = vunpack.c.l.b16 %v3942
        %v3975 = vunpack.c.l.b16 %v3943
        %v3976 = vunpack.c.l.b16 %v3944
        %v3977 = vunpack.c.l.b16 %v3945
        %v3978 = vunpack.c.l.b16 %v3946
        %v3979 = vpack.c.b16 %v3964, %v3963
        %v3980 = vpack.c.b16 %v3966, %v3965
        %v3981 = vpack.c.b16 %v3968, %v3967
        %v3982 = vpack.c.b16 %v3970, %v3969
        %v3983 = vpack.c.b16 %v3972, %v3971
        %v3984 = vpack.c.b16 %v3974, %v3973
        %v3985 = vpack.c.b16 %v3976, %v3975
        %v3986 = vpack.c.b16 %v3978, %v3977
        %3995 = vmatprep.subr.bf16.mxu0 0
        %3996 = vmatpush1.bf16.msra.mxu0 %v3979
        %3997 = vmatprep.subr.bf16.mxu0 0
        %3998 = vmatpush1.bf16.msra.mxu0 %v3980
        %3999 = vmatprep.subr.bf16.mxu0 0
        %4000 = vmatpush1.bf16.msra.mxu0 %v3981
        %4001 = vmatprep.subr.bf16.mxu0 0
        %4002 = vmatpush1.bf16.msra.mxu0 %v3982
        %4003 = vmatprep.subr.bf16.mxu0 0
        %4004 = vmatpush1.bf16.msra.mxu0 %v3983
        %4005 = vmatprep.subr.bf16.mxu0 0
        %4006 = vmatpush1.bf16.msra.mxu0 %v3984
        %4007 = vmatprep.subr.bf16.mxu0 0
        %4008 = vmatpush1.bf16.msra.mxu0 %v3985
        %4009 = vmatprep.subr.bf16.mxu0 0
        %4010 = vmatpush1.bf16.msra.mxu0 %v3986
        %4011 = vmatprep.subr.bf16.mxu0 0
        %4012 = vmatpush1.bf16.msra.mxu0 0
        %4013 = vmatprep.subr.bf16.mxu0 0
        %4014 = vmatpush1.bf16.msra.mxu0 0
        %4015 = vmatprep.subr.bf16.mxu0 0
        %4016 = vmatpush1.bf16.msra.mxu0 0
        %4017 = vmatprep.subr.bf16.mxu0 0
        %4018 = vmatpush1.bf16.msra.mxu0 0
        %4019 = vmatprep.subr.bf16.mxu0 0
        %4020 = vmatpush1.bf16.msra.mxu0 0
        %4021 = vmatprep.subr.bf16.mxu0 0
        %4022 = vmatpush1.bf16.msra.mxu0 0
        %4023 = vmatprep.subr.bf16.mxu0 0
        %4024 = vmatpush1.bf16.msra.mxu0 0
        %4025 = vmatprep.subr.bf16.mxu0 0
        %4026 = vmatpush1.bf16.msra.mxu0 0
        %4027 = vmatprep.mubr.bf16.mxu0 0
        %4028 = vmatmul.mubr.bf16.gmra.mrb[0].mxu0 %v3926
        %v4029 = vpop.f32.mrb[0].mxu0
        %v4030 = vadd.f32 0.0, %v4029
        %v4031 = vpop.f32.mrb[0].mxu0
        %v4032 = vpop.f32.mrb[0].mxu0
        %v4033 = vadd.f32 0.0, %v4032
        %v4034 = vpop.f32.mrb[0].mxu0
        %4035 = vmatprep.mubr.bf16.mxu0 0
        %4036 = vmatmul.mubr.bf16.gmra.mrb[0].mxu0 %v3927
        %v4037 = vpop.f32.mrb[0].mxu0
        %v4038 = vadd.f32 0.0, %v4037
        %v4039 = vpop.f32.mrb[0].mxu0
        %v4040 = vpop.f32.mrb[0].mxu0
        %v4041 = vadd.f32 0.0, %v4040
        %v4042 = vpop.f32.mrb[0].mxu0
        %4043 = vmatprep.mubr.bf16.mxu0 0
        %4044 = vmatmul.mubr.bf16.gmra.mrb[0].mxu0 %v3928
        %v4045 = vpop.f32.mrb[0].mxu0
        %v4046 = vadd.f32 0.0, %v4045
        %v4047 = vpop.f32.mrb[0].mxu0
        %v4048 = vpop.f32.mrb[0].mxu0
        %v4049 = vadd.f32 0.0, %v4048
        %v4050 = vpop.f32.mrb[0].mxu0
        %4051 = vmatprep.mubr.bf16.mxu0 0
        %4052 = vmatmul.mubr.bf16.gmra.mrb[0].mxu0 %v3929
        %v4053 = vpop.f32.mrb[0].mxu0
        %v4054 = vadd.f32 0.0, %v4053
        %v4055 = vpop.f32.mrb[0].mxu0
        %v4056 = vpop.f32.mrb[0].mxu0
        %v4057 = vadd.f32 0.0, %v4056
        %v4058 = vpop.f32.mrb[0].mxu0
        %4059 = vdwg.mxu0
        %v4060 = vld [vmem:[#allocation4] sm:$0xff]
        %v4061 = vld [vmem:[#allocation4 + $0x8] sm:$0xff]
        %v4062 = vld [vmem:[#allocation4 + $0x10] sm:$0xff]
        %v4063 = vld [vmem:[#allocation4 + $0x18] sm:$0xff]
        %v4064 = vld [vmem:[#allocation4 + $0x20] sm:$0xff]
        %v4065 = vld [vmem:[#allocation4 + $0x28] sm:$0xff]
        %v4066 = vld [vmem:[#allocation4 + $0x30] sm:$0xff]
        %v4067 = vld [vmem:[#allocation4 + $0x38] sm:$0xff]
        %v4068 = vadd.f32 %v4060, %v4030
        %v4069 = vadd.f32 %v4061, %v4033
        %v4070 = vadd.f32 %v4062, %v4038
        %v4071 = vadd.f32 %v4063, %v4041
        %v4072 = vadd.f32 %v4064, %v4046
        %v4073 = vadd.f32 %v4065, %v4049
        %v4074 = vadd.f32 %v4066, %v4054
        %v4075 = vadd.f32 %v4067, %v4057
        %4076 = vst [vmem:[#allocation4] sm:$0xff] %v4068
        %4077 = vst [vmem:[#allocation4 + $0x8] sm:$0xff] %v4069
        %4078 = vst [vmem:[#allocation4 + $0x10] sm:$0xff] %v4070
        %4079 = vst [vmem:[#allocation4 + $0x18] sm:$0xff] %v4071
        %4080 = vst [vmem:[#allocation4 + $0x20] sm:$0xff] %v4072
        %4081 = vst [vmem:[#allocation4 + $0x28] sm:$0xff] %v4073
        %4082 = vst [vmem:[#allocation4 + $0x30] sm:$0xff] %v4074
        %4083 = vst [vmem:[#allocation4 + $0x38] sm:$0xff] %v4075
        %v4084 = vld [vmem:[%s1778] sm:$0xf]
        %v4085 = vld [vmem:[%s1778 + $0x4] sm:$0xf]
        %v4086 = vld [vmem:[%s1778 + $0x8] sm:$0x1]
        %v4087 = vld [vmem:[%s1778 + $0xc] sm:$0xf]
        %v4088 = vld [vmem:[%s1778 + $0x10] sm:$0xf]
        %v4089 = vld [vmem:[%s1778 + $0x14] sm:$0x1]
        %v4090 = vld [vmem:[%s1778 + $0x18] sm:$0xf]
        %v4091 = vld [vmem:[%s1778 + $0x1c] sm:$0xf]
        %v4092 = vld [vmem:[%s1778 + $0x20] sm:$0x1]
        %v4093 = vld [vmem:[%s1778 + $0x24] sm:$0xf]
        %v4094 = vld [vmem:[%s1778 + $0x28] sm:$0xf]
        %v4095 = vld [vmem:[%s1778 + $0x2c] sm:$0x1]
        %v4097 = vshrl.u32 %v4084, 16
        %v4099 = vrot.slane %v4097, 4
        %v4100 = vshll.u32 %v4084, 16
        %v4102 = vrot.slane %v4100, 5
        %v4103 = vor.u32 %v4099, %v4102
        %v4104 = vrot.slane %v4103, 4
        %v4106 = vshll.u32 %v4085, 16
        %v4108 = vrot.slane %v4106, 5
        %v4109 = vsel %vm491, %v4104, %v4108
        %v4110 = vshrl.u32 %v4085, 16
        %v4112 = vrot.slane %v4110, 4
        %v4113 = vor.u32 %v4112, %v4108
        %v4114 = vrot.slane %v4113, 4
        %v4116 = vshll.u32 %v4086, 16
        %v4118 = vrot.slane %v4116, 5
        %v4119 = vsel %vm491, %v4114, %v4118
        %v4121 = vshrl.u32 %v4087, 16
        %v4123 = vrot.slane %v4121, 4
        %v4124 = vshll.u32 %v4087, 16
        %v4126 = vrot.slane %v4124, 5
        %v4127 = vor.u32 %v4123, %v4126
        %v4128 = vrot.slane %v4127, 4
        %v4130 = vshll.u32 %v4088, 16
        %v4132 = vrot.slane %v4130, 5
        %v4133 = vsel %vm491, %v4128, %v4132
        %v4134 = vshrl.u32 %v4088, 16
        %v4136 = vrot.slane %v4134, 4
        %v4137 = vor.u32 %v4136, %v4132
        %v4138 = vrot.slane %v4137, 4
        %v4140 = vshll.u32 %v4089, 16
        %v4142 = vrot.slane %v4140, 5
        %v4143 = vsel %vm491, %v4138, %v4142
        %v4145 = vshrl.u32 %v4090, 16
        %v4147 = vrot.slane %v4145, 4
        %v4148 = vshll.u32 %v4090, 16
        %v4150 = vrot.slane %v4148, 5
        %v4151 = vor.u32 %v4147, %v4150
        %v4152 = vrot.slane %v4151, 4
        %v4154 = vshll.u32 %v4091, 16
        %v4156 = vrot.slane %v4154, 5
        %v4157 = vsel %vm491, %v4152, %v4156
        %v4158 = vshrl.u32 %v4091, 16
        %v4160 = vrot.slane %v4158, 4
        %v4161 = vor.u32 %v4160, %v4156
        %v4162 = vrot.slane %v4161, 4
        %v4164 = vshll.u32 %v4092, 16
        %v4166 = vrot.slane %v4164, 5
        %v4167 = vsel %vm491, %v4162, %v4166
        %v4169 = vshrl.u32 %v4093, 16
        %v4171 = vrot.slane %v4169, 4
        %v4172 = vshll.u32 %v4093, 16
        %v4174 = vrot.slane %v4172, 5
        %v4175 = vor.u32 %v4171, %v4174
        %v4176 = vrot.slane %v4175, 4
        %v4178 = vshll.u32 %v4094, 16
        %v4180 = vrot.slane %v4178, 5
        %v4181 = vsel %vm491, %v4176, %v4180
        %v4182 = vshrl.u32 %v4094, 16
        %v4184 = vrot.slane %v4182, 4
        %v4185 = vor.u32 %v4184, %v4180
        %v4186 = vrot.slane %v4185, 4
        %v4188 = vshll.u32 %v4095, 16
        %v4190 = vrot.slane %v4188, 5
        %v4191 = vsel %vm491, %v4186, %v4190
        %v4192 = vld [vmem:[%s2] sm:$0x3]
        %v4193 = vld [vmem:[%s5] sm:$0x1]
        %v4195 = vlaneseq
        %v4196 = vshrl.u32 %v4195, 7
        %v4197 = vsub.s32 0, %v4196
        %v4198 = vrot.slane %v4193, %v4197
        %v4200 = vunpack.c.l.b16 %v4109
        %v4201 = vunpack.c.l.b16 %v4119
        %v4202 = vunpack.c.l.b16 %v4133
        %v4203 = vunpack.c.l.b16 %v4143
        %v4204 = vunpack.c.l.b16 %v4157
        %v4205 = vunpack.c.l.b16 %v4167
        %v4206 = vunpack.c.l.b16 %v4181
        %v4207 = vunpack.c.l.b16 %v4191
        %v4208 = vpack.c.b16 %v4201, %v4200
        %v4209 = vpack.c.b16 %v4203, %v4202
        %v4210 = vpack.c.b16 %v4205, %v4204
        %v4211 = vpack.c.b16 %v4207, %v4206
        %v4213 = vsel %vm355, %v4208, 0
        %v4216 = vsel %vm355, %v4209, 0
        %v4219 = vsel %vm355, %v4210, 0
        %v4222 = vsel %vm355, %v4211, 0
        %v4225 = vsel %vm374, %v4192, 0
        %4227 = vmatprep.subr.bf16.mxu0 0
        %4228 = vmatpush1.bf16.msra.mxu0 %v4225
        %4229 = vmatprep.subr.bf16.mxu0 0
        %4230 = vmatpush1.bf16.msra.mxu0 0
        %4231 = vmatprep.subr.bf16.mxu0 0
        %4232 = vmatpush1.bf16.msra.mxu0 0
        %4233 = vmatprep.subr.bf16.mxu0 0
        %4234 = vmatpush1.bf16.msra.mxu0 0
        %4235 = vmatprep.subr.bf16.mxu0 0
        %4236 = vmatpush1.bf16.msra.mxu0 0
        %4237 = vmatprep.subr.bf16.mxu0 0
        %4238 = vmatpush1.bf16.msra.mxu0 0
        %4239 = vmatprep.subr.bf16.mxu0 0
        %4240 = vmatpush1.bf16.msra.mxu0 0
        %4241 = vmatprep.subr.bf16.mxu0 0
        %4242 = vmatpush1.bf16.msra.mxu0 0
        %4243 = vmatprep.subr.bf16.mxu0 0
        %4244 = vmatpush1.bf16.msra.mxu0 0
        %4245 = vmatprep.subr.bf16.mxu0 0
        %4246 = vmatpush1.bf16.msra.mxu0 0
        %4247 = vmatprep.subr.bf16.mxu0 0
        %4248 = vmatpush1.bf16.msra.mxu0 0
        %4249 = vmatprep.subr.bf16.mxu0 0
        %4250 = vmatpush1.bf16.msra.mxu0 0
        %4251 = vmatprep.subr.bf16.mxu0 0
        %4252 = vmatpush1.bf16.msra.mxu0 0
        %4253 = vmatprep.subr.bf16.mxu0 0
        %4254 = vmatpush1.bf16.msra.mxu0 0
        %4255 = vmatprep.subr.bf16.mxu0 0
        %4256 = vmatpush1.bf16.msra.mxu0 0
        %4257 = vmatprep.subr.bf16.mxu0 0
        %4258 = vmatpush1.bf16.msra.mxu0 0
        %4259 = vmatprep.mubr.bf16.mxu0 0
        %4260 = vmatmul.mubr.bf16.gmra.mrb[0].mxu0 %v4213
        %v4261 = vpop.f32.mrb[0].mxu0
        %v4262 = vadd.f32 %v4198, %v4261
        %v4263 = vpop.f32.mrb[0].mxu0
        %v4264 = vpop.f32.mrb[0].mxu0
        %v4265 = vadd.f32 %v4198, %v4264
        %v4266 = vpop.f32.mrb[0].mxu0
        %4267 = vmatprep.mubr.bf16.mxu0 0
        %4268 = vmatmul.mubr.bf16.gmra.mrb[0].mxu0 %v4216
        %v4269 = vpop.f32.mrb[0].mxu0
        %v4270 = vadd.f32 %v4198, %v4269
        %v4271 = vpop.f32.mrb[0].mxu0
        %v4272 = vpop.f32.mrb[0].mxu0
        %v4273 = vadd.f32 %v4198, %v4272
        %v4274 = vpop.f32.mrb[0].mxu0
        %4275 = vmatprep.mubr.bf16.mxu0 0
        %4276 = vmatmul.mubr.bf16.gmra.mrb[0].mxu0 %v4219
        %v4277 = vpop.f32.mrb[0].mxu0
        %v4278 = vadd.f32 %v4198, %v4277
        %v4279 = vpop.f32.mrb[0].mxu0
        %v4280 = vpop.f32.mrb[0].mxu0
        %v4281 = vadd.f32 %v4198, %v4280
        %v4282 = vpop.f32.mrb[0].mxu0
        %4283 = vmatprep.mubr.bf16.mxu0 0
        %4284 = vmatmul.mubr.bf16.gmra.mrb[0].mxu0 %v4222
        %v4285 = vpop.f32.mrb[0].mxu0
        %v4286 = vadd.f32 %v4198, %v4285
        %v4287 = vpop.f32.mrb[0].mxu0
        %v4288 = vpop.f32.mrb[0].mxu0
        %v4289 = vadd.f32 %v4198, %v4288
        %v4290 = vpop.f32.mrb[0].mxu0
        %4291 = vdwg.mxu0
        %v4292 = vld [vmem:[#allocation4] sm:$0xff]
        %v4293 = vld [vmem:[#allocation4 + $0x8] sm:$0xff]
        %v4294 = vld [vmem:[#allocation4 + $0x10] sm:$0xff]
        %v4295 = vld [vmem:[#allocation4 + $0x18] sm:$0xff]
        %v4296 = vld [vmem:[#allocation4 + $0x20] sm:$0xff]
        %v4297 = vld [vmem:[#allocation4 + $0x28] sm:$0xff]
        %v4298 = vld [vmem:[#allocation4 + $0x30] sm:$0xff]
        %v4299 = vld [vmem:[#allocation4 + $0x38] sm:$0xff]
        %v4300 = vld [vmem:[%s6] sm:$0x1]
        %v4302 = vlaneseq
        %v4303 = vshrl.u32 %v4302, 7
        %v4304 = vsub.s32 0, %v4303
        %v4305 = vrot.slane %v4300, %v4304
        %v4307 = vadd.f32 %v4292, %v4305
        %v4308 = vadd.f32 %v4293, %v4305
        %v4309 = vadd.f32 %v4294, %v4305
        %v4310 = vadd.f32 %v4295, %v4305
        %v4311 = vadd.f32 %v4296, %v4305
        %v4312 = vadd.f32 %v4297, %v4305
        %v4313 = vadd.f32 %v4298, %v4305
        %v4314 = vadd.f32 %v4299, %v4305
        %v4315 = vmax.f32 %v4307, 0.0
        %v4316 = vmax.f32 %v4308, 0.0
        %v4317 = vmax.f32 %v4309, 0.0
        %v4318 = vmax.f32 %v4310, 0.0
        %v4319 = vmax.f32 %v4311, 0.0
        %v4320 = vmax.f32 %v4312, 0.0
        %v4321 = vmax.f32 %v4313, 0.0
        %v4322 = vmax.f32 %v4314, 0.0
        %v4323 = vadd.f32 %v4315, %v4262
        %v4324 = vadd.f32 %v4316, %v4265
        %v4325 = vadd.f32 %v4317, %v4270
        %v4326 = vadd.f32 %v4318, %v4273
        %v4327 = vadd.f32 %v4319, %v4278
        %v4328 = vadd.f32 %v4320, %v4281
        %v4329 = vadd.f32 %v4321, %v4286
        %v4330 = vadd.f32 %v4322, %v4289
        %v4331 = vmax.f32 %v4323, 0.0
        %v4332 = vmax.f32 %v4324, 0.0
        %v4333 = vmax.f32 %v4325, 0.0
        %v4334 = vmax.f32 %v4326, 0.0
        %v4335 = vmax.f32 %v4327, 0.0
        %v4336 = vmax.f32 %v4328, 0.0
        %v4337 = vmax.f32 %v4329, 0.0
        %v4338 = vmax.f32 %v4330, 0.0
        %4339 = vst [vmem:[%s300] sm:$0xff] %v4331
        %4340 = vst [vmem:[%s300 + $0x8] sm:$0xff] %v4332
        %4341 = vst [vmem:[%s300 + $0x10] sm:$0xff] %v4333
        %4342 = vst [vmem:[%s300 + $0x18] sm:$0xff] %v4334
        %4343 = vst [vmem:[%s300 + $0x20] sm:$0xff] %v4335
        %4344 = vst [vmem:[%s300 + $0x28] sm:$0xff] %v4336
        %4345 = vst [vmem:[%s300 + $0x30] sm:$0xff] %v4337
        %4346 = vst [vmem:[%s300 + $0x38] sm:$0xff] %v4338
        %s4347 = sand.u32 %s196, 1
        %s4348 = scalar_lea.sflag [#allocation7], %s4347
        %s4349 = sand.u32 %s196, 1
        %s4350 = smul.addr %s4349, 64
        %s4351 = scalar_lea.vmem [#allocation8], %s4350
        // Predicated region
        $region61: #{tpu_custom_call.1} parent=47 // pred_check
          %p4352 = pneg %p206
        $region62: #{tpu_custom_call.1} parent=47 // pred_check_branch
          %4354 = sbr.rel (%p4352) target = $region64
        $region63: #{tpu_custom_call.1} parent=47 // pred_region
          %s4355 = smul.u32 4, %s27
          %s4357 = ssub.s32 1024, 1024
          %4358 = vsyncadd %s4348, %s4357
          %s4359 = smul.addr %s4355, 2
          %s4360 = smul.addr %s26, 32
          %s4361 = sadd.s32 %s4359, %s4360
          %s4362 = smul.addr %s4361, 128
          %s4363 = scalar_lea.hbm %s7, %s4362
          %s4364 = sshll.u32 %s4351, 4
          %s4365 = int_to_ptr.vmem [resolvable:$true] %s4364
          %4370 = dma.vmem_to_hbm [thread:$0]  %s4365, 1024, %s4363, %s4348, 128, 128, 8
        $region64: #{tpu_custom_call.1} parent=47 // pred_fallthru
          _
      $region48: #{tpu_custom_call.1} parent=5 // pred_fallthru
        _
      %p4371 = scmp.le.s32.totalorder 2, %s17
      // Predicated region
      $region65: #{tpu_custom_call.1} parent=5 // pred_check
        %p4372 = pneg %p4371
      $region66: #{tpu_custom_call.1} parent=5 // pred_check_branch
        %4374 = sbr.rel (%p4372) target = $region68
      $region67: #{tpu_custom_call.1} parent=5 // pred_region
        %s4375 = ssub.s32 %s17, 2
        // Predicated region
        $region69: #{tpu_custom_call.1} parent=67 // pred_check
          %p4376 = pneg %p212
        $region70: #{tpu_custom_call.1} parent=67 // pred_check_branch
          %4378 = sbr.rel (%p4376) target = $region72
        $region71: #{tpu_custom_call.1} parent=67 // pred_region
          %s4379 = sand.u32 %s197, 1
          %s4380 = scalar_lea.sflag [#allocation7], %s4379
          %s4381 = sand.u32 %s197, 1
          %s4382 = smul.addr %s4381, 64
          %s4383 = scalar_lea.vmem [#allocation8], %s4382
          %4384 = dma.done %s4380, 1024
        $region72: #{tpu_custom_call.1} parent=67 // pred_fallthru
          _
      $region68: #{tpu_custom_call.1} parent=5 // pred_fallthru
        _
    $region6: #{tpu_custom_call.1} parent=1 // loop_footer
      %s21 = sadd.s32 1, %s17
    $region7: #{tpu_custom_call.1} parent=1 // loop_footer_branch
      %16 = sbr.rel target = $region3
    $region8: #{tpu_custom_call.1} parent=1 // loop_exit
      _
    %4385 = vsyncpa [#allocation6], 1
    %s4386 = scalar_lea.sflag [#allocation6], 1
    %4387 = vsyncpa %s4386, 1
    %4388 = vsyncpa [#allocation7], 1
    %s4389 = scalar_lea.sflag [#allocation7], 1
    %4390 = vsyncpa %s4389, 1

</llo_original>
